<compile_context>
chip_gen: v7x
topology: tpu7x:2x2x1
jax: 0.10.0
libtpu: 0.0.40
codegen_flags: <defaults>
</compile_context>

<pallas_src>
import jax
import jax.numpy as jnp
from jax.experimental import pallas as pl
from jax.experimental.pallas import tpu as pltpu

# ----------------------------- config ---------------------------------------
B, C_IN, H, W = 2, 4, 16, 16        # input [B, C, H, W] (NCHW, PyTorch convention)
F_MID = 8                           # backbone conv output channels
NUM_CLASSES = 3
K_OUT = 4 + NUM_CLASSES             # 4 box deltas + class logits
R = H * W                           # 256 detection rows for image 0


# ----------------------------- Pallas kernel --------------------------------
def det_kernel(xpad_ref, wconv_ref, bconv_ref, wbox_ref, bbox_ref,
               wcls_ref, bcls_ref, anc_ref,
               boxes_ref, scores_ref, labels_ref):
    # --- fused im2col + 3x3 'same' conv: 9 shifted-patch matmuls on the MXU ---
    feat = jnp.zeros((R, F_MID), jnp.float32)
    for k in range(9):
        dy, dx = k // 3, k % 3
        # (H, W, C) window of the zero-padded image -> (R, C) slab.
        patch = xpad_ref[dy:dy + H, dx:dx + W, :].reshape(R, C_IN)
        feat = feat + jnp.dot(patch, wconv_ref[k],
                              preferred_element_type=jnp.float32)
    feat = jnp.maximum(feat + bconv_ref[...], 0.0)          # bias + ReLU (VPU)

    # --- 1x1 detection head, computed transposed so outputs are lane-dense ---
    feat_t = feat.T                                         # (F_MID, R), XLU
    deltas_t = jnp.dot(wbox_ref[...], feat_t,
                       preferred_element_type=jnp.float32) + bbox_ref[...]   # (4, R)
    logits_t = jnp.dot(wcls_ref[...], feat_t,
                       preferred_element_type=jnp.float32) + bcls_ref[...]   # (NC, R)

    # --- fused post-processing (boxes / softmax-max scores / argmax labels) ---
    boxes_ref[...] = anc_ref[...] + deltas_t                # (4, R)

    m = jnp.max(logits_t, axis=0, keepdims=True)            # (1, R)
    denom = jnp.sum(jnp.exp(logits_t - m), axis=0, keepdims=True)
    # max softmax prob == 1 / sum_j exp(l_j - l_max); reciprocal on the EUP.
    scores_ref[...] = pl.reciprocal(denom, approx=True)     # (1, R)

    # argmax over classes (first max index, matching jnp.argmax / torch.argmax).
    cls_idx = jax.lax.broadcasted_iota(jnp.int32, (NUM_CLASSES, R), 0)
    cand = jnp.where(logits_t >= m, cls_idx, NUM_CLASSES)
    labels_ref[...] = jnp.min(cand, axis=0, keepdims=True)  # (1, R) int32


def det_pallas(xpad, wconv9, bconv, wbox_t, bbox_t, wcls_t, bcls_t, anchors_t):
    vmem = lambda: pl.BlockSpec(memory_space=pltpu.MemorySpace.VMEM)
    return pl.pallas_call(
        det_kernel,
        out_shape=(
            jax.ShapeDtypeStruct((4, R), jnp.float32),   # boxes^T
            jax.ShapeDtypeStruct((1, R), jnp.float32),   # scores
            jax.ShapeDtypeStruct((1, R), jnp.int32),     # labels
        ),
        in_specs=[vmem() for _ in range(8)],
        out_specs=(vmem(), vmem(), vmem()),
    )(xpad, wconv9, bconv, wbox_t, bbox_t, wcls_t, bcls_t, anchors_t)


# ----------------------------- JAX glue --------------------------------------
def make_anchors(h, w):
    """One unit-square anchor per feature-map cell, flattened in (row, col) order."""
    ys, xs = jnp.meshgrid(jnp.arange(h, dtype=jnp.float32),
                          jnp.arange(w, dtype=jnp.float32), indexing="ij")
    x1 = xs.reshape(-1)
    y1 = ys.reshape(-1)
    return jnp.stack([x1, y1, x1 + 1.0, y1 + 1.0], axis=-1)   # [H*W, 4]


def dict_to_tuple(out_dict):
    if 'masks' in out_dict.keys():
        return (out_dict['boxes'], out_dict['scores'], out_dict['labels'],
                out_dict['masks'])
    return (out_dict['boxes'], out_dict['scores'], out_dict['labels'])


@jax.jit
def trace_wrapper_forward(x_nchw, wconv9, bconv, wbox_t, bbox_t, wcls_t, bcls_t,
                          anchors_t):
    """Equivalent of TraceWrapper.forward: run detector, dict_to_tuple(out[0])."""
    # TraceWrapper only returns out[0] -> compute image 0 only.
    x0_hwc = jnp.transpose(x_nchw[0], (1, 2, 0))                 # (H, W, C)
    x0_pad = jnp.pad(x0_hwc, ((1, 1), (1, 1), (0, 0)))           # (H+2, W+2, C)

    boxes_t, scores_row, labels_row = det_pallas(
        x0_pad, wconv9, bconv, wbox_t, bbox_t, wcls_t, bcls_t, anchors_t)

    # TODO(synk): torchvision returns int64 labels; int64 needs jax x64 — use int32.
    out0 = {'boxes': boxes_t.T,            # (H*W, 4)
            'scores': scores_row[0],       # (H*W,)
            'labels': labels_row[0]}       # (H*W,) int32
    return dict_to_tuple(out0)


# ----------------------------- main ------------------------------------------
if __name__ == "__main__":
    key = jax.random.PRNGKey(0)
    k_x, k_wc, k_bc, k_wh, k_bh = jax.random.split(key, 5)

    # Deterministic synthetic parameters, pre-laid-out for the kernel.
    wconv = jax.random.normal(k_wc, (3, 3, C_IN, F_MID), jnp.float32) * 0.1
    wconv9 = wconv.reshape(9, C_IN, F_MID)               # tap-major (ky,kx) x C x F
    bconv = jax.random.normal(k_bc, (1, F_MID), jnp.float32) * 0.1
    whead = jax.random.normal(k_wh, (F_MID, K_OUT), jnp.float32) * 0.1
    bhead = jax.random.normal(k_bh, (1, K_OUT), jnp.float32) * 0.1

    whead_t = whead.T                                     # (K_OUT, F_MID)
    bhead_t = bhead.reshape(K_OUT, 1)
    wbox_t, wcls_t = whead_t[:4], whead_t[4:]             # (4,F), (NC,F)
    bbox_t, bcls_t = bhead_t[:4], bhead_t[4:]             # (4,1), (NC,1)
    anchors_t = make_anchors(H, W).T                      # (4, H*W)

    # Example input, NCHW like the PyTorch module expects.
    x = jax.random.normal(k_x, (B, C_IN, H, W), jnp.float32)

    boxes, scores, labels = trace_wrapper_forward(
        x, wconv9, bconv, wbox_t, bbox_t, wcls_t, bcls_t, anchors_t)
    jax.block_until_ready((boxes, scores, labels))

    assert boxes.shape == (H * W, 4) and boxes.dtype == jnp.float32
    assert scores.shape == (H * W,) and scores.dtype == jnp.float32
    assert labels.shape == (H * W,) and labels.dtype == jnp.int32

    print("KERNEL_OK")
</pallas_src>

<mosaic_0001>
module attributes {stable_mosaic.version = 11 : i64} {
  func.func @det_kernel(%arg0: memref<18x18x4xf32, #tpu.memory_space<vmem>>, %arg1: memref<9x4x8xf32, #tpu.memory_space<vmem>>, %arg2: memref<1x8xf32, #tpu.memory_space<vmem>>, %arg3: memref<4x8xf32, #tpu.memory_space<vmem>>, %arg4: memref<4x1xf32, #tpu.memory_space<vmem>>, %arg5: memref<3x8xf32, #tpu.memory_space<vmem>>, %arg6: memref<3x1xf32, #tpu.memory_space<vmem>>, %arg7: memref<4x256xf32, #tpu.memory_space<vmem>>, %arg8: memref<4x256xf32, #tpu.memory_space<vmem>>, %arg9: memref<1x256xf32, #tpu.memory_space<vmem>>, %arg10: memref<1x256xi32, #tpu.memory_space<vmem>>) attributes {dimension_semantics = [], scalar_prefetch = 0 : i64, scratch_operands = 0 : i64, tpu.core_type = #tpu.core_type<tc>} {
    %cst = arith.constant 0.000000e+00 : f32
    %0 = vector.broadcast %cst : f32 to vector<256x8xf32>
    %c0 = arith.constant 0 : index
    %c0_0 = arith.constant 0 : index
    %c0_1 = arith.constant 0 : index
    %1 = vector.load %arg0[%c0, %c0_0, %c0_1] : memref<18x18x4xf32, #tpu.memory_space<vmem>>, vector<16x16x4xf32>
    %2 = vector.shape_cast %1 : vector<16x16x4xf32> to vector<256x4xf32>
    %c0_2 = arith.constant 0 : index
    %c0_3 = arith.constant 0 : index
    %c0_4 = arith.constant 0 : index
    %3 = vector.load %arg1[%c0_2, %c0_3, %c0_4] : memref<9x4x8xf32, #tpu.memory_space<vmem>>, vector<1x4x8xf32>
    %4 = vector.shape_cast %3 : vector<1x4x8xf32> to vector<4x8xf32>
    %cst_5 = arith.constant dense<0.000000e+00> : vector<256x8xf32>
    %5 = tpu.matmul %2, %4, %cst_5 {dimension_numbers = #tpu.dot_dimension_numbers<[1], [0], [0], [1], [0, 0, 1, 1], [], []>} : vector<256x4xf32>, vector<4x8xf32>, vector<256x8xf32> -> vector<256x8xf32>
    %6 = arith.addf %0, %5 : vector<256x8xf32>
    %c0_6 = arith.constant 0 : index
    %c1 = arith.constant 1 : index
    %c0_7 = arith.constant 0 : index
    %7 = vector.load %arg0[%c0_6, %c1, %c0_7] : memref<18x18x4xf32, #tpu.memory_space<vmem>>, vector<16x16x4xf32>
    %8 = vector.shape_cast %7 : vector<16x16x4xf32> to vector<256x4xf32>
    %c1_8 = arith.constant 1 : index
    %c0_9 = arith.constant 0 : index
    %c0_10 = arith.constant 0 : index
    %9 = vector.load %arg1[%c1_8, %c0_9, %c0_10] : memref<9x4x8xf32, #tpu.memory_space<vmem>>, vector<1x4x8xf32>
    %10 = vector.shape_cast %9 : vector<1x4x8xf32> to vector<4x8xf32>
    %cst_11 = arith.constant dense<0.000000e+00> : vector<256x8xf32>
    %11 = tpu.matmul %8, %10, %cst_11 {dimension_numbers = #tpu.dot_dimension_numbers<[1], [0], [0], [1], [0, 0, 1, 1], [], []>} : vector<256x4xf32>, vector<4x8xf32>, vector<256x8xf32> -> vector<256x8xf32>
    %12 = arith.addf %6, %11 : vector<256x8xf32>
    %c0_12 = arith.constant 0 : index
    %c2 = arith.constant 2 : index
    %c0_13 = arith.constant 0 : index
    %13 = vector.load %arg0[%c0_12, %c2, %c0_13] : memref<18x18x4xf32, #tpu.memory_space<vmem>>, vector<16x16x4xf32>
    %14 = vector.shape_cast %13 : vector<16x16x4xf32> to vector<256x4xf32>
    %c2_14 = arith.constant 2 : index
    %c0_15 = arith.constant 0 : index
    %c0_16 = arith.constant 0 : index
    %15 = vector.load %arg1[%c2_14, %c0_15, %c0_16] : memref<9x4x8xf32, #tpu.memory_space<vmem>>, vector<1x4x8xf32>
    %16 = vector.shape_cast %15 : vector<1x4x8xf32> to vector<4x8xf32>
    %cst_17 = arith.constant dense<0.000000e+00> : vector<256x8xf32>
    %17 = tpu.matmul %14, %16, %cst_17 {dimension_numbers = #tpu.dot_dimension_numbers<[1], [0], [0], [1], [0, 0, 1, 1], [], []>} : vector<256x4xf32>, vector<4x8xf32>, vector<256x8xf32> -> vector<256x8xf32>
    %18 = arith.addf %12, %17 : vector<256x8xf32>
    %c1_18 = arith.constant 1 : index
    %c0_19 = arith.constant 0 : index
    %c0_20 = arith.constant 0 : index
    %19 = vector.load %arg0[%c1_18, %c0_19, %c0_20] : memref<18x18x4xf32, #tpu.memory_space<vmem>>, vector<16x16x4xf32>
    %20 = vector.shape_cast %19 : vector<16x16x4xf32> to vector<256x4xf32>
    %c3 = arith.constant 3 : index
    %c0_21 = arith.constant 0 : index
    %c0_22 = arith.constant 0 : index
    %21 = vector.load %arg1[%c3, %c0_21, %c0_22] : memref<9x4x8xf32, #tpu.memory_space<vmem>>, vector<1x4x8xf32>
    %22 = vector.shape_cast %21 : vector<1x4x8xf32> to vector<4x8xf32>
    %cst_23 = arith.constant dense<0.000000e+00> : vector<256x8xf32>
    %23 = tpu.matmul %20, %22, %cst_23 {dimension_numbers = #tpu.dot_dimension_numbers<[1], [0], [0], [1], [0, 0, 1, 1], [], []>} : vector<256x4xf32>, vector<4x8xf32>, vector<256x8xf32> -> vector<256x8xf32>
    %24 = arith.addf %18, %23 : vector<256x8xf32>
    %c1_24 = arith.constant 1 : index
    %c1_25 = arith.constant 1 : index
    %c0_26 = arith.constant 0 : index
    %25 = vector.load %arg0[%c1_24, %c1_25, %c0_26] : memref<18x18x4xf32, #tpu.memory_space<vmem>>, vector<16x16x4xf32>
    %26 = vector.shape_cast %25 : vector<16x16x4xf32> to vector<256x4xf32>
    %c4 = arith.constant 4 : index
    %c0_27 = arith.constant 0 : index
    %c0_28 = arith.constant 0 : index
    %27 = vector.load %arg1[%c4, %c0_27, %c0_28] : memref<9x4x8xf32, #tpu.memory_space<vmem>>, vector<1x4x8xf32>
    %28 = vector.shape_cast %27 : vector<1x4x8xf32> to vector<4x8xf32>
    %cst_29 = arith.constant dense<0.000000e+00> : vector<256x8xf32>
    %29 = tpu.matmul %26, %28, %cst_29 {dimension_numbers = #tpu.dot_dimension_numbers<[1], [0], [0], [1], [0, 0, 1, 1], [], []>} : vector<256x4xf32>, vector<4x8xf32>, vector<256x8xf32> -> vector<256x8xf32>
    %30 = arith.addf %24, %29 : vector<256x8xf32>
    %c1_30 = arith.constant 1 : index
    %c2_31 = arith.constant 2 : index
    %c0_32 = arith.constant 0 : index
    %31 = vector.load %arg0[%c1_30, %c2_31, %c0_32] : memref<18x18x4xf32, #tpu.memory_space<vmem>>, vector<16x16x4xf32>
    %32 = vector.shape_cast %31 : vector<16x16x4xf32> to vector<256x4xf32>
    %c5 = arith.constant 5 : index
    %c0_33 = arith.constant 0 : index
    %c0_34 = arith.constant 0 : index
    %33 = vector.load %arg1[%c5, %c0_33, %c0_34] : memref<9x4x8xf32, #tpu.memory_space<vmem>>, vector<1x4x8xf32>
    %34 = vector.shape_cast %33 : vector<1x4x8xf32> to vector<4x8xf32>
    %cst_35 = arith.constant dense<0.000000e+00> : vector<256x8xf32>
    %35 = tpu.matmul %32, %34, %cst_35 {dimension_numbers = #tpu.dot_dimension_numbers<[1], [0], [0], [1], [0, 0, 1, 1], [], []>} : vector<256x4xf32>, vector<4x8xf32>, vector<256x8xf32> -> vector<256x8xf32>
    %36 = arith.addf %30, %35 : vector<256x8xf32>
    %c2_36 = arith.constant 2 : index
    %c0_37 = arith.constant 0 : index
    %c0_38 = arith.constant 0 : index
    %37 = vector.load %arg0[%c2_36, %c0_37, %c0_38] : memref<18x18x4xf32, #tpu.memory_space<vmem>>, vector<16x16x4xf32>
    %38 = vector.shape_cast %37 : vector<16x16x4xf32> to vector<256x4xf32>
    %c6 = arith.constant 6 : index
    %c0_39 = arith.constant 0 : index
    %c0_40 = arith.constant 0 : index
    %39 = vector.load %arg1[%c6, %c0_39, %c0_40] : memref<9x4x8xf32, #tpu.memory_space<vmem>>, vector<1x4x8xf32>
    %40 = vector.shape_cast %39 : vector<1x4x8xf32> to vector<4x8xf32>
    %cst_41 = arith.constant dense<0.000000e+00> : vector<256x8xf32>
    %41 = tpu.matmul %38, %40, %cst_41 {dimension_numbers = #tpu.dot_dimension_numbers<[1], [0], [0], [1], [0, 0, 1, 1], [], []>} : vector<256x4xf32>, vector<4x8xf32>, vector<256x8xf32> -> vector<256x8xf32>
    %42 = arith.addf %36, %41 : vector<256x8xf32>
    %c2_42 = arith.constant 2 : index
    %c1_43 = arith.constant 1 : index
    %c0_44 = arith.constant 0 : index
    %43 = vector.load %arg0[%c2_42, %c1_43, %c0_44] : memref<18x18x4xf32, #tpu.memory_space<vmem>>, vector<16x16x4xf32>
    %44 = vector.shape_cast %43 : vector<16x16x4xf32> to vector<256x4xf32>
    %c7 = arith.constant 7 : index
    %c0_45 = arith.constant 0 : index
    %c0_46 = arith.constant 0 : index
    %45 = vector.load %arg1[%c7, %c0_45, %c0_46] : memref<9x4x8xf32, #tpu.memory_space<vmem>>, vector<1x4x8xf32>
    %46 = vector.shape_cast %45 : vector<1x4x8xf32> to vector<4x8xf32>
    %cst_47 = arith.constant dense<0.000000e+00> : vector<256x8xf32>
    %47 = tpu.matmul %44, %46, %cst_47 {dimension_numbers = #tpu.dot_dimension_numbers<[1], [0], [0], [1], [0, 0, 1, 1], [], []>} : vector<256x4xf32>, vector<4x8xf32>, vector<256x8xf32> -> vector<256x8xf32>
    %48 = arith.addf %42, %47 : vector<256x8xf32>
    %c2_48 = arith.constant 2 : index
    %c2_49 = arith.constant 2 : index
    %c0_50 = arith.constant 0 : index
    %49 = vector.load %arg0[%c2_48, %c2_49, %c0_50] : memref<18x18x4xf32, #tpu.memory_space<vmem>>, vector<16x16x4xf32>
    %50 = vector.shape_cast %49 : vector<16x16x4xf32> to vector<256x4xf32>
    %c8 = arith.constant 8 : index
    %c0_51 = arith.constant 0 : index
    %c0_52 = arith.constant 0 : index
    %51 = vector.load %arg1[%c8, %c0_51, %c0_52] : memref<9x4x8xf32, #tpu.memory_space<vmem>>, vector<1x4x8xf32>
    %52 = vector.shape_cast %51 : vector<1x4x8xf32> to vector<4x8xf32>
    %cst_53 = arith.constant dense<0.000000e+00> : vector<256x8xf32>
    %53 = tpu.matmul %50, %52, %cst_53 {dimension_numbers = #tpu.dot_dimension_numbers<[1], [0], [0], [1], [0, 0, 1, 1], [], []>} : vector<256x4xf32>, vector<4x8xf32>, vector<256x8xf32> -> vector<256x8xf32>
    %54 = arith.addf %48, %53 : vector<256x8xf32>
    %c0_54 = arith.constant 0 : index
    %c0_55 = arith.constant 0 : index
    %55 = vector.load %arg2[%c0_54, %c0_55] : memref<1x8xf32, #tpu.memory_space<vmem>>, vector<1x8xf32>
    %56 = vector.broadcast %55 : vector<1x8xf32> to vector<256x8xf32>
    %57 = arith.addf %54, %56 : vector<256x8xf32>
    %cst_56 = arith.constant 0.000000e+00 : f32
    %58 = vector.broadcast %cst_56 : f32 to vector<256x8xf32>
    %59 = arith.maximumf %57, %58 : vector<256x8xf32>
    %60 = tpu.transpose %59, [1, 0] : vector<256x8xf32> -> vector<8x256xf32>
    %c0_57 = arith.constant 0 : index
    %c0_58 = arith.constant 0 : index
    %61 = vector.load %arg3[%c0_57, %c0_58] : memref<4x8xf32, #tpu.memory_space<vmem>>, vector<4x8xf32>
    %cst_59 = arith.constant dense<0.000000e+00> : vector<4x256xf32>
    %62 = tpu.matmul %61, %60, %cst_59 {dimension_numbers = #tpu.dot_dimension_numbers<[1], [0], [0], [1], [0, 0, 1, 1], [], []>} : vector<4x8xf32>, vector<8x256xf32>, vector<4x256xf32> -> vector<4x256xf32>
    %c0_60 = arith.constant 0 : index
    %c0_61 = arith.constant 0 : index
    %63 = vector.load %arg4[%c0_60, %c0_61] : memref<4x1xf32, #tpu.memory_space<vmem>>, vector<4x1xf32>
    %64 = vector.broadcast %63 : vector<4x1xf32> to vector<4x256xf32>
    %65 = arith.addf %62, %64 : vector<4x256xf32>
    %c0_62 = arith.constant 0 : index
    %c0_63 = arith.constant 0 : index
    %66 = vector.load %arg5[%c0_62, %c0_63] : memref<3x8xf32, #tpu.memory_space<vmem>>, vector<3x8xf32>
    %cst_64 = arith.constant dense<0.000000e+00> : vector<3x256xf32>
    %67 = tpu.matmul %66, %60, %cst_64 {dimension_numbers = #tpu.dot_dimension_numbers<[1], [0], [0], [1], [0, 0, 1, 1], [], []>} : vector<3x8xf32>, vector<8x256xf32>, vector<3x256xf32> -> vector<3x256xf32>
    %c0_65 = arith.constant 0 : index
    %c0_66 = arith.constant 0 : index
    %68 = vector.load %arg6[%c0_65, %c0_66] : memref<3x1xf32, #tpu.memory_space<vmem>>, vector<3x1xf32>
    %69 = vector.broadcast %68 : vector<3x1xf32> to vector<3x256xf32>
    %70 = arith.addf %67, %69 : vector<3x256xf32>
    %c0_67 = arith.constant 0 : index
    %c0_68 = arith.constant 0 : index
    %71 = vector.load %arg7[%c0_67, %c0_68] : memref<4x256xf32, #tpu.memory_space<vmem>>, vector<4x256xf32>
    %72 = arith.addf %71, %65 : vector<4x256xf32>
    %c0_69 = arith.constant 0 : index
    %c0_70 = arith.constant 0 : index
    %73 = vector.load %arg8[%c0_69, %c0_70] : memref<4x256xf32, #tpu.memory_space<vmem>>, vector<4x256xf32>
    tpu.vector_store %arg8[%c0_69, %c0_70], %72 {strides = array<i32>} : memref<4x256xf32, #tpu.memory_space<vmem>>, vector<4x256xf32>,
    %cst_71 = arith.constant dense<0xFF800000> : vector<256xf32>
    %74 = vector.multi_reduction <maximumf>, %70, %cst_71 [0] : vector<3x256xf32> to vector<256xf32>
    %75 = vector.shape_cast %74 : vector<256xf32> to vector<1x256xf32>
    %76 = vector.broadcast %75 : vector<1x256xf32> to vector<3x256xf32>
    %77 = arith.subf %70, %76 : vector<3x256xf32>
    %78 = math.exp %77 : vector<3x256xf32>
    %cst_72 = arith.constant dense<0.000000e+00> : vector<256xf32>
    %79 = vector.multi_reduction <add>, %78, %cst_72 [0] : vector<3x256xf32> to vector<256xf32>
    %80 = vector.shape_cast %79 : vector<256xf32> to vector<1x256xf32>
    %81 = tpu.reciprocal %80 {approx = true} : vector<1x256xf32> -> vector<1x256xf32>
    %c0_73 = arith.constant 0 : index
    %c0_74 = arith.constant 0 : index
    %82 = vector.load %arg9[%c0_73, %c0_74] : memref<1x256xf32, #tpu.memory_space<vmem>>, vector<1x256xf32>
    tpu.vector_store %arg9[%c0_73, %c0_74], %81 {strides = array<i32>} : memref<1x256xf32, #tpu.memory_space<vmem>>, vector<1x256xf32>,
    %83 = tpu.iota {dimensions = array<i32: 0>} : vector<3x256xi32>
    %84 = vector.broadcast %75 : vector<1x256xf32> to vector<3x256xf32>
    %85 = arith.cmpf oge, %70, %84 : vector<3x256xf32>
    %c3_i32 = arith.constant 3 : i32
    %86 = vector.broadcast %c3_i32 : i32 to vector<3x256xi32>
    %87 = arith.select %85, %83, %86 : vector<3x256xi1>, vector<3x256xi32>
    %cst_75 = arith.constant dense<2147483647> : vector<256xi32>
    %88 = vector.multi_reduction <minsi>, %87, %cst_75 [0] : vector<3x256xi32> to vector<256xi32>
    %89 = vector.shape_cast %88 : vector<256xi32> to vector<1x256xi32>
    %c0_76 = arith.constant 0 : index
    %c0_77 = arith.constant 0 : index
    %90 = vector.load %arg10[%c0_76, %c0_77] : memref<1x256xi32, #tpu.memory_space<vmem>>, vector<1x256xi32>
    tpu.vector_store %arg10[%c0_76, %c0_77], %89 {strides = array<i32>} : memref<1x256xi32, #tpu.memory_space<vmem>>, vector<1x256xi32>,
    return
  }
}

</mosaic_0001>

<llo_original>
// kernel: trace_wrapper_forward.1
$region0: #{trace_wrapper_forward.1}
  #allocation0 [shape = 'u32[]', space=smem, size = 0x4, offset = 0x4, fixed_abs, tag = 'smem constant byte address 0x4 - core index']
  #allocation1 [shape = 'u32[144,128]{1,0:T(1,128)}', space=vmem, size = 0x12000, scoped, tag = 'internal scratch']
  %s0 = inlined_call_operand.vmem [shape: f32[18,18,4], index: 0, kind: input, shape index: {}]
  %s1 = inlined_call_operand.vmem [shape: f32[9,4,8], index: 1, kind: input, shape index: {}]
  %s2 = inlined_call_operand.vmem [shape: f32[1,8], index: 2, kind: input, shape index: {}]
  %s3 = inlined_call_operand.vmem [shape: f32[4,8], index: 3, kind: input, shape index: {}]
  %s4 = inlined_call_operand.vmem [shape: f32[4,1], index: 4, kind: input, shape index: {}]
  %s5 = inlined_call_operand.vmem [shape: f32[3,8], index: 5, kind: input, shape index: {}]
  %s6 = inlined_call_operand.vmem [shape: f32[3,1], index: 6, kind: input, shape index: {}]
  %s7 = inlined_call_operand.vmem [shape: f32[4,256], index: 7, kind: input, shape index: {}]
  %s8 = inlined_call_operand.hbm [shape: f32[4,256], index: 8, kind: output, shape index: {0}]
  %s9 = inlined_call_operand.hbm [shape: f32[1,256], index: 9, kind: output, shape index: {1}]
  %s10 = inlined_call_operand.hbm [shape: s32[1,256], index: 10, kind: output, shape index: {2}]
  %11 = xla_tuple %s8, %s9, %s10
  %s12 = sld [smem:[#allocation0]]
  $region58: #{trace_wrapper_forward.1} parent=0
    _
  %s14 = ssub.s32 1, %s12
  %s15 = scalar_select 0, %s14, %s12
  $region1: #{trace_wrapper_forward.1} parent=0
    #allocation2 [shape = 'u8[4096]{0}', space=vmem, size = 0x1000, scoped, tag = 'output window, operand 0, single buffered']
    #allocation3 [shape = 's32[1]{0}', space=sflag, size = 0x4, scoped, tag = 'scoped memory for trace_wrapper_forward.1']
    #allocation4 [shape = 'u8[1024]{0}', space=vmem, size = 0x400, scoped, tag = 'output window, operand 1, single buffered']
    #allocation5 [shape = 's32[1]{0}', space=sflag, size = 0x4, scoped, tag = 'scoped memory for trace_wrapper_forward.1']
    #allocation6 [shape = 'u8[1024]{0}', space=vmem, size = 0x400, scoped, tag = 'output window, operand 2, single buffered']
    %16 = vsyncpa [#allocation3], 0
    %17 = vsyncpa [#allocation5], 0
    // Predicated region
    $region2: #{trace_wrapper_forward.1} parent=1 // pred_check
      _
    $region3: #{trace_wrapper_forward.1} parent=1 // pred_check_branch
      %19 = sbr.rel (0) target = $region5
    $region4: #{trace_wrapper_forward.1} parent=1 // pred_region
      _
    $region5: #{trace_wrapper_forward.1} parent=1 // pred_fallthru
      _
    // Predicated region
    $region6: #{trace_wrapper_forward.1} parent=1 // pred_check
      _
    $region7: #{trace_wrapper_forward.1} parent=1 // pred_check_branch
      %21 = sbr.rel (0) target = $region9
    $region8: #{trace_wrapper_forward.1} parent=1 // pred_region
      _
    $region9: #{trace_wrapper_forward.1} parent=1 // pred_fallthru
      _
    // Predicated region
    $region10: #{trace_wrapper_forward.1} parent=1 // pred_check
      _
    $region11: #{trace_wrapper_forward.1} parent=1 // pred_check_branch
      %23 = sbr.rel (0) target = $region13
    $region12: #{trace_wrapper_forward.1} parent=1 // pred_region
      _
    $region13: #{trace_wrapper_forward.1} parent=1 // pred_fallthru
      _
    // Predicated region
    $region14: #{trace_wrapper_forward.1} parent=1 // pred_check
      _
    $region15: #{trace_wrapper_forward.1} parent=1 // pred_check_branch
      %25 = sbr.rel (0) target = $region17
    $region16: #{trace_wrapper_forward.1} parent=1 // pred_region
      _
    $region17: #{trace_wrapper_forward.1} parent=1 // pred_fallthru
      _
    // Predicated region
    $region18: #{trace_wrapper_forward.1} parent=1 // pred_check
      _
    $region19: #{trace_wrapper_forward.1} parent=1 // pred_check_branch
      %27 = sbr.rel (0) target = $region21
    $region20: #{trace_wrapper_forward.1} parent=1 // pred_region
      _
    $region21: #{trace_wrapper_forward.1} parent=1 // pred_fallthru
      _
    // Predicated region
    $region22: #{trace_wrapper_forward.1} parent=1 // pred_check
      _
    $region23: #{trace_wrapper_forward.1} parent=1 // pred_check_branch
      %29 = sbr.rel (0) target = $region25
    $region24: #{trace_wrapper_forward.1} parent=1 // pred_region
      _
    $region25: #{trace_wrapper_forward.1} parent=1 // pred_fallthru
      _
    // Predicated region
    $region26: #{trace_wrapper_forward.1} parent=1 // pred_check
      _
    $region27: #{trace_wrapper_forward.1} parent=1 // pred_check_branch
      %31 = sbr.rel (0) target = $region29
    $region28: #{trace_wrapper_forward.1} parent=1 // pred_region
      _
    $region29: #{trace_wrapper_forward.1} parent=1 // pred_fallthru
      _
    // Predicated region
    $region30: #{trace_wrapper_forward.1} parent=1 // pred_check
      _
    $region31: #{trace_wrapper_forward.1} parent=1 // pred_check_branch
      %33 = sbr.rel (0) target = $region33
    $region32: #{trace_wrapper_forward.1} parent=1 // pred_region
      _
    $region33: #{trace_wrapper_forward.1} parent=1 // pred_fallthru
      _
    %v34 = vld [vmem:[%s0] sm:$0xff]
    %v35 = vld [vmem:[%s0 + $0x8] sm:$0xff]
    %v36 = vld [vmem:[%s0 + $0x18] sm:$0xff]
    %v37 = vld [vmem:[%s0 + $0x20] sm:$0xff]
    %v38 = vld [vmem:[%s0 + $0x30] sm:$0xff]
    %v39 = vld [vmem:[%s0 + $0x38] sm:$0xff]
    %v40 = vld [vmem:[%s0 + $0x48] sm:$0xff]
    %v41 = vld [vmem:[%s0 + $0x50] sm:$0xff]
    %v42 = vld [vmem:[%s0 + $0x60] sm:$0xff]
    %v43 = vld [vmem:[%s0 + $0x68] sm:$0xff]
    %v44 = vld [vmem:[%s0 + $0x78] sm:$0xff]
    %v45 = vld [vmem:[%s0 + $0x80] sm:$0xff]
    %v46 = vld [vmem:[%s0 + $0x90] sm:$0xff]
    %v47 = vld [vmem:[%s0 + $0x98] sm:$0xff]
    %v48 = vld [vmem:[%s0 + $0xa8] sm:$0xff]
    %v49 = vld [vmem:[%s0 + $0xb0] sm:$0xff]
    %v50 = vld [vmem:[%s0 + $0xc0] sm:$0xff]
    %v51 = vld [vmem:[%s0 + $0xc8] sm:$0xff]
    %v52 = vld [vmem:[%s0 + $0xd8] sm:$0xff]
    %v53 = vld [vmem:[%s0 + $0xe0] sm:$0xff]
    %v54 = vld [vmem:[%s0 + $0xf0] sm:$0xff]
    %v55 = vld [vmem:[%s0 + $0xf8] sm:$0xff]
    %v56 = vld [vmem:[%s0 + $0x108] sm:$0xff]
    %v57 = vld [vmem:[%s0 + $0x110] sm:$0xff]
    %v58 = vld [vmem:[%s0 + $0x120] sm:$0xff]
    %v59 = vld [vmem:[%s0 + $0x128] sm:$0xff]
    %v60 = vld [vmem:[%s0 + $0x138] sm:$0xff]
    %v61 = vld [vmem:[%s0 + $0x140] sm:$0xff]
    %v62 = vld [vmem:[%s0 + $0x150] sm:$0xff]
    %v63 = vld [vmem:[%s0 + $0x158] sm:$0xff]
    %v64 = vld [vmem:[%s0 + $0x168] sm:$0xff]
    %v65 = vld [vmem:[%s0 + $0x170] sm:$0xff]
    %v66 = vld [vmem:[%s1] sm:$0xf]
    %v67 = vld [vmem:[%s0 + $0x1] sm:$0xff]
    %v68 = vld [vmem:[%s0 + $0x9] sm:$0xff]
    %v69 = vld [vmem:[%s0 + $0x19] sm:$0xff]
    %v70 = vld [vmem:[%s0 + $0x21] sm:$0xff]
    %v71 = vld [vmem:[%s0 + $0x31] sm:$0xff]
    %v72 = vld [vmem:[%s0 + $0x39] sm:$0xff]
    %v73 = vld [vmem:[%s0 + $0x49] sm:$0xff]
    %v74 = vld [vmem:[%s0 + $0x51] sm:$0xff]
    %v75 = vld [vmem:[%s0 + $0x61] sm:$0xff]
    %v76 = vld [vmem:[%s0 + $0x69] sm:$0xff]
    %v77 = vld [vmem:[%s0 + $0x79] sm:$0xff]
    %v78 = vld [vmem:[%s0 + $0x81] sm:$0xff]
    %v79 = vld [vmem:[%s0 + $0x91] sm:$0xff]
    %v80 = vld [vmem:[%s0 + $0x99] sm:$0xff]
    %v81 = vld [vmem:[%s0 + $0xa9] sm:$0xff]
    %v82 = vld [vmem:[%s0 + $0xb1] sm:$0xff]
    %v83 = vld [vmem:[%s0 + $0xc1] sm:$0xff]
    %v84 = vld [vmem:[%s0 + $0xc9] sm:$0xff]
    %v85 = vld [vmem:[%s0 + $0xd9] sm:$0xff]
    %v86 = vld [vmem:[%s0 + $0xe1] sm:$0xff]
    %v87 = vld [vmem:[%s0 + $0xf1] sm:$0xff]
    %v88 = vld [vmem:[%s0 + $0xf9] sm:$0xff]
    %v89 = vld [vmem:[%s0 + $0x109] sm:$0xff]
    %v90 = vld [vmem:[%s0 + $0x111] sm:$0xff]
    %v91 = vld [vmem:[%s0 + $0x121] sm:$0xff]
    %v92 = vld [vmem:[%s0 + $0x129] sm:$0xff]
    %v93 = vld [vmem:[%s0 + $0x139] sm:$0xff]
    %v94 = vld [vmem:[%s0 + $0x141] sm:$0xff]
    %v95 = vld [vmem:[%s0 + $0x151] sm:$0xff]
    %v96 = vld [vmem:[%s0 + $0x159] sm:$0xff]
    %v97 = vld [vmem:[%s0 + $0x169] sm:$0xff]
    %v98 = vld [vmem:[%s0 + $0x171] sm:$0xff]
    %s99 = scalar_lea.vmem %s1, 4
    %v100 = vld [vmem:[%s99] sm:$0xf]
    %vm101 = vcmask 31744
    %v103 = vsel %vm101, %v67, 0
    %v106 = vsel %vm101, %v68, 0
    %v109 = vsel %vm101, %v69, 0
    %v112 = vsel %vm101, %v70, 0
    %v115 = vsel %vm101, %v71, 0
    %v118 = vsel %vm101, %v72, 0
    %v121 = vsel %vm101, %v73, 0
    %v124 = vsel %vm101, %v74, 0
    %v127 = vsel %vm101, %v75, 0
    %v130 = vsel %vm101, %v76, 0
    %v133 = vsel %vm101, %v77, 0
    %v136 = vsel %vm101, %v78, 0
    %v139 = vsel %vm101, %v79, 0
    %v142 = vsel %vm101, %v80, 0
    %v145 = vsel %vm101, %v81, 0
    %v148 = vsel %vm101, %v82, 0
    %v151 = vsel %vm101, %v83, 0
    %v154 = vsel %vm101, %v84, 0
    %v157 = vsel %vm101, %v85, 0
    %v160 = vsel %vm101, %v86, 0
    %v163 = vsel %vm101, %v87, 0
    %v166 = vsel %vm101, %v88, 0
    %v169 = vsel %vm101, %v89, 0
    %v172 = vsel %vm101, %v90, 0
    %v175 = vsel %vm101, %v91, 0
    %v178 = vsel %vm101, %v92, 0
    %v181 = vsel %vm101, %v93, 0
    %v184 = vsel %vm101, %v94, 0
    %v187 = vsel %vm101, %v95, 0
    %v190 = vsel %vm101, %v96, 0
    %v193 = vsel %vm101, %v97, 0
    %v196 = vsel %vm101, %v98, 0
    %vm198 = vcmask 1043456
    %v200 = vsel %vm198, %v100, 0
    %202 = vmatprep.subr.mxu0 0.0
    %203 = vmatpush1.msra.mxu0 %v200
    %204 = vmatprep.subr.mxu0 0.0
    %205 = vmatpush1.msra.mxu0 0.0
    %206 = vmatprep.subr.mxu0 0.0
    %207 = vmatpush1.msra.mxu0 0.0
    %208 = vmatprep.subr.mxu0 0.0
    %209 = vmatpush1.msra.mxu0 0.0
    %210 = vmatprep.subr.mxu0 0.0
    %211 = vmatpush1.msra.mxu0 0.0
    %212 = vmatprep.subr.mxu0 0.0
    %213 = vmatpush1.msra.mxu0 0.0
    %214 = vmatprep.subr.mxu0 0.0
    %215 = vmatpush1.msra.mxu0 0.0
    %216 = vmatprep.subr.mxu0 0.0
    %217 = vmatpush1.msra.mxu0 0.0
    %218 = vmatprep.subr.mxu0 0.0
    %219 = vmatpush1.msra.mxu0 0.0
    %220 = vmatprep.subr.mxu0 0.0
    %221 = vmatpush1.msra.mxu0 0.0
    %222 = vmatprep.subr.mxu0 0.0
    %223 = vmatpush1.msra.mxu0 0.0
    %224 = vmatprep.subr.mxu0 0.0
    %225 = vmatpush1.msra.mxu0 0.0
    %226 = vmatprep.subr.mxu0 0.0
    %227 = vmatpush1.msra.mxu0 0.0
    %228 = vmatprep.subr.mxu0 0.0
    %229 = vmatpush1.msra.mxu0 0.0
    %230 = vmatprep.subr.mxu0 0.0
    %231 = vmatpush1.msra.mxu0 0.0
    %232 = vmatprep.subr.mxu0 0.0
    %233 = vmatpush1.msra.mxu0 0.0
    %234 = vmatprep.subr.mxu0 0.0
    %235 = vmatpush1.msra.mxu0 0.0
    %236 = vmatprep.subr.mxu0 0.0
    %237 = vmatpush1.msra.mxu0 0.0
    %238 = vmatprep.subr.mxu0 0.0
    %239 = vmatpush1.msra.mxu0 0.0
    %240 = vmatprep.subr.mxu0 0.0
    %241 = vmatpush1.msra.mxu0 0.0
    %242 = vmatprep.subr.mxu0 0.0
    %243 = vmatpush1.msra.mxu0 0.0
    %244 = vmatprep.subr.mxu0 0.0
    %245 = vmatpush1.msra.mxu0 0.0
    %246 = vmatprep.subr.mxu0 0.0
    %247 = vmatpush1.msra.mxu0 0.0
    %248 = vmatprep.subr.mxu0 0.0
    %249 = vmatpush1.msra.mxu0 0.0
    %250 = vmatprep.subr.mxu0 0.0
    %251 = vmatpush1.msra.mxu0 0.0
    %252 = vmatprep.subr.mxu0 0.0
    %253 = vmatpush1.msra.mxu0 0.0
    %254 = vmatprep.subr.mxu0 0.0
    %255 = vmatpush1.msra.mxu0 0.0
    %256 = vmatprep.subr.mxu0 0.0
    %257 = vmatpush1.msra.mxu0 0.0
    %258 = vmatprep.subr.mxu0 0.0
    %259 = vmatpush1.msra.mxu0 0.0
    %260 = vmatprep.subr.mxu0 0.0
    %261 = vmatpush1.msra.mxu0 0.0
    %262 = vmatprep.subr.mxu0 0.0
    %263 = vmatpush1.msra.mxu0 0.0
    %264 = vmatprep.subr.mxu0 0.0
    %265 = vmatpush1.msra.mxu0 0.0
    %266 = vmatprep.mubr.f32.mxu0 0.0
    %267 = vmatmul.mubr.f32.gmra.mrb[0].mxu0 %v103
    %v268 = vpop.f32.mrb[0].mxu0
    %v269 = vadd.f32 0.0, %v268
    %v270 = vpop.f32.mrb[0].mxu0
    %271 = vmatprep.mubr.f32.mxu0 0.0
    %272 = vmatmul.mubr.f32.gmra.mrb[0].mxu0 %v106
    %v273 = vpop.f32.mrb[0].mxu0
    %v274 = vadd.f32 0.0, %v273
    %v275 = vpop.f32.mrb[0].mxu0
    %276 = vmatprep.mubr.f32.mxu0 0.0
    %277 = vmatmul.mubr.f32.gmra.mrb[0].mxu0 %v109
    %v278 = vpop.f32.mrb[0].mxu0
    %v279 = vadd.f32 0.0, %v278
    %v280 = vpop.f32.mrb[0].mxu0
    %281 = vmatprep.mubr.f32.mxu0 0.0
    %282 = vmatmul.mubr.f32.gmra.mrb[0].mxu0 %v112
    %v283 = vpop.f32.mrb[0].mxu0
    %v284 = vadd.f32 0.0, %v283
    %v285 = vpop.f32.mrb[0].mxu0
    %286 = vmatprep.mubr.f32.mxu0 0.0
    %287 = vmatmul.mubr.f32.gmra.mrb[0].mxu0 %v115
    %v288 = vpop.f32.mrb[0].mxu0
    %v289 = vadd.f32 0.0, %v288
    %v290 = vpop.f32.mrb[0].mxu0
    %291 = vmatprep.mubr.f32.mxu0 0.0
    %292 = vmatmul.mubr.f32.gmra.mrb[0].mxu0 %v118
    %v293 = vpop.f32.mrb[0].mxu0
    %v294 = vadd.f32 0.0, %v293
    %v295 = vpop.f32.mrb[0].mxu0
    %296 = vmatprep.mubr.f32.mxu0 0.0
    %297 = vmatmul.mubr.f32.gmra.mrb[0].mxu0 %v121
    %v298 = vpop.f32.mrb[0].mxu0
    %v299 = vadd.f32 0.0, %v298
    %v300 = vpop.f32.mrb[0].mxu0
    %301 = vmatprep.mubr.f32.mxu0 0.0
    %302 = vmatmul.mubr.f32.gmra.mrb[0].mxu0 %v124
    %v303 = vpop.f32.mrb[0].mxu0
    %v304 = vadd.f32 0.0, %v303
    %v305 = vpop.f32.mrb[0].mxu0
    %306 = vmatprep.mubr.f32.mxu0 0.0
    %307 = vmatmul.mubr.f32.gmra.mrb[0].mxu0 %v127
    %v308 = vpop.f32.mrb[0].mxu0
    %v309 = vadd.f32 0.0, %v308
    %v310 = vpop.f32.mrb[0].mxu0
    %311 = vmatprep.mubr.f32.mxu0 0.0
    %312 = vmatmul.mubr.f32.gmra.mrb[0].mxu0 %v130
    %v313 = vpop.f32.mrb[0].mxu0
    %v314 = vadd.f32 0.0, %v313
    %v315 = vpop.f32.mrb[0].mxu0
    %316 = vmatprep.mubr.f32.mxu0 0.0
    %317 = vmatmul.mubr.f32.gmra.mrb[0].mxu0 %v133
    %v318 = vpop.f32.mrb[0].mxu0
    %v319 = vadd.f32 0.0, %v318
    %v320 = vpop.f32.mrb[0].mxu0
    %321 = vmatprep.mubr.f32.mxu0 0.0
    %322 = vmatmul.mubr.f32.gmra.mrb[0].mxu0 %v136
    %v323 = vpop.f32.mrb[0].mxu0
    %v324 = vadd.f32 0.0, %v323
    %v325 = vpop.f32.mrb[0].mxu0
    %326 = vmatprep.mubr.f32.mxu0 0.0
    %327 = vmatmul.mubr.f32.gmra.mrb[0].mxu0 %v139
    %v328 = vpop.f32.mrb[0].mxu0
    %v329 = vadd.f32 0.0, %v328
    %v330 = vpop.f32.mrb[0].mxu0
    %331 = vmatprep.mubr.f32.mxu0 0.0
    %332 = vmatmul.mubr.f32.gmra.mrb[0].mxu0 %v142
    %v333 = vpop.f32.mrb[0].mxu0
    %v334 = vadd.f32 0.0, %v333
    %v335 = vpop.f32.mrb[0].mxu0
    %336 = vmatprep.mubr.f32.mxu0 0.0
    %337 = vmatmul.mubr.f32.gmra.mrb[0].mxu0 %v145
    %v338 = vpop.f32.mrb[0].mxu0
    %v339 = vadd.f32 0.0, %v338
    %v340 = vpop.f32.mrb[0].mxu0
    %341 = vmatprep.mubr.f32.mxu0 0.0
    %342 = vmatmul.mubr.f32.gmra.mrb[0].mxu0 %v148
    %v343 = vpop.f32.mrb[0].mxu0
    %v344 = vadd.f32 0.0, %v343
    %v345 = vpop.f32.mrb[0].mxu0
    %346 = vmatprep.mubr.f32.mxu0 0.0
    %347 = vmatmul.mubr.f32.gmra.mrb[0].mxu0 %v151
    %v348 = vpop.f32.mrb[0].mxu0
    %v349 = vadd.f32 0.0, %v348
    %v350 = vpop.f32.mrb[0].mxu0
    %351 = vmatprep.mubr.f32.mxu0 0.0
    %352 = vmatmul.mubr.f32.gmra.mrb[0].mxu0 %v154
    %v353 = vpop.f32.mrb[0].mxu0
    %v354 = vadd.f32 0.0, %v353
    %v355 = vpop.f32.mrb[0].mxu0
    %356 = vmatprep.mubr.f32.mxu0 0.0
    %357 = vmatmul.mubr.f32.gmra.mrb[0].mxu0 %v157
    %v358 = vpop.f32.mrb[0].mxu0
    %v359 = vadd.f32 0.0, %v358
    %v360 = vpop.f32.mrb[0].mxu0
    %361 = vmatprep.mubr.f32.mxu0 0.0
    %362 = vmatmul.mubr.f32.gmra.mrb[0].mxu0 %v160
    %v363 = vpop.f32.mrb[0].mxu0
    %v364 = vadd.f32 0.0, %v363
    %v365 = vpop.f32.mrb[0].mxu0
    %366 = vmatprep.mubr.f32.mxu0 0.0
    %367 = vmatmul.mubr.f32.gmra.mrb[0].mxu0 %v163
    %v368 = vpop.f32.mrb[0].mxu0
    %v369 = vadd.f32 0.0, %v368
    %v370 = vpop.f32.mrb[0].mxu0
    %371 = vmatprep.mubr.f32.mxu0 0.0
    %372 = vmatmul.mubr.f32.gmra.mrb[0].mxu0 %v166
    %v373 = vpop.f32.mrb[0].mxu0
    %v374 = vadd.f32 0.0, %v373
    %v375 = vpop.f32.mrb[0].mxu0
    %376 = vmatprep.mubr.f32.mxu0 0.0
    %377 = vmatmul.mubr.f32.gmra.mrb[0].mxu0 %v169
    %v378 = vpop.f32.mrb[0].mxu0
    %v379 = vadd.f32 0.0, %v378
    %v380 = vpop.f32.mrb[0].mxu0
    %381 = vmatprep.mubr.f32.mxu0 0.0
    %382 = vmatmul.mubr.f32.gmra.mrb[0].mxu0 %v172
    %v383 = vpop.f32.mrb[0].mxu0
    %v384 = vadd.f32 0.0, %v383
    %v385 = vpop.f32.mrb[0].mxu0
    %386 = vmatprep.mubr.f32.mxu0 0.0
    %387 = vmatmul.mubr.f32.gmra.mrb[0].mxu0 %v175
    %v388 = vpop.f32.mrb[0].mxu0
    %v389 = vadd.f32 0.0, %v388
    %v390 = vpop.f32.mrb[0].mxu0
    %391 = vmatprep.mubr.f32.mxu0 0.0
    %392 = vmatmul.mubr.f32.gmra.mrb[0].mxu0 %v178
    %v393 = vpop.f32.mrb[0].mxu0
    %v394 = vadd.f32 0.0, %v393
    %v395 = vpop.f32.mrb[0].mxu0
    %396 = vmatprep.mubr.f32.mxu0 0.0
    %397 = vmatmul.mubr.f32.gmra.mrb[0].mxu0 %v181
    %v398 = vpop.f32.mrb[0].mxu0
    %v399 = vadd.f32 0.0, %v398
    %v400 = vpop.f32.mrb[0].mxu0
    %401 = vmatprep.mubr.f32.mxu0 0.0
    %402 = vmatmul.mubr.f32.gmra.mrb[0].mxu0 %v184
    %v403 = vpop.f32.mrb[0].mxu0
    %v404 = vadd.f32 0.0, %v403
    %v405 = vpop.f32.mrb[0].mxu0
    %406 = vmatprep.mubr.f32.mxu0 0.0
    %407 = vmatmul.mubr.f32.gmra.mrb[0].mxu0 %v187
    %v408 = vpop.f32.mrb[0].mxu0
    %v409 = vadd.f32 0.0, %v408
    %v410 = vpop.f32.mrb[0].mxu0
    %411 = vmatprep.mubr.f32.mxu0 0.0
    %412 = vmatmul.mubr.f32.gmra.mrb[0].mxu0 %v190
    %v413 = vpop.f32.mrb[0].mxu0
    %v414 = vadd.f32 0.0, %v413
    %v415 = vpop.f32.mrb[0].mxu0
    %416 = vmatprep.mubr.f32.mxu0 0.0
    %417 = vmatmul.mubr.f32.gmra.mrb[0].mxu0 %v193
    %v418 = vpop.f32.mrb[0].mxu0
    %v419 = vadd.f32 0.0, %v418
    %v420 = vpop.f32.mrb[0].mxu0
    %421 = vmatprep.mubr.f32.mxu0 0.0
    %422 = vmatmul.mubr.f32.gmra.mrb[0].mxu0 %v196
    %v423 = vpop.f32.mrb[0].mxu0
    %v424 = vadd.f32 0.0, %v423
    %v425 = vpop.f32.mrb[0].mxu0
    %426 = vdwg.mxu0
    %v428 = vsel %vm101, %v34, 0
    %v431 = vsel %vm101, %v35, 0
    %v434 = vsel %vm101, %v36, 0
    %v437 = vsel %vm101, %v37, 0
    %v440 = vsel %vm101, %v38, 0
    %v443 = vsel %vm101, %v39, 0
    %v446 = vsel %vm101, %v40, 0
    %v449 = vsel %vm101, %v41, 0
    %v452 = vsel %vm101, %v42, 0
    %v455 = vsel %vm101, %v43, 0
    %v458 = vsel %vm101, %v44, 0
    %v461 = vsel %vm101, %v45, 0
    %v464 = vsel %vm101, %v46, 0
    %v467 = vsel %vm101, %v47, 0
    %v470 = vsel %vm101, %v48, 0
    %v473 = vsel %vm101, %v49, 0
    %v476 = vsel %vm101, %v50, 0
    %v479 = vsel %vm101, %v51, 0
    %v482 = vsel %vm101, %v52, 0
    %v485 = vsel %vm101, %v53, 0
    %v488 = vsel %vm101, %v54, 0
    %v491 = vsel %vm101, %v55, 0
    %v494 = vsel %vm101, %v56, 0
    %v497 = vsel %vm101, %v57, 0
    %v500 = vsel %vm101, %v58, 0
    %v503 = vsel %vm101, %v59, 0
    %v506 = vsel %vm101, %v60, 0
    %v509 = vsel %vm101, %v61, 0
    %v512 = vsel %vm101, %v62, 0
    %v515 = vsel %vm101, %v63, 0
    %v518 = vsel %vm101, %v64, 0
    %v521 = vsel %vm101, %v65, 0
    %v524 = vsel %vm198, %v66, 0
    %526 = vmatprep.subr.mxu0 0.0
    %527 = vmatpush1.msra.mxu0 %v524
    %528 = vmatprep.subr.mxu0 0.0
    %529 = vmatpush1.msra.mxu0 0.0
    %530 = vmatprep.subr.mxu0 0.0
    %531 = vmatpush1.msra.mxu0 0.0
    %532 = vmatprep.subr.mxu0 0.0
    %533 = vmatpush1.msra.mxu0 0.0
    %534 = vmatprep.subr.mxu0 0.0
    %535 = vmatpush1.msra.mxu0 0.0
    %536 = vmatprep.subr.mxu0 0.0
    %537 = vmatpush1.msra.mxu0 0.0
    %538 = vmatprep.subr.mxu0 0.0
    %539 = vmatpush1.msra.mxu0 0.0
    %540 = vmatprep.subr.mxu0 0.0
    %541 = vmatpush1.msra.mxu0 0.0
    %542 = vmatprep.subr.mxu0 0.0
    %543 = vmatpush1.msra.mxu0 0.0
    %544 = vmatprep.subr.mxu0 0.0
    %545 = vmatpush1.msra.mxu0 0.0
    %546 = vmatprep.subr.mxu0 0.0
    %547 = vmatpush1.msra.mxu0 0.0
    %548 = vmatprep.subr.mxu0 0.0
    %549 = vmatpush1.msra.mxu0 0.0
    %550 = vmatprep.subr.mxu0 0.0
    %551 = vmatpush1.msra.mxu0 0.0
    %552 = vmatprep.subr.mxu0 0.0
    %553 = vmatpush1.msra.mxu0 0.0
    %554 = vmatprep.subr.mxu0 0.0
    %555 = vmatpush1.msra.mxu0 0.0
    %556 = vmatprep.subr.mxu0 0.0
    %557 = vmatpush1.msra.mxu0 0.0
    %558 = vmatprep.subr.mxu0 0.0
    %559 = vmatpush1.msra.mxu0 0.0
    %560 = vmatprep.subr.mxu0 0.0
    %561 = vmatpush1.msra.mxu0 0.0
    %562 = vmatprep.subr.mxu0 0.0
    %563 = vmatpush1.msra.mxu0 0.0
    %564 = vmatprep.subr.mxu0 0.0
    %565 = vmatpush1.msra.mxu0 0.0
    %566 = vmatprep.subr.mxu0 0.0
    %567 = vmatpush1.msra.mxu0 0.0
    %568 = vmatprep.subr.mxu0 0.0
    %569 = vmatpush1.msra.mxu0 0.0
    %570 = vmatprep.subr.mxu0 0.0
    %571 = vmatpush1.msra.mxu0 0.0
    %572 = vmatprep.subr.mxu0 0.0
    %573 = vmatpush1.msra.mxu0 0.0
    %574 = vmatprep.subr.mxu0 0.0
    %575 = vmatpush1.msra.mxu0 0.0
    %576 = vmatprep.subr.mxu0 0.0
    %577 = vmatpush1.msra.mxu0 0.0
    %578 = vmatprep.subr.mxu0 0.0
    %579 = vmatpush1.msra.mxu0 0.0
    %580 = vmatprep.subr.mxu0 0.0
    %581 = vmatpush1.msra.mxu0 0.0
    %582 = vmatprep.subr.mxu0 0.0
    %583 = vmatpush1.msra.mxu0 0.0
    %584 = vmatprep.subr.mxu0 0.0
    %585 = vmatpush1.msra.mxu0 0.0
    %586 = vmatprep.subr.mxu0 0.0
    %587 = vmatpush1.msra.mxu0 0.0
    %588 = vmatprep.subr.mxu0 0.0
    %589 = vmatpush1.msra.mxu0 0.0
    %590 = vmatprep.mubr.f32.mxu0 0.0
    %591 = vmatmul.mubr.f32.gmra.mrb[0].mxu0 %v428
    %v592 = vpop.f32.mrb[0].mxu0
    %v593 = vadd.f32 %v269, %v592
    %v594 = vpop.f32.mrb[0].mxu0
    %595 = vmatprep.mubr.f32.mxu0 0.0
    %596 = vmatmul.mubr.f32.gmra.mrb[0].mxu0 %v431
    %v597 = vpop.f32.mrb[0].mxu0
    %v598 = vadd.f32 %v274, %v597
    %v599 = vpop.f32.mrb[0].mxu0
    %600 = vmatprep.mubr.f32.mxu0 0.0
    %601 = vmatmul.mubr.f32.gmra.mrb[0].mxu0 %v434
    %v602 = vpop.f32.mrb[0].mxu0
    %v603 = vadd.f32 %v279, %v602
    %v604 = vpop.f32.mrb[0].mxu0
    %605 = vmatprep.mubr.f32.mxu0 0.0
    %606 = vmatmul.mubr.f32.gmra.mrb[0].mxu0 %v437
    %v607 = vpop.f32.mrb[0].mxu0
    %v608 = vadd.f32 %v284, %v607
    %v609 = vpop.f32.mrb[0].mxu0
    %610 = vmatprep.mubr.f32.mxu0 0.0
    %611 = vmatmul.mubr.f32.gmra.mrb[0].mxu0 %v440
    %v612 = vpop.f32.mrb[0].mxu0
    %v613 = vadd.f32 %v289, %v612
    %v614 = vpop.f32.mrb[0].mxu0
    %615 = vmatprep.mubr.f32.mxu0 0.0
    %616 = vmatmul.mubr.f32.gmra.mrb[0].mxu0 %v443
    %v617 = vpop.f32.mrb[0].mxu0
    %v618 = vadd.f32 %v294, %v617
    %v619 = vpop.f32.mrb[0].mxu0
    %620 = vmatprep.mubr.f32.mxu0 0.0
    %621 = vmatmul.mubr.f32.gmra.mrb[0].mxu0 %v446
    %v622 = vpop.f32.mrb[0].mxu0
    %v623 = vadd.f32 %v299, %v622
    %v624 = vpop.f32.mrb[0].mxu0
    %625 = vmatprep.mubr.f32.mxu0 0.0
    %626 = vmatmul.mubr.f32.gmra.mrb[0].mxu0 %v449
    %v627 = vpop.f32.mrb[0].mxu0
    %v628 = vadd.f32 %v304, %v627
    %v629 = vpop.f32.mrb[0].mxu0
    %630 = vmatprep.mubr.f32.mxu0 0.0
    %631 = vmatmul.mubr.f32.gmra.mrb[0].mxu0 %v452
    %v632 = vpop.f32.mrb[0].mxu0
    %v633 = vadd.f32 %v309, %v632
    %v634 = vpop.f32.mrb[0].mxu0
    %635 = vmatprep.mubr.f32.mxu0 0.0
    %636 = vmatmul.mubr.f32.gmra.mrb[0].mxu0 %v455
    %v637 = vpop.f32.mrb[0].mxu0
    %v638 = vadd.f32 %v314, %v637
    %v639 = vpop.f32.mrb[0].mxu0
    %640 = vmatprep.mubr.f32.mxu0 0.0
    %641 = vmatmul.mubr.f32.gmra.mrb[0].mxu0 %v458
    %v642 = vpop.f32.mrb[0].mxu0
    %v643 = vadd.f32 %v319, %v642
    %v644 = vpop.f32.mrb[0].mxu0
    %645 = vmatprep.mubr.f32.mxu0 0.0
    %646 = vmatmul.mubr.f32.gmra.mrb[0].mxu0 %v461
    %v647 = vpop.f32.mrb[0].mxu0
    %v648 = vadd.f32 %v324, %v647
    %v649 = vpop.f32.mrb[0].mxu0
    %650 = vmatprep.mubr.f32.mxu0 0.0
    %651 = vmatmul.mubr.f32.gmra.mrb[0].mxu0 %v464
    %v652 = vpop.f32.mrb[0].mxu0
    %v653 = vadd.f32 %v329, %v652
    %v654 = vpop.f32.mrb[0].mxu0
    %655 = vmatprep.mubr.f32.mxu0 0.0
    %656 = vmatmul.mubr.f32.gmra.mrb[0].mxu0 %v467
    %v657 = vpop.f32.mrb[0].mxu0
    %v658 = vadd.f32 %v334, %v657
    %v659 = vpop.f32.mrb[0].mxu0
    %660 = vmatprep.mubr.f32.mxu0 0.0
    %661 = vmatmul.mubr.f32.gmra.mrb[0].mxu0 %v470
    %v662 = vpop.f32.mrb[0].mxu0
    %v663 = vadd.f32 %v339, %v662
    %v664 = vpop.f32.mrb[0].mxu0
    %665 = vmatprep.mubr.f32.mxu0 0.0
    %666 = vmatmul.mubr.f32.gmra.mrb[0].mxu0 %v473
    %v667 = vpop.f32.mrb[0].mxu0
    %v668 = vadd.f32 %v344, %v667
    %v669 = vpop.f32.mrb[0].mxu0
    %670 = vmatprep.mubr.f32.mxu0 0.0
    %671 = vmatmul.mubr.f32.gmra.mrb[0].mxu0 %v476
    %v672 = vpop.f32.mrb[0].mxu0
    %v673 = vadd.f32 %v349, %v672
    %v674 = vpop.f32.mrb[0].mxu0
    %675 = vmatprep.mubr.f32.mxu0 0.0
    %676 = vmatmul.mubr.f32.gmra.mrb[0].mxu0 %v479
    %v677 = vpop.f32.mrb[0].mxu0
    %v678 = vadd.f32 %v354, %v677
    %v679 = vpop.f32.mrb[0].mxu0
    %680 = vmatprep.mubr.f32.mxu0 0.0
    %681 = vmatmul.mubr.f32.gmra.mrb[0].mxu0 %v482
    %v682 = vpop.f32.mrb[0].mxu0
    %v683 = vadd.f32 %v359, %v682
    %v684 = vpop.f32.mrb[0].mxu0
    %685 = vmatprep.mubr.f32.mxu0 0.0
    %686 = vmatmul.mubr.f32.gmra.mrb[0].mxu0 %v485
    %v687 = vpop.f32.mrb[0].mxu0
    %v688 = vadd.f32 %v364, %v687
    %v689 = vpop.f32.mrb[0].mxu0
    %690 = vmatprep.mubr.f32.mxu0 0.0
    %691 = vmatmul.mubr.f32.gmra.mrb[0].mxu0 %v488
    %v692 = vpop.f32.mrb[0].mxu0
    %v693 = vadd.f32 %v369, %v692
    %v694 = vpop.f32.mrb[0].mxu0
    %695 = vmatprep.mubr.f32.mxu0 0.0
    %696 = vmatmul.mubr.f32.gmra.mrb[0].mxu0 %v491
    %v697 = vpop.f32.mrb[0].mxu0
    %v698 = vadd.f32 %v374, %v697
    %v699 = vpop.f32.mrb[0].mxu0
    %700 = vmatprep.mubr.f32.mxu0 0.0
    %701 = vmatmul.mubr.f32.gmra.mrb[0].mxu0 %v494
    %v702 = vpop.f32.mrb[0].mxu0
    %v703 = vadd.f32 %v379, %v702
    %v704 = vpop.f32.mrb[0].mxu0
    %705 = vmatprep.mubr.f32.mxu0 0.0
    %706 = vmatmul.mubr.f32.gmra.mrb[0].mxu0 %v497
    %v707 = vpop.f32.mrb[0].mxu0
    %v708 = vadd.f32 %v384, %v707
    %v709 = vpop.f32.mrb[0].mxu0
    %710 = vmatprep.mubr.f32.mxu0 0.0
    %711 = vmatmul.mubr.f32.gmra.mrb[0].mxu0 %v500
    %v712 = vpop.f32.mrb[0].mxu0
    %v713 = vadd.f32 %v389, %v712
    %v714 = vpop.f32.mrb[0].mxu0
    %715 = vmatprep.mubr.f32.mxu0 0.0
    %716 = vmatmul.mubr.f32.gmra.mrb[0].mxu0 %v503
    %v717 = vpop.f32.mrb[0].mxu0
    %v718 = vadd.f32 %v394, %v717
    %v719 = vpop.f32.mrb[0].mxu0
    %720 = vmatprep.mubr.f32.mxu0 0.0
    %721 = vmatmul.mubr.f32.gmra.mrb[0].mxu0 %v506
    %v722 = vpop.f32.mrb[0].mxu0
    %v723 = vadd.f32 %v399, %v722
    %v724 = vpop.f32.mrb[0].mxu0
    %725 = vmatprep.mubr.f32.mxu0 0.0
    %726 = vmatmul.mubr.f32.gmra.mrb[0].mxu0 %v509
    %v727 = vpop.f32.mrb[0].mxu0
    %v728 = vadd.f32 %v404, %v727
    %v729 = vpop.f32.mrb[0].mxu0
    %730 = vmatprep.mubr.f32.mxu0 0.0
    %731 = vmatmul.mubr.f32.gmra.mrb[0].mxu0 %v512
    %v732 = vpop.f32.mrb[0].mxu0
    %v733 = vadd.f32 %v409, %v732
    %v734 = vpop.f32.mrb[0].mxu0
    %735 = vmatprep.mubr.f32.mxu0 0.0
    %736 = vmatmul.mubr.f32.gmra.mrb[0].mxu0 %v515
    %v737 = vpop.f32.mrb[0].mxu0
    %v738 = vadd.f32 %v414, %v737
    %v739 = vpop.f32.mrb[0].mxu0
    %740 = vmatprep.mubr.f32.mxu0 0.0
    %741 = vmatmul.mubr.f32.gmra.mrb[0].mxu0 %v518
    %v742 = vpop.f32.mrb[0].mxu0
    %v743 = vadd.f32 %v419, %v742
    %v744 = vpop.f32.mrb[0].mxu0
    %745 = vmatprep.mubr.f32.mxu0 0.0
    %746 = vmatmul.mubr.f32.gmra.mrb[0].mxu0 %v521
    %v747 = vpop.f32.mrb[0].mxu0
    %v748 = vadd.f32 %v424, %v747
    %v749 = vpop.f32.mrb[0].mxu0
    %750 = vdwg.mxu0
    %v751 = vld [vmem:[%s0 + $0x2] sm:$0xff]
    %v752 = vld [vmem:[%s0 + $0xa] sm:$0xff]
    %v753 = vld [vmem:[%s0 + $0x1a] sm:$0xff]
    %v754 = vld [vmem:[%s0 + $0x22] sm:$0xff]
    %v755 = vld [vmem:[%s0 + $0x32] sm:$0xff]
    %v756 = vld [vmem:[%s0 + $0x3a] sm:$0xff]
    %v757 = vld [vmem:[%s0 + $0x4a] sm:$0xff]
    %v758 = vld [vmem:[%s0 + $0x52] sm:$0xff]
    %v759 = vld [vmem:[%s0 + $0x62] sm:$0xff]
    %v760 = vld [vmem:[%s0 + $0x6a] sm:$0xff]
    %v761 = vld [vmem:[%s0 + $0x7a] sm:$0xff]
    %v762 = vld [vmem:[%s0 + $0x82] sm:$0xff]
    %v763 = vld [vmem:[%s0 + $0x92] sm:$0xff]
    %v764 = vld [vmem:[%s0 + $0x9a] sm:$0xff]
    %v765 = vld [vmem:[%s0 + $0xaa] sm:$0xff]
    %v766 = vld [vmem:[%s0 + $0xb2] sm:$0xff]
    %v767 = vld [vmem:[%s0 + $0xc2] sm:$0xff]
    %v768 = vld [vmem:[%s0 + $0xca] sm:$0xff]
    %v769 = vld [vmem:[%s0 + $0xda] sm:$0xff]
    %v770 = vld [vmem:[%s0 + $0xe2] sm:$0xff]
    %v771 = vld [vmem:[%s0 + $0xf2] sm:$0xff]
    %v772 = vld [vmem:[%s0 + $0xfa] sm:$0xff]
    %v773 = vld [vmem:[%s0 + $0x10a] sm:$0xff]
    %v774 = vld [vmem:[%s0 + $0x112] sm:$0xff]
    %v775 = vld [vmem:[%s0 + $0x122] sm:$0xff]
    %v776 = vld [vmem:[%s0 + $0x12a] sm:$0xff]
    %v777 = vld [vmem:[%s0 + $0x13a] sm:$0xff]
    %v778 = vld [vmem:[%s0 + $0x142] sm:$0xff]
    %v779 = vld [vmem:[%s0 + $0x152] sm:$0xff]
    %v780 = vld [vmem:[%s0 + $0x15a] sm:$0xff]
    %v781 = vld [vmem:[%s0 + $0x16a] sm:$0xff]
    %v782 = vld [vmem:[%s0 + $0x172] sm:$0xff]
    %s783 = scalar_lea.vmem %s1, 8
    %v784 = vld [vmem:[%s783] sm:$0xf]
    %v786 = vsel %vm101, %v751, 0
    %v789 = vsel %vm101, %v752, 0
    %v792 = vsel %vm101, %v753, 0
    %v795 = vsel %vm101, %v754, 0
    %v798 = vsel %vm101, %v755, 0
    %v801 = vsel %vm101, %v756, 0
    %v804 = vsel %vm101, %v757, 0
    %v807 = vsel %vm101, %v758, 0
    %v810 = vsel %vm101, %v759, 0
    %v813 = vsel %vm101, %v760, 0
    %v816 = vsel %vm101, %v761, 0
    %v819 = vsel %vm101, %v762, 0
    %v822 = vsel %vm101, %v763, 0
    %v825 = vsel %vm101, %v764, 0
    %v828 = vsel %vm101, %v765, 0
    %v831 = vsel %vm101, %v766, 0
    %v834 = vsel %vm101, %v767, 0
    %v837 = vsel %vm101, %v768, 0
    %v840 = vsel %vm101, %v769, 0
    %v843 = vsel %vm101, %v770, 0
    %v846 = vsel %vm101, %v771, 0
    %v849 = vsel %vm101, %v772, 0
    %v852 = vsel %vm101, %v773, 0
    %v855 = vsel %vm101, %v774, 0
    %v858 = vsel %vm101, %v775, 0
    %v861 = vsel %vm101, %v776, 0
    %v864 = vsel %vm101, %v777, 0
    %v867 = vsel %vm101, %v778, 0
    %v870 = vsel %vm101, %v779, 0
    %v873 = vsel %vm101, %v780, 0
    %v876 = vsel %vm101, %v781, 0
    %v879 = vsel %vm101, %v782, 0
    %v882 = vsel %vm198, %v784, 0
    %884 = vmatprep.subr.mxu0 0.0
    %885 = vmatpush1.msra.mxu0 %v882
    %886 = vmatprep.subr.mxu0 0.0
    %887 = vmatpush1.msra.mxu0 0.0
    %888 = vmatprep.subr.mxu0 0.0
    %889 = vmatpush1.msra.mxu0 0.0
    %890 = vmatprep.subr.mxu0 0.0
    %891 = vmatpush1.msra.mxu0 0.0
    %892 = vmatprep.subr.mxu0 0.0
    %893 = vmatpush1.msra.mxu0 0.0
    %894 = vmatprep.subr.mxu0 0.0
    %895 = vmatpush1.msra.mxu0 0.0
    %896 = vmatprep.subr.mxu0 0.0
    %897 = vmatpush1.msra.mxu0 0.0
    %898 = vmatprep.subr.mxu0 0.0
    %899 = vmatpush1.msra.mxu0 0.0
    %900 = vmatprep.subr.mxu0 0.0
    %901 = vmatpush1.msra.mxu0 0.0
    %902 = vmatprep.subr.mxu0 0.0
    %903 = vmatpush1.msra.mxu0 0.0
    %904 = vmatprep.subr.mxu0 0.0
    %905 = vmatpush1.msra.mxu0 0.0
    %906 = vmatprep.subr.mxu0 0.0
    %907 = vmatpush1.msra.mxu0 0.0
    %908 = vmatprep.subr.mxu0 0.0
    %909 = vmatpush1.msra.mxu0 0.0
    %910 = vmatprep.subr.mxu0 0.0
    %911 = vmatpush1.msra.mxu0 0.0
    %912 = vmatprep.subr.mxu0 0.0
    %913 = vmatpush1.msra.mxu0 0.0
    %914 = vmatprep.subr.mxu0 0.0
    %915 = vmatpush1.msra.mxu0 0.0
    %916 = vmatprep.subr.mxu0 0.0
    %917 = vmatpush1.msra.mxu0 0.0
    %918 = vmatprep.subr.mxu0 0.0
    %919 = vmatpush1.msra.mxu0 0.0
    %920 = vmatprep.subr.mxu0 0.0
    %921 = vmatpush1.msra.mxu0 0.0
    %922 = vmatprep.subr.mxu0 0.0
    %923 = vmatpush1.msra.mxu0 0.0
    %924 = vmatprep.subr.mxu0 0.0
    %925 = vmatpush1.msra.mxu0 0.0
    %926 = vmatprep.subr.mxu0 0.0
    %927 = vmatpush1.msra.mxu0 0.0
    %928 = vmatprep.subr.mxu0 0.0
    %929 = vmatpush1.msra.mxu0 0.0
    %930 = vmatprep.subr.mxu0 0.0
    %931 = vmatpush1.msra.mxu0 0.0
    %932 = vmatprep.subr.mxu0 0.0
    %933 = vmatpush1.msra.mxu0 0.0
    %934 = vmatprep.subr.mxu0 0.0
    %935 = vmatpush1.msra.mxu0 0.0
    %936 = vmatprep.subr.mxu0 0.0
    %937 = vmatpush1.msra.mxu0 0.0
    %938 = vmatprep.subr.mxu0 0.0
    %939 = vmatpush1.msra.mxu0 0.0
    %940 = vmatprep.subr.mxu0 0.0
    %941 = vmatpush1.msra.mxu0 0.0
    %942 = vmatprep.subr.mxu0 0.0
    %943 = vmatpush1.msra.mxu0 0.0
    %944 = vmatprep.subr.mxu0 0.0
    %945 = vmatpush1.msra.mxu0 0.0
    %946 = vmatprep.subr.mxu0 0.0
    %947 = vmatpush1.msra.mxu0 0.0
    %948 = vmatprep.mubr.f32.mxu0 0.0
    %949 = vmatmul.mubr.f32.gmra.mrb[0].mxu0 %v786
    %v950 = vpop.f32.mrb[0].mxu0
    %v951 = vadd.f32 0.0, %v950
    %v952 = vpop.f32.mrb[0].mxu0
    %953 = vmatprep.mubr.f32.mxu0 0.0
    %954 = vmatmul.mubr.f32.gmra.mrb[0].mxu0 %v789
    %v955 = vpop.f32.mrb[0].mxu0
    %v956 = vadd.f32 0.0, %v955
    %v957 = vpop.f32.mrb[0].mxu0
    %958 = vmatprep.mubr.f32.mxu0 0.0
    %959 = vmatmul.mubr.f32.gmra.mrb[0].mxu0 %v792
    %v960 = vpop.f32.mrb[0].mxu0
    %v961 = vadd.f32 0.0, %v960
    %v962 = vpop.f32.mrb[0].mxu0
    %963 = vmatprep.mubr.f32.mxu0 0.0
    %964 = vmatmul.mubr.f32.gmra.mrb[0].mxu0 %v795
    %v965 = vpop.f32.mrb[0].mxu0
    %v966 = vadd.f32 0.0, %v965
    %v967 = vpop.f32.mrb[0].mxu0
    %968 = vmatprep.mubr.f32.mxu0 0.0
    %969 = vmatmul.mubr.f32.gmra.mrb[0].mxu0 %v798
    %v970 = vpop.f32.mrb[0].mxu0
    %v971 = vadd.f32 0.0, %v970
    %v972 = vpop.f32.mrb[0].mxu0
    %973 = vmatprep.mubr.f32.mxu0 0.0
    %974 = vmatmul.mubr.f32.gmra.mrb[0].mxu0 %v801
    %v975 = vpop.f32.mrb[0].mxu0
    %v976 = vadd.f32 0.0, %v975
    %v977 = vpop.f32.mrb[0].mxu0
    %978 = vmatprep.mubr.f32.mxu0 0.0
    %979 = vmatmul.mubr.f32.gmra.mrb[0].mxu0 %v804
    %v980 = vpop.f32.mrb[0].mxu0
    %v981 = vadd.f32 0.0, %v980
    %v982 = vpop.f32.mrb[0].mxu0
    %983 = vmatprep.mubr.f32.mxu0 0.0
    %984 = vmatmul.mubr.f32.gmra.mrb[0].mxu0 %v807
    %v985 = vpop.f32.mrb[0].mxu0
    %v986 = vadd.f32 0.0, %v985
    %v987 = vpop.f32.mrb[0].mxu0
    %988 = vmatprep.mubr.f32.mxu0 0.0
    %989 = vmatmul.mubr.f32.gmra.mrb[0].mxu0 %v810
    %v990 = vpop.f32.mrb[0].mxu0
    %v991 = vadd.f32 0.0, %v990
    %v992 = vpop.f32.mrb[0].mxu0
    %993 = vmatprep.mubr.f32.mxu0 0.0
    %994 = vmatmul.mubr.f32.gmra.mrb[0].mxu0 %v813
    %v995 = vpop.f32.mrb[0].mxu0
    %v996 = vadd.f32 0.0, %v995
    %v997 = vpop.f32.mrb[0].mxu0
    %998 = vmatprep.mubr.f32.mxu0 0.0
    %999 = vmatmul.mubr.f32.gmra.mrb[0].mxu0 %v816
    %v1000 = vpop.f32.mrb[0].mxu0
    %v1001 = vadd.f32 0.0, %v1000
    %v1002 = vpop.f32.mrb[0].mxu0
    %1003 = vmatprep.mubr.f32.mxu0 0.0
    %1004 = vmatmul.mubr.f32.gmra.mrb[0].mxu0 %v819
    %v1005 = vpop.f32.mrb[0].mxu0
    %v1006 = vadd.f32 0.0, %v1005
    %v1007 = vpop.f32.mrb[0].mxu0
    %1008 = vmatprep.mubr.f32.mxu0 0.0
    %1009 = vmatmul.mubr.f32.gmra.mrb[0].mxu0 %v822
    %v1010 = vpop.f32.mrb[0].mxu0
    %v1011 = vadd.f32 0.0, %v1010
    %v1012 = vpop.f32.mrb[0].mxu0
    %1013 = vmatprep.mubr.f32.mxu0 0.0
    %1014 = vmatmul.mubr.f32.gmra.mrb[0].mxu0 %v825
    %v1015 = vpop.f32.mrb[0].mxu0
    %v1016 = vadd.f32 0.0, %v1015
    %v1017 = vpop.f32.mrb[0].mxu0
    %1018 = vmatprep.mubr.f32.mxu0 0.0
    %1019 = vmatmul.mubr.f32.gmra.mrb[0].mxu0 %v828
    %v1020 = vpop.f32.mrb[0].mxu0
    %v1021 = vadd.f32 0.0, %v1020
    %v1022 = vpop.f32.mrb[0].mxu0
    %1023 = vmatprep.mubr.f32.mxu0 0.0
    %1024 = vmatmul.mubr.f32.gmra.mrb[0].mxu0 %v831
    %v1025 = vpop.f32.mrb[0].mxu0
    %v1026 = vadd.f32 0.0, %v1025
    %v1027 = vpop.f32.mrb[0].mxu0
    %1028 = vmatprep.mubr.f32.mxu0 0.0
    %1029 = vmatmul.mubr.f32.gmra.mrb[0].mxu0 %v834
    %v1030 = vpop.f32.mrb[0].mxu0
    %v1031 = vadd.f32 0.0, %v1030
    %v1032 = vpop.f32.mrb[0].mxu0
    %1033 = vmatprep.mubr.f32.mxu0 0.0
    %1034 = vmatmul.mubr.f32.gmra.mrb[0].mxu0 %v837
    %v1035 = vpop.f32.mrb[0].mxu0
    %v1036 = vadd.f32 0.0, %v1035
    %v1037 = vpop.f32.mrb[0].mxu0
    %1038 = vmatprep.mubr.f32.mxu0 0.0
    %1039 = vmatmul.mubr.f32.gmra.mrb[0].mxu0 %v840
    %v1040 = vpop.f32.mrb[0].mxu0
    %v1041 = vadd.f32 0.0, %v1040
    %v1042 = vpop.f32.mrb[0].mxu0
    %1043 = vmatprep.mubr.f32.mxu0 0.0
    %1044 = vmatmul.mubr.f32.gmra.mrb[0].mxu0 %v843
    %v1045 = vpop.f32.mrb[0].mxu0
    %v1046 = vadd.f32 0.0, %v1045
    %v1047 = vpop.f32.mrb[0].mxu0
    %1048 = vmatprep.mubr.f32.mxu0 0.0
    %1049 = vmatmul.mubr.f32.gmra.mrb[0].mxu0 %v846
    %v1050 = vpop.f32.mrb[0].mxu0
    %v1051 = vadd.f32 0.0, %v1050
    %v1052 = vpop.f32.mrb[0].mxu0
    %1053 = vmatprep.mubr.f32.mxu0 0.0
    %1054 = vmatmul.mubr.f32.gmra.mrb[0].mxu0 %v849
    %v1055 = vpop.f32.mrb[0].mxu0
    %v1056 = vadd.f32 0.0, %v1055
    %v1057 = vpop.f32.mrb[0].mxu0
    %1058 = vmatprep.mubr.f32.mxu0 0.0
    %1059 = vmatmul.mubr.f32.gmra.mrb[0].mxu0 %v852
    %v1060 = vpop.f32.mrb[0].mxu0
    %v1061 = vadd.f32 0.0, %v1060
    %v1062 = vpop.f32.mrb[0].mxu0
    %1063 = vmatprep.mubr.f32.mxu0 0.0
    %1064 = vmatmul.mubr.f32.gmra.mrb[0].mxu0 %v855
    %v1065 = vpop.f32.mrb[0].mxu0
    %v1066 = vadd.f32 0.0, %v1065
    %v1067 = vpop.f32.mrb[0].mxu0
    %1068 = vmatprep.mubr.f32.mxu0 0.0
    %1069 = vmatmul.mubr.f32.gmra.mrb[0].mxu0 %v858
    %v1070 = vpop.f32.mrb[0].mxu0
    %v1071 = vadd.f32 0.0, %v1070
    %v1072 = vpop.f32.mrb[0].mxu0
    %1073 = vmatprep.mubr.f32.mxu0 0.0
    %1074 = vmatmul.mubr.f32.gmra.mrb[0].mxu0 %v861
    %v1075 = vpop.f32.mrb[0].mxu0
    %v1076 = vadd.f32 0.0, %v1075
    %v1077 = vpop.f32.mrb[0].mxu0
    %1078 = vmatprep.mubr.f32.mxu0 0.0
    %1079 = vmatmul.mubr.f32.gmra.mrb[0].mxu0 %v864
    %v1080 = vpop.f32.mrb[0].mxu0
    %v1081 = vadd.f32 0.0, %v1080
    %v1082 = vpop.f32.mrb[0].mxu0
    %1083 = vmatprep.mubr.f32.mxu0 0.0
    %1084 = vmatmul.mubr.f32.gmra.mrb[0].mxu0 %v867
    %v1085 = vpop.f32.mrb[0].mxu0
    %v1086 = vadd.f32 0.0, %v1085
    %v1087 = vpop.f32.mrb[0].mxu0
    %1088 = vmatprep.mubr.f32.mxu0 0.0
    %1089 = vmatmul.mubr.f32.gmra.mrb[0].mxu0 %v870
    %v1090 = vpop.f32.mrb[0].mxu0
    %v1091 = vadd.f32 0.0, %v1090
    %v1092 = vpop.f32.mrb[0].mxu0
    %1093 = vmatprep.mubr.f32.mxu0 0.0
    %1094 = vmatmul.mubr.f32.gmra.mrb[0].mxu0 %v873
    %v1095 = vpop.f32.mrb[0].mxu0
    %v1096 = vadd.f32 0.0, %v1095
    %v1097 = vpop.f32.mrb[0].mxu0
    %1098 = vmatprep.mubr.f32.mxu0 0.0
    %1099 = vmatmul.mubr.f32.gmra.mrb[0].mxu0 %v876
    %v1100 = vpop.f32.mrb[0].mxu0
    %v1101 = vadd.f32 0.0, %v1100
    %v1102 = vpop.f32.mrb[0].mxu0
    %1103 = vmatprep.mubr.f32.mxu0 0.0
    %1104 = vmatmul.mubr.f32.gmra.mrb[0].mxu0 %v879
    %v1105 = vpop.f32.mrb[0].mxu0
    %v1106 = vadd.f32 0.0, %v1105
    %v1107 = vpop.f32.mrb[0].mxu0
    %1108 = vdwg.mxu0
    %v1109 = vadd.f32 %v593, %v951
    %v1110 = vadd.f32 %v598, %v956
    %v1111 = vadd.f32 %v603, %v961
    %v1112 = vadd.f32 %v608, %v966
    %v1113 = vadd.f32 %v613, %v971
    %v1114 = vadd.f32 %v618, %v976
    %v1115 = vadd.f32 %v623, %v981
    %v1116 = vadd.f32 %v628, %v986
    %v1117 = vadd.f32 %v633, %v991
    %v1118 = vadd.f32 %v638, %v996
    %v1119 = vadd.f32 %v643, %v1001
    %v1120 = vadd.f32 %v648, %v1006
    %v1121 = vadd.f32 %v653, %v1011
    %v1122 = vadd.f32 %v658, %v1016
    %v1123 = vadd.f32 %v663, %v1021
    %v1124 = vadd.f32 %v668, %v1026
    %v1125 = vadd.f32 %v673, %v1031
    %v1126 = vadd.f32 %v678, %v1036
    %v1127 = vadd.f32 %v683, %v1041
    %v1128 = vadd.f32 %v688, %v1046
    %v1129 = vadd.f32 %v693, %v1051
    %v1130 = vadd.f32 %v698, %v1056
    %v1131 = vadd.f32 %v703, %v1061
    %v1132 = vadd.f32 %v708, %v1066
    %v1133 = vadd.f32 %v713, %v1071
    %v1134 = vadd.f32 %v718, %v1076
    %v1135 = vadd.f32 %v723, %v1081
    %v1136 = vadd.f32 %v728, %v1086
    %v1137 = vadd.f32 %v733, %v1091
    %v1138 = vadd.f32 %v738, %v1096
    %v1139 = vadd.f32 %v743, %v1101
    %v1140 = vadd.f32 %v748, %v1106
    %s1141 = scalar_lea.vmem %s0, 24
    %v1142 = vld [vmem:[%s1141] sm:$0xff]
    %v1143 = vld [vmem:[%s1141 + $0x8] sm:$0xff]
    %v1144 = vld [vmem:[%s1141 + $0x18] sm:$0xff]
    %v1145 = vld [vmem:[%s1141 + $0x20] sm:$0xff]
    %v1146 = vld [vmem:[%s1141 + $0x30] sm:$0xff]
    %v1147 = vld [vmem:[%s1141 + $0x38] sm:$0xff]
    %v1148 = vld [vmem:[%s1141 + $0x48] sm:$0xff]
    %v1149 = vld [vmem:[%s1141 + $0x50] sm:$0xff]
    %v1150 = vld [vmem:[%s1141 + $0x60] sm:$0xff]
    %v1151 = vld [vmem:[%s1141 + $0x68] sm:$0xff]
    %v1152 = vld [vmem:[%s1141 + $0x78] sm:$0xff]
    %v1153 = vld [vmem:[%s1141 + $0x80] sm:$0xff]
    %v1154 = vld [vmem:[%s1141 + $0x90] sm:$0xff]
    %v1155 = vld [vmem:[%s1141 + $0x98] sm:$0xff]
    %v1156 = vld [vmem:[%s1141 + $0xa8] sm:$0xff]
    %v1157 = vld [vmem:[%s1141 + $0xb0] sm:$0xff]
    %v1158 = vld [vmem:[%s1141 + $0xc0] sm:$0xff]
    %v1159 = vld [vmem:[%s1141 + $0xc8] sm:$0xff]
    %v1160 = vld [vmem:[%s1141 + $0xd8] sm:$0xff]
    %v1161 = vld [vmem:[%s1141 + $0xe0] sm:$0xff]
    %v1162 = vld [vmem:[%s1141 + $0xf0] sm:$0xff]
    %v1163 = vld [vmem:[%s1141 + $0xf8] sm:$0xff]
    %v1164 = vld [vmem:[%s1141 + $0x108] sm:$0xff]
    %v1165 = vld [vmem:[%s1141 + $0x110] sm:$0xff]
    %v1166 = vld [vmem:[%s1141 + $0x120] sm:$0xff]
    %v1167 = vld [vmem:[%s1141 + $0x128] sm:$0xff]
    %v1168 = vld [vmem:[%s1141 + $0x138] sm:$0xff]
    %v1169 = vld [vmem:[%s1141 + $0x140] sm:$0xff]
    %v1170 = vld [vmem:[%s1141 + $0x150] sm:$0xff]
    %v1171 = vld [vmem:[%s1141 + $0x158] sm:$0xff]
    %v1172 = vld [vmem:[%s1141 + $0x168] sm:$0xff]
    %v1173 = vld [vmem:[%s1141 + $0x170] sm:$0xff]
    %s1174 = scalar_lea.vmem %s1, 12
    %v1175 = vld [vmem:[%s1174] sm:$0xf]
    %v1177 = vsel %vm101, %v1142, 0
    %v1180 = vsel %vm101, %v1143, 0
    %v1183 = vsel %vm101, %v1144, 0
    %v1186 = vsel %vm101, %v1145, 0
    %v1189 = vsel %vm101, %v1146, 0
    %v1192 = vsel %vm101, %v1147, 0
    %v1195 = vsel %vm101, %v1148, 0
    %v1198 = vsel %vm101, %v1149, 0
    %v1201 = vsel %vm101, %v1150, 0
    %v1204 = vsel %vm101, %v1151, 0
    %v1207 = vsel %vm101, %v1152, 0
    %v1210 = vsel %vm101, %v1153, 0
    %v1213 = vsel %vm101, %v1154, 0
    %v1216 = vsel %vm101, %v1155, 0
    %v1219 = vsel %vm101, %v1156, 0
    %v1222 = vsel %vm101, %v1157, 0
    %v1225 = vsel %vm101, %v1158, 0
    %v1228 = vsel %vm101, %v1159, 0
    %v1231 = vsel %vm101, %v1160, 0
    %v1234 = vsel %vm101, %v1161, 0
    %v1237 = vsel %vm101, %v1162, 0
    %v1240 = vsel %vm101, %v1163, 0
    %v1243 = vsel %vm101, %v1164, 0
    %v1246 = vsel %vm101, %v1165, 0
    %v1249 = vsel %vm101, %v1166, 0
    %v1252 = vsel %vm101, %v1167, 0
    %v1255 = vsel %vm101, %v1168, 0
    %v1258 = vsel %vm101, %v1169, 0
    %v1261 = vsel %vm101, %v1170, 0
    %v1264 = vsel %vm101, %v1171, 0
    %v1267 = vsel %vm101, %v1172, 0
    %v1270 = vsel %vm101, %v1173, 0
    %v1273 = vsel %vm198, %v1175, 0
    %1275 = vmatprep.subr.mxu0 0.0
    %1276 = vmatpush1.msra.mxu0 %v1273
    %1277 = vmatprep.subr.mxu0 0.0
    %1278 = vmatpush1.msra.mxu0 0.0
    %1279 = vmatprep.subr.mxu0 0.0
    %1280 = vmatpush1.msra.mxu0 0.0
    %1281 = vmatprep.subr.mxu0 0.0
    %1282 = vmatpush1.msra.mxu0 0.0
    %1283 = vmatprep.subr.mxu0 0.0
    %1284 = vmatpush1.msra.mxu0 0.0
    %1285 = vmatprep.subr.mxu0 0.0
    %1286 = vmatpush1.msra.mxu0 0.0
    %1287 = vmatprep.subr.mxu0 0.0
    %1288 = vmatpush1.msra.mxu0 0.0
    %1289 = vmatprep.subr.mxu0 0.0
    %1290 = vmatpush1.msra.mxu0 0.0
    %1291 = vmatprep.subr.mxu0 0.0
    %1292 = vmatpush1.msra.mxu0 0.0
    %1293 = vmatprep.subr.mxu0 0.0
    %1294 = vmatpush1.msra.mxu0 0.0
    %1295 = vmatprep.subr.mxu0 0.0
    %1296 = vmatpush1.msra.mxu0 0.0
    %1297 = vmatprep.subr.mxu0 0.0
    %1298 = vmatpush1.msra.mxu0 0.0
    %1299 = vmatprep.subr.mxu0 0.0
    %1300 = vmatpush1.msra.mxu0 0.0
    %1301 = vmatprep.subr.mxu0 0.0
    %1302 = vmatpush1.msra.mxu0 0.0
    %1303 = vmatprep.subr.mxu0 0.0
    %1304 = vmatpush1.msra.mxu0 0.0
    %1305 = vmatprep.subr.mxu0 0.0
    %1306 = vmatpush1.msra.mxu0 0.0
    %1307 = vmatprep.subr.mxu0 0.0
    %1308 = vmatpush1.msra.mxu0 0.0
    %1309 = vmatprep.subr.mxu0 0.0
    %1310 = vmatpush1.msra.mxu0 0.0
    %1311 = vmatprep.subr.mxu0 0.0
    %1312 = vmatpush1.msra.mxu0 0.0
    %1313 = vmatprep.subr.mxu0 0.0
    %1314 = vmatpush1.msra.mxu0 0.0
    %1315 = vmatprep.subr.mxu0 0.0
    %1316 = vmatpush1.msra.mxu0 0.0
    %1317 = vmatprep.subr.mxu0 0.0
    %1318 = vmatpush1.msra.mxu0 0.0
    %1319 = vmatprep.subr.mxu0 0.0
    %1320 = vmatpush1.msra.mxu0 0.0
    %1321 = vmatprep.subr.mxu0 0.0
    %1322 = vmatpush1.msra.mxu0 0.0
    %1323 = vmatprep.subr.mxu0 0.0
    %1324 = vmatpush1.msra.mxu0 0.0
    %1325 = vmatprep.subr.mxu0 0.0
    %1326 = vmatpush1.msra.mxu0 0.0
    %1327 = vmatprep.subr.mxu0 0.0
    %1328 = vmatpush1.msra.mxu0 0.0
    %1329 = vmatprep.subr.mxu0 0.0
    %1330 = vmatpush1.msra.mxu0 0.0
    %1331 = vmatprep.subr.mxu0 0.0
    %1332 = vmatpush1.msra.mxu0 0.0
    %1333 = vmatprep.subr.mxu0 0.0
    %1334 = vmatpush1.msra.mxu0 0.0
    %1335 = vmatprep.subr.mxu0 0.0
    %1336 = vmatpush1.msra.mxu0 0.0
    %1337 = vmatprep.subr.mxu0 0.0
    %1338 = vmatpush1.msra.mxu0 0.0
    %1339 = vmatprep.mubr.f32.mxu0 0.0
    %1340 = vmatmul.mubr.f32.gmra.mrb[0].mxu0 %v1177
    %v1341 = vpop.f32.mrb[0].mxu0
    %v1342 = vadd.f32 0.0, %v1341
    %v1343 = vpop.f32.mrb[0].mxu0
    %1344 = vmatprep.mubr.f32.mxu0 0.0
    %1345 = vmatmul.mubr.f32.gmra.mrb[0].mxu0 %v1180
    %v1346 = vpop.f32.mrb[0].mxu0
    %v1347 = vadd.f32 0.0, %v1346
    %v1348 = vpop.f32.mrb[0].mxu0
    %1349 = vmatprep.mubr.f32.mxu0 0.0
    %1350 = vmatmul.mubr.f32.gmra.mrb[0].mxu0 %v1183
    %v1351 = vpop.f32.mrb[0].mxu0
    %v1352 = vadd.f32 0.0, %v1351
    %v1353 = vpop.f32.mrb[0].mxu0
    %1354 = vmatprep.mubr.f32.mxu0 0.0
    %1355 = vmatmul.mubr.f32.gmra.mrb[0].mxu0 %v1186
    %v1356 = vpop.f32.mrb[0].mxu0
    %v1357 = vadd.f32 0.0, %v1356
    %v1358 = vpop.f32.mrb[0].mxu0
    %1359 = vmatprep.mubr.f32.mxu0 0.0
    %1360 = vmatmul.mubr.f32.gmra.mrb[0].mxu0 %v1189
    %v1361 = vpop.f32.mrb[0].mxu0
    %v1362 = vadd.f32 0.0, %v1361
    %v1363 = vpop.f32.mrb[0].mxu0
    %1364 = vmatprep.mubr.f32.mxu0 0.0
    %1365 = vmatmul.mubr.f32.gmra.mrb[0].mxu0 %v1192
    %v1366 = vpop.f32.mrb[0].mxu0
    %v1367 = vadd.f32 0.0, %v1366
    %v1368 = vpop.f32.mrb[0].mxu0
    %1369 = vmatprep.mubr.f32.mxu0 0.0
    %1370 = vmatmul.mubr.f32.gmra.mrb[0].mxu0 %v1195
    %v1371 = vpop.f32.mrb[0].mxu0
    %v1372 = vadd.f32 0.0, %v1371
    %v1373 = vpop.f32.mrb[0].mxu0
    %1374 = vmatprep.mubr.f32.mxu0 0.0
    %1375 = vmatmul.mubr.f32.gmra.mrb[0].mxu0 %v1198
    %v1376 = vpop.f32.mrb[0].mxu0
    %v1377 = vadd.f32 0.0, %v1376
    %v1378 = vpop.f32.mrb[0].mxu0
    %1379 = vmatprep.mubr.f32.mxu0 0.0
    %1380 = vmatmul.mubr.f32.gmra.mrb[0].mxu0 %v1201
    %v1381 = vpop.f32.mrb[0].mxu0
    %v1382 = vadd.f32 0.0, %v1381
    %v1383 = vpop.f32.mrb[0].mxu0
    %1384 = vmatprep.mubr.f32.mxu0 0.0
    %1385 = vmatmul.mubr.f32.gmra.mrb[0].mxu0 %v1204
    %v1386 = vpop.f32.mrb[0].mxu0
    %v1387 = vadd.f32 0.0, %v1386
    %v1388 = vpop.f32.mrb[0].mxu0
    %1389 = vmatprep.mubr.f32.mxu0 0.0
    %1390 = vmatmul.mubr.f32.gmra.mrb[0].mxu0 %v1207
    %v1391 = vpop.f32.mrb[0].mxu0
    %v1392 = vadd.f32 0.0, %v1391
    %v1393 = vpop.f32.mrb[0].mxu0
    %1394 = vmatprep.mubr.f32.mxu0 0.0
    %1395 = vmatmul.mubr.f32.gmra.mrb[0].mxu0 %v1210
    %v1396 = vpop.f32.mrb[0].mxu0
    %v1397 = vadd.f32 0.0, %v1396
    %v1398 = vpop.f32.mrb[0].mxu0
    %1399 = vmatprep.mubr.f32.mxu0 0.0
    %1400 = vmatmul.mubr.f32.gmra.mrb[0].mxu0 %v1213
    %v1401 = vpop.f32.mrb[0].mxu0
    %v1402 = vadd.f32 0.0, %v1401
    %v1403 = vpop.f32.mrb[0].mxu0
    %1404 = vmatprep.mubr.f32.mxu0 0.0
    %1405 = vmatmul.mubr.f32.gmra.mrb[0].mxu0 %v1216
    %v1406 = vpop.f32.mrb[0].mxu0
    %v1407 = vadd.f32 0.0, %v1406
    %v1408 = vpop.f32.mrb[0].mxu0
    %1409 = vmatprep.mubr.f32.mxu0 0.0
    %1410 = vmatmul.mubr.f32.gmra.mrb[0].mxu0 %v1219
    %v1411 = vpop.f32.mrb[0].mxu0
    %v1412 = vadd.f32 0.0, %v1411
    %v1413 = vpop.f32.mrb[0].mxu0
    %1414 = vmatprep.mubr.f32.mxu0 0.0
    %1415 = vmatmul.mubr.f32.gmra.mrb[0].mxu0 %v1222
    %v1416 = vpop.f32.mrb[0].mxu0
    %v1417 = vadd.f32 0.0, %v1416
    %v1418 = vpop.f32.mrb[0].mxu0
    %1419 = vmatprep.mubr.f32.mxu0 0.0
    %1420 = vmatmul.mubr.f32.gmra.mrb[0].mxu0 %v1225
    %v1421 = vpop.f32.mrb[0].mxu0
    %v1422 = vadd.f32 0.0, %v1421
    %v1423 = vpop.f32.mrb[0].mxu0
    %1424 = vmatprep.mubr.f32.mxu0 0.0
    %1425 = vmatmul.mubr.f32.gmra.mrb[0].mxu0 %v1228
    %v1426 = vpop.f32.mrb[0].mxu0
    %v1427 = vadd.f32 0.0, %v1426
    %v1428 = vpop.f32.mrb[0].mxu0
    %1429 = vmatprep.mubr.f32.mxu0 0.0
    %1430 = vmatmul.mubr.f32.gmra.mrb[0].mxu0 %v1231
    %v1431 = vpop.f32.mrb[0].mxu0
    %v1432 = vadd.f32 0.0, %v1431
    %v1433 = vpop.f32.mrb[0].mxu0
    %1434 = vmatprep.mubr.f32.mxu0 0.0
    %1435 = vmatmul.mubr.f32.gmra.mrb[0].mxu0 %v1234
    %v1436 = vpop.f32.mrb[0].mxu0
    %v1437 = vadd.f32 0.0, %v1436
    %v1438 = vpop.f32.mrb[0].mxu0
    %1439 = vmatprep.mubr.f32.mxu0 0.0
    %1440 = vmatmul.mubr.f32.gmra.mrb[0].mxu0 %v1237
    %v1441 = vpop.f32.mrb[0].mxu0
    %v1442 = vadd.f32 0.0, %v1441
    %v1443 = vpop.f32.mrb[0].mxu0
    %1444 = vmatprep.mubr.f32.mxu0 0.0
    %1445 = vmatmul.mubr.f32.gmra.mrb[0].mxu0 %v1240
    %v1446 = vpop.f32.mrb[0].mxu0
    %v1447 = vadd.f32 0.0, %v1446
    %v1448 = vpop.f32.mrb[0].mxu0
    %1449 = vmatprep.mubr.f32.mxu0 0.0
    %1450 = vmatmul.mubr.f32.gmra.mrb[0].mxu0 %v1243
    %v1451 = vpop.f32.mrb[0].mxu0
    %v1452 = vadd.f32 0.0, %v1451
    %v1453 = vpop.f32.mrb[0].mxu0
    %1454 = vmatprep.mubr.f32.mxu0 0.0
    %1455 = vmatmul.mubr.f32.gmra.mrb[0].mxu0 %v1246
    %v1456 = vpop.f32.mrb[0].mxu0
    %v1457 = vadd.f32 0.0, %v1456
    %v1458 = vpop.f32.mrb[0].mxu0
    %1459 = vmatprep.mubr.f32.mxu0 0.0
    %1460 = vmatmul.mubr.f32.gmra.mrb[0].mxu0 %v1249
    %v1461 = vpop.f32.mrb[0].mxu0
    %v1462 = vadd.f32 0.0, %v1461
    %v1463 = vpop.f32.mrb[0].mxu0
    %1464 = vmatprep.mubr.f32.mxu0 0.0
    %1465 = vmatmul.mubr.f32.gmra.mrb[0].mxu0 %v1252
    %v1466 = vpop.f32.mrb[0].mxu0
    %v1467 = vadd.f32 0.0, %v1466
    %v1468 = vpop.f32.mrb[0].mxu0
    %1469 = vmatprep.mubr.f32.mxu0 0.0
    %1470 = vmatmul.mubr.f32.gmra.mrb[0].mxu0 %v1255
    %v1471 = vpop.f32.mrb[0].mxu0
    %v1472 = vadd.f32 0.0, %v1471
    %v1473 = vpop.f32.mrb[0].mxu0
    %1474 = vmatprep.mubr.f32.mxu0 0.0
    %1475 = vmatmul.mubr.f32.gmra.mrb[0].mxu0 %v1258
    %v1476 = vpop.f32.mrb[0].mxu0
    %v1477 = vadd.f32 0.0, %v1476
    %v1478 = vpop.f32.mrb[0].mxu0
    %1479 = vmatprep.mubr.f32.mxu0 0.0
    %1480 = vmatmul.mubr.f32.gmra.mrb[0].mxu0 %v1261
    %v1481 = vpop.f32.mrb[0].mxu0
    %v1482 = vadd.f32 0.0, %v1481
    %v1483 = vpop.f32.mrb[0].mxu0
    %1484 = vmatprep.mubr.f32.mxu0 0.0
    %1485 = vmatmul.mubr.f32.gmra.mrb[0].mxu0 %v1264
    %v1486 = vpop.f32.mrb[0].mxu0
    %v1487 = vadd.f32 0.0, %v1486
    %v1488 = vpop.f32.mrb[0].mxu0
    %1489 = vmatprep.mubr.f32.mxu0 0.0
    %1490 = vmatmul.mubr.f32.gmra.mrb[0].mxu0 %v1267
    %v1491 = vpop.f32.mrb[0].mxu0
    %v1492 = vadd.f32 0.0, %v1491
    %v1493 = vpop.f32.mrb[0].mxu0
    %1494 = vmatprep.mubr.f32.mxu0 0.0
    %1495 = vmatmul.mubr.f32.gmra.mrb[0].mxu0 %v1270
    %v1496 = vpop.f32.mrb[0].mxu0
    %v1497 = vadd.f32 0.0, %v1496
    %v1498 = vpop.f32.mrb[0].mxu0
    %1499 = vdwg.mxu0
    %v1500 = vadd.f32 %v1109, %v1342
    %v1501 = vadd.f32 %v1110, %v1347
    %v1502 = vadd.f32 %v1111, %v1352
    %v1503 = vadd.f32 %v1112, %v1357
    %v1504 = vadd.f32 %v1113, %v1362
    %v1505 = vadd.f32 %v1114, %v1367
    %v1506 = vadd.f32 %v1115, %v1372
    %v1507 = vadd.f32 %v1116, %v1377
    %v1508 = vadd.f32 %v1117, %v1382
    %v1509 = vadd.f32 %v1118, %v1387
    %v1510 = vadd.f32 %v1119, %v1392
    %v1511 = vadd.f32 %v1120, %v1397
    %v1512 = vadd.f32 %v1121, %v1402
    %v1513 = vadd.f32 %v1122, %v1407
    %v1514 = vadd.f32 %v1123, %v1412
    %v1515 = vadd.f32 %v1124, %v1417
    %v1516 = vadd.f32 %v1125, %v1422
    %v1517 = vadd.f32 %v1126, %v1427
    %v1518 = vadd.f32 %v1127, %v1432
    %v1519 = vadd.f32 %v1128, %v1437
    %v1520 = vadd.f32 %v1129, %v1442
    %v1521 = vadd.f32 %v1130, %v1447
    %v1522 = vadd.f32 %v1131, %v1452
    %v1523 = vadd.f32 %v1132, %v1457
    %v1524 = vadd.f32 %v1133, %v1462
    %v1525 = vadd.f32 %v1134, %v1467
    %v1526 = vadd.f32 %v1135, %v1472
    %v1527 = vadd.f32 %v1136, %v1477
    %v1528 = vadd.f32 %v1137, %v1482
    %v1529 = vadd.f32 %v1138, %v1487
    %v1530 = vadd.f32 %v1139, %v1492
    %v1531 = vadd.f32 %v1140, %v1497
    %v1532 = vld [vmem:[%s1141 + $0x1] sm:$0xff]
    %v1533 = vld [vmem:[%s1141 + $0x9] sm:$0xff]
    %v1534 = vld [vmem:[%s1141 + $0x19] sm:$0xff]
    %v1535 = vld [vmem:[%s1141 + $0x21] sm:$0xff]
    %v1536 = vld [vmem:[%s1141 + $0x31] sm:$0xff]
    %v1537 = vld [vmem:[%s1141 + $0x39] sm:$0xff]
    %v1538 = vld [vmem:[%s1141 + $0x49] sm:$0xff]
    %v1539 = vld [vmem:[%s1141 + $0x51] sm:$0xff]
    %v1540 = vld [vmem:[%s1141 + $0x61] sm:$0xff]
    %v1541 = vld [vmem:[%s1141 + $0x69] sm:$0xff]
    %v1542 = vld [vmem:[%s1141 + $0x79] sm:$0xff]
    %v1543 = vld [vmem:[%s1141 + $0x81] sm:$0xff]
    %v1544 = vld [vmem:[%s1141 + $0x91] sm:$0xff]
    %v1545 = vld [vmem:[%s1141 + $0x99] sm:$0xff]
    %v1546 = vld [vmem:[%s1141 + $0xa9] sm:$0xff]
    %v1547 = vld [vmem:[%s1141 + $0xb1] sm:$0xff]
    %v1548 = vld [vmem:[%s1141 + $0xc1] sm:$0xff]
    %v1549 = vld [vmem:[%s1141 + $0xc9] sm:$0xff]
    %v1550 = vld [vmem:[%s1141 + $0xd9] sm:$0xff]
    %v1551 = vld [vmem:[%s1141 + $0xe1] sm:$0xff]
    %v1552 = vld [vmem:[%s1141 + $0xf1] sm:$0xff]
    %v1553 = vld [vmem:[%s1141 + $0xf9] sm:$0xff]
    %v1554 = vld [vmem:[%s1141 + $0x109] sm:$0xff]
    %v1555 = vld [vmem:[%s1141 + $0x111] sm:$0xff]
    %v1556 = vld [vmem:[%s1141 + $0x121] sm:$0xff]
    %v1557 = vld [vmem:[%s1141 + $0x129] sm:$0xff]
    %v1558 = vld [vmem:[%s1141 + $0x139] sm:$0xff]
    %v1559 = vld [vmem:[%s1141 + $0x141] sm:$0xff]
    %v1560 = vld [vmem:[%s1141 + $0x151] sm:$0xff]
    %v1561 = vld [vmem:[%s1141 + $0x159] sm:$0xff]
    %v1562 = vld [vmem:[%s1141 + $0x169] sm:$0xff]
    %v1563 = vld [vmem:[%s1141 + $0x171] sm:$0xff]
    %s1564 = scalar_lea.vmem %s1, 16
    %v1565 = vld [vmem:[%s1564] sm:$0xf]
    %v1567 = vsel %vm101, %v1532, 0
    %v1570 = vsel %vm101, %v1533, 0
    %v1573 = vsel %vm101, %v1534, 0
    %v1576 = vsel %vm101, %v1535, 0
    %v1579 = vsel %vm101, %v1536, 0
    %v1582 = vsel %vm101, %v1537, 0
    %v1585 = vsel %vm101, %v1538, 0
    %v1588 = vsel %vm101, %v1539, 0
    %v1591 = vsel %vm101, %v1540, 0
    %v1594 = vsel %vm101, %v1541, 0
    %v1597 = vsel %vm101, %v1542, 0
    %v1600 = vsel %vm101, %v1543, 0
    %v1603 = vsel %vm101, %v1544, 0
    %v1606 = vsel %vm101, %v1545, 0
    %v1609 = vsel %vm101, %v1546, 0
    %v1612 = vsel %vm101, %v1547, 0
    %v1615 = vsel %vm101, %v1548, 0
    %v1618 = vsel %vm101, %v1549, 0
    %v1621 = vsel %vm101, %v1550, 0
    %v1624 = vsel %vm101, %v1551, 0
    %v1627 = vsel %vm101, %v1552, 0
    %v1630 = vsel %vm101, %v1553, 0
    %v1633 = vsel %vm101, %v1554, 0
    %v1636 = vsel %vm101, %v1555, 0
    %v1639 = vsel %vm101, %v1556, 0
    %v1642 = vsel %vm101, %v1557, 0
    %v1645 = vsel %vm101, %v1558, 0
    %v1648 = vsel %vm101, %v1559, 0
    %v1651 = vsel %vm101, %v1560, 0
    %v1654 = vsel %vm101, %v1561, 0
    %v1657 = vsel %vm101, %v1562, 0
    %v1660 = vsel %vm101, %v1563, 0
    %v1663 = vsel %vm198, %v1565, 0
    %1665 = vmatprep.subr.mxu0 0.0
    %1666 = vmatpush1.msra.mxu0 %v1663
    %1667 = vmatprep.subr.mxu0 0.0
    %1668 = vmatpush1.msra.mxu0 0.0
    %1669 = vmatprep.subr.mxu0 0.0
    %1670 = vmatpush1.msra.mxu0 0.0
    %1671 = vmatprep.subr.mxu0 0.0
    %1672 = vmatpush1.msra.mxu0 0.0
    %1673 = vmatprep.subr.mxu0 0.0
    %1674 = vmatpush1.msra.mxu0 0.0
    %1675 = vmatprep.subr.mxu0 0.0
    %1676 = vmatpush1.msra.mxu0 0.0
    %1677 = vmatprep.subr.mxu0 0.0
    %1678 = vmatpush1.msra.mxu0 0.0
    %1679 = vmatprep.subr.mxu0 0.0
    %1680 = vmatpush1.msra.mxu0 0.0
    %1681 = vmatprep.subr.mxu0 0.0
    %1682 = vmatpush1.msra.mxu0 0.0
    %1683 = vmatprep.subr.mxu0 0.0
    %1684 = vmatpush1.msra.mxu0 0.0
    %1685 = vmatprep.subr.mxu0 0.0
    %1686 = vmatpush1.msra.mxu0 0.0
    %1687 = vmatprep.subr.mxu0 0.0
    %1688 = vmatpush1.msra.mxu0 0.0
    %1689 = vmatprep.subr.mxu0 0.0
    %1690 = vmatpush1.msra.mxu0 0.0
    %1691 = vmatprep.subr.mxu0 0.0
    %1692 = vmatpush1.msra.mxu0 0.0
    %1693 = vmatprep.subr.mxu0 0.0
    %1694 = vmatpush1.msra.mxu0 0.0
    %1695 = vmatprep.subr.mxu0 0.0
    %1696 = vmatpush1.msra.mxu0 0.0
    %1697 = vmatprep.subr.mxu0 0.0
    %1698 = vmatpush1.msra.mxu0 0.0
    %1699 = vmatprep.subr.mxu0 0.0
    %1700 = vmatpush1.msra.mxu0 0.0
    %1701 = vmatprep.subr.mxu0 0.0
    %1702 = vmatpush1.msra.mxu0 0.0
    %1703 = vmatprep.subr.mxu0 0.0
    %1704 = vmatpush1.msra.mxu0 0.0
    %1705 = vmatprep.subr.mxu0 0.0
    %1706 = vmatpush1.msra.mxu0 0.0
    %1707 = vmatprep.subr.mxu0 0.0
    %1708 = vmatpush1.msra.mxu0 0.0
    %1709 = vmatprep.subr.mxu0 0.0
    %1710 = vmatpush1.msra.mxu0 0.0
    %1711 = vmatprep.subr.mxu0 0.0
    %1712 = vmatpush1.msra.mxu0 0.0
    %1713 = vmatprep.subr.mxu0 0.0
    %1714 = vmatpush1.msra.mxu0 0.0
    %1715 = vmatprep.subr.mxu0 0.0
    %1716 = vmatpush1.msra.mxu0 0.0
    %1717 = vmatprep.subr.mxu0 0.0
    %1718 = vmatpush1.msra.mxu0 0.0
    %1719 = vmatprep.subr.mxu0 0.0
    %1720 = vmatpush1.msra.mxu0 0.0
    %1721 = vmatprep.subr.mxu0 0.0
    %1722 = vmatpush1.msra.mxu0 0.0
    %1723 = vmatprep.subr.mxu0 0.0
    %1724 = vmatpush1.msra.mxu0 0.0
    %1725 = vmatprep.subr.mxu0 0.0
    %1726 = vmatpush1.msra.mxu0 0.0
    %1727 = vmatprep.subr.mxu0 0.0
    %1728 = vmatpush1.msra.mxu0 0.0
    %1729 = vmatprep.mubr.f32.mxu0 0.0
    %1730 = vmatmul.mubr.f32.gmra.mrb[0].mxu0 %v1567
    %v1731 = vpop.f32.mrb[0].mxu0
    %v1732 = vadd.f32 0.0, %v1731
    %v1733 = vpop.f32.mrb[0].mxu0
    %1734 = vmatprep.mubr.f32.mxu0 0.0
    %1735 = vmatmul.mubr.f32.gmra.mrb[0].mxu0 %v1570
    %v1736 = vpop.f32.mrb[0].mxu0
    %v1737 = vadd.f32 0.0, %v1736
    %v1738 = vpop.f32.mrb[0].mxu0
    %1739 = vmatprep.mubr.f32.mxu0 0.0
    %1740 = vmatmul.mubr.f32.gmra.mrb[0].mxu0 %v1573
    %v1741 = vpop.f32.mrb[0].mxu0
    %v1742 = vadd.f32 0.0, %v1741
    %v1743 = vpop.f32.mrb[0].mxu0
    %1744 = vmatprep.mubr.f32.mxu0 0.0
    %1745 = vmatmul.mubr.f32.gmra.mrb[0].mxu0 %v1576
    %v1746 = vpop.f32.mrb[0].mxu0
    %v1747 = vadd.f32 0.0, %v1746
    %v1748 = vpop.f32.mrb[0].mxu0
    %1749 = vmatprep.mubr.f32.mxu0 0.0
    %1750 = vmatmul.mubr.f32.gmra.mrb[0].mxu0 %v1579
    %v1751 = vpop.f32.mrb[0].mxu0
    %v1752 = vadd.f32 0.0, %v1751
    %v1753 = vpop.f32.mrb[0].mxu0
    %1754 = vmatprep.mubr.f32.mxu0 0.0
    %1755 = vmatmul.mubr.f32.gmra.mrb[0].mxu0 %v1582
    %v1756 = vpop.f32.mrb[0].mxu0
    %v1757 = vadd.f32 0.0, %v1756
    %v1758 = vpop.f32.mrb[0].mxu0
    %1759 = vmatprep.mubr.f32.mxu0 0.0
    %1760 = vmatmul.mubr.f32.gmra.mrb[0].mxu0 %v1585
    %v1761 = vpop.f32.mrb[0].mxu0
    %v1762 = vadd.f32 0.0, %v1761
    %v1763 = vpop.f32.mrb[0].mxu0
    %1764 = vmatprep.mubr.f32.mxu0 0.0
    %1765 = vmatmul.mubr.f32.gmra.mrb[0].mxu0 %v1588
    %v1766 = vpop.f32.mrb[0].mxu0
    %v1767 = vadd.f32 0.0, %v1766
    %v1768 = vpop.f32.mrb[0].mxu0
    %1769 = vmatprep.mubr.f32.mxu0 0.0
    %1770 = vmatmul.mubr.f32.gmra.mrb[0].mxu0 %v1591
    %v1771 = vpop.f32.mrb[0].mxu0
    %v1772 = vadd.f32 0.0, %v1771
    %v1773 = vpop.f32.mrb[0].mxu0
    %1774 = vmatprep.mubr.f32.mxu0 0.0
    %1775 = vmatmul.mubr.f32.gmra.mrb[0].mxu0 %v1594
    %v1776 = vpop.f32.mrb[0].mxu0
    %v1777 = vadd.f32 0.0, %v1776
    %v1778 = vpop.f32.mrb[0].mxu0
    %1779 = vmatprep.mubr.f32.mxu0 0.0
    %1780 = vmatmul.mubr.f32.gmra.mrb[0].mxu0 %v1597
    %v1781 = vpop.f32.mrb[0].mxu0
    %v1782 = vadd.f32 0.0, %v1781
    %v1783 = vpop.f32.mrb[0].mxu0
    %1784 = vmatprep.mubr.f32.mxu0 0.0
    %1785 = vmatmul.mubr.f32.gmra.mrb[0].mxu0 %v1600
    %v1786 = vpop.f32.mrb[0].mxu0
    %v1787 = vadd.f32 0.0, %v1786
    %v1788 = vpop.f32.mrb[0].mxu0
    %1789 = vmatprep.mubr.f32.mxu0 0.0
    %1790 = vmatmul.mubr.f32.gmra.mrb[0].mxu0 %v1603
    %v1791 = vpop.f32.mrb[0].mxu0
    %v1792 = vadd.f32 0.0, %v1791
    %v1793 = vpop.f32.mrb[0].mxu0
    %1794 = vmatprep.mubr.f32.mxu0 0.0
    %1795 = vmatmul.mubr.f32.gmra.mrb[0].mxu0 %v1606
    %v1796 = vpop.f32.mrb[0].mxu0
    %v1797 = vadd.f32 0.0, %v1796
    %v1798 = vpop.f32.mrb[0].mxu0
    %1799 = vmatprep.mubr.f32.mxu0 0.0
    %1800 = vmatmul.mubr.f32.gmra.mrb[0].mxu0 %v1609
    %v1801 = vpop.f32.mrb[0].mxu0
    %v1802 = vadd.f32 0.0, %v1801
    %v1803 = vpop.f32.mrb[0].mxu0
    %1804 = vmatprep.mubr.f32.mxu0 0.0
    %1805 = vmatmul.mubr.f32.gmra.mrb[0].mxu0 %v1612
    %v1806 = vpop.f32.mrb[0].mxu0
    %v1807 = vadd.f32 0.0, %v1806
    %v1808 = vpop.f32.mrb[0].mxu0
    %1809 = vmatprep.mubr.f32.mxu0 0.0
    %1810 = vmatmul.mubr.f32.gmra.mrb[0].mxu0 %v1615
    %v1811 = vpop.f32.mrb[0].mxu0
    %v1812 = vadd.f32 0.0, %v1811
    %v1813 = vpop.f32.mrb[0].mxu0
    %1814 = vmatprep.mubr.f32.mxu0 0.0
    %1815 = vmatmul.mubr.f32.gmra.mrb[0].mxu0 %v1618
    %v1816 = vpop.f32.mrb[0].mxu0
    %v1817 = vadd.f32 0.0, %v1816
    %v1818 = vpop.f32.mrb[0].mxu0
    %1819 = vmatprep.mubr.f32.mxu0 0.0
    %1820 = vmatmul.mubr.f32.gmra.mrb[0].mxu0 %v1621
    %v1821 = vpop.f32.mrb[0].mxu0
    %v1822 = vadd.f32 0.0, %v1821
    %v1823 = vpop.f32.mrb[0].mxu0
    %1824 = vmatprep.mubr.f32.mxu0 0.0
    %1825 = vmatmul.mubr.f32.gmra.mrb[0].mxu0 %v1624
    %v1826 = vpop.f32.mrb[0].mxu0
    %v1827 = vadd.f32 0.0, %v1826
    %v1828 = vpop.f32.mrb[0].mxu0
    %1829 = vmatprep.mubr.f32.mxu0 0.0
    %1830 = vmatmul.mubr.f32.gmra.mrb[0].mxu0 %v1627
    %v1831 = vpop.f32.mrb[0].mxu0
    %v1832 = vadd.f32 0.0, %v1831
    %v1833 = vpop.f32.mrb[0].mxu0
    %1834 = vmatprep.mubr.f32.mxu0 0.0
    %1835 = vmatmul.mubr.f32.gmra.mrb[0].mxu0 %v1630
    %v1836 = vpop.f32.mrb[0].mxu0
    %v1837 = vadd.f32 0.0, %v1836
    %v1838 = vpop.f32.mrb[0].mxu0
    %1839 = vmatprep.mubr.f32.mxu0 0.0
    %1840 = vmatmul.mubr.f32.gmra.mrb[0].mxu0 %v1633
    %v1841 = vpop.f32.mrb[0].mxu0
    %v1842 = vadd.f32 0.0, %v1841
    %v1843 = vpop.f32.mrb[0].mxu0
    %1844 = vmatprep.mubr.f32.mxu0 0.0
    %1845 = vmatmul.mubr.f32.gmra.mrb[0].mxu0 %v1636
    %v1846 = vpop.f32.mrb[0].mxu0
    %v1847 = vadd.f32 0.0, %v1846
    %v1848 = vpop.f32.mrb[0].mxu0
    %1849 = vmatprep.mubr.f32.mxu0 0.0
    %1850 = vmatmul.mubr.f32.gmra.mrb[0].mxu0 %v1639
    %v1851 = vpop.f32.mrb[0].mxu0
    %v1852 = vadd.f32 0.0, %v1851
    %v1853 = vpop.f32.mrb[0].mxu0
    %1854 = vmatprep.mubr.f32.mxu0 0.0
    %1855 = vmatmul.mubr.f32.gmra.mrb[0].mxu0 %v1642
    %v1856 = vpop.f32.mrb[0].mxu0
    %v1857 = vadd.f32 0.0, %v1856
    %v1858 = vpop.f32.mrb[0].mxu0
    %1859 = vmatprep.mubr.f32.mxu0 0.0
    %1860 = vmatmul.mubr.f32.gmra.mrb[0].mxu0 %v1645
    %v1861 = vpop.f32.mrb[0].mxu0
    %v1862 = vadd.f32 0.0, %v1861
    %v1863 = vpop.f32.mrb[0].mxu0
    %1864 = vmatprep.mubr.f32.mxu0 0.0
    %1865 = vmatmul.mubr.f32.gmra.mrb[0].mxu0 %v1648
    %v1866 = vpop.f32.mrb[0].mxu0
    %v1867 = vadd.f32 0.0, %v1866
    %v1868 = vpop.f32.mrb[0].mxu0
    %1869 = vmatprep.mubr.f32.mxu0 0.0
    %1870 = vmatmul.mubr.f32.gmra.mrb[0].mxu0 %v1651
    %v1871 = vpop.f32.mrb[0].mxu0
    %v1872 = vadd.f32 0.0, %v1871
    %v1873 = vpop.f32.mrb[0].mxu0
    %1874 = vmatprep.mubr.f32.mxu0 0.0
    %1875 = vmatmul.mubr.f32.gmra.mrb[0].mxu0 %v1654
    %v1876 = vpop.f32.mrb[0].mxu0
    %v1877 = vadd.f32 0.0, %v1876
    %v1878 = vpop.f32.mrb[0].mxu0
    %1879 = vmatprep.mubr.f32.mxu0 0.0
    %1880 = vmatmul.mubr.f32.gmra.mrb[0].mxu0 %v1657
    %v1881 = vpop.f32.mrb[0].mxu0
    %v1882 = vadd.f32 0.0, %v1881
    %v1883 = vpop.f32.mrb[0].mxu0
    %1884 = vmatprep.mubr.f32.mxu0 0.0
    %1885 = vmatmul.mubr.f32.gmra.mrb[0].mxu0 %v1660
    %v1886 = vpop.f32.mrb[0].mxu0
    %v1887 = vadd.f32 0.0, %v1886
    %v1888 = vpop.f32.mrb[0].mxu0
    %1889 = vdwg.mxu0
    %v1890 = vadd.f32 %v1500, %v1732
    %v1891 = vadd.f32 %v1501, %v1737
    %v1892 = vadd.f32 %v1502, %v1742
    %v1893 = vadd.f32 %v1503, %v1747
    %v1894 = vadd.f32 %v1504, %v1752
    %v1895 = vadd.f32 %v1505, %v1757
    %v1896 = vadd.f32 %v1506, %v1762
    %v1897 = vadd.f32 %v1507, %v1767
    %v1898 = vadd.f32 %v1508, %v1772
    %v1899 = vadd.f32 %v1509, %v1777
    %v1900 = vadd.f32 %v1510, %v1782
    %v1901 = vadd.f32 %v1511, %v1787
    %v1902 = vadd.f32 %v1512, %v1792
    %v1903 = vadd.f32 %v1513, %v1797
    %v1904 = vadd.f32 %v1514, %v1802
    %v1905 = vadd.f32 %v1515, %v1807
    %v1906 = vadd.f32 %v1516, %v1812
    %v1907 = vadd.f32 %v1517, %v1817
    %v1908 = vadd.f32 %v1518, %v1822
    %v1909 = vadd.f32 %v1519, %v1827
    %v1910 = vadd.f32 %v1520, %v1832
    %v1911 = vadd.f32 %v1521, %v1837
    %v1912 = vadd.f32 %v1522, %v1842
    %v1913 = vadd.f32 %v1523, %v1847
    %v1914 = vadd.f32 %v1524, %v1852
    %v1915 = vadd.f32 %v1525, %v1857
    %v1916 = vadd.f32 %v1526, %v1862
    %v1917 = vadd.f32 %v1527, %v1867
    %v1918 = vadd.f32 %v1528, %v1872
    %v1919 = vadd.f32 %v1529, %v1877
    %v1920 = vadd.f32 %v1530, %v1882
    %v1921 = vadd.f32 %v1531, %v1887
    %v1922 = vld [vmem:[%s1141 + $0x2] sm:$0xff]
    %v1923 = vld [vmem:[%s1141 + $0xa] sm:$0xff]
    %v1924 = vld [vmem:[%s1141 + $0x1a] sm:$0xff]
    %v1925 = vld [vmem:[%s1141 + $0x22] sm:$0xff]
    %v1926 = vld [vmem:[%s1141 + $0x32] sm:$0xff]
    %v1927 = vld [vmem:[%s1141 + $0x3a] sm:$0xff]
    %v1928 = vld [vmem:[%s1141 + $0x4a] sm:$0xff]
    %v1929 = vld [vmem:[%s1141 + $0x52] sm:$0xff]
    %v1930 = vld [vmem:[%s1141 + $0x62] sm:$0xff]
    %v1931 = vld [vmem:[%s1141 + $0x6a] sm:$0xff]
    %v1932 = vld [vmem:[%s1141 + $0x7a] sm:$0xff]
    %v1933 = vld [vmem:[%s1141 + $0x82] sm:$0xff]
    %v1934 = vld [vmem:[%s1141 + $0x92] sm:$0xff]
    %v1935 = vld [vmem:[%s1141 + $0x9a] sm:$0xff]
    %v1936 = vld [vmem:[%s1141 + $0xaa] sm:$0xff]
    %v1937 = vld [vmem:[%s1141 + $0xb2] sm:$0xff]
    %v1938 = vld [vmem:[%s1141 + $0xc2] sm:$0xff]
    %v1939 = vld [vmem:[%s1141 + $0xca] sm:$0xff]
    %v1940 = vld [vmem:[%s1141 + $0xda] sm:$0xff]
    %v1941 = vld [vmem:[%s1141 + $0xe2] sm:$0xff]
    %v1942 = vld [vmem:[%s1141 + $0xf2] sm:$0xff]
    %v1943 = vld [vmem:[%s1141 + $0xfa] sm:$0xff]
    %v1944 = vld [vmem:[%s1141 + $0x10a] sm:$0xff]
    %v1945 = vld [vmem:[%s1141 + $0x112] sm:$0xff]
    %v1946 = vld [vmem:[%s1141 + $0x122] sm:$0xff]
    %v1947 = vld [vmem:[%s1141 + $0x12a] sm:$0xff]
    %v1948 = vld [vmem:[%s1141 + $0x13a] sm:$0xff]
    %v1949 = vld [vmem:[%s1141 + $0x142] sm:$0xff]
    %v1950 = vld [vmem:[%s1141 + $0x152] sm:$0xff]
    %v1951 = vld [vmem:[%s1141 + $0x15a] sm:$0xff]
    %v1952 = vld [vmem:[%s1141 + $0x16a] sm:$0xff]
    %v1953 = vld [vmem:[%s1141 + $0x172] sm:$0xff]
    %s1954 = scalar_lea.vmem %s1, 20
    %v1955 = vld [vmem:[%s1954] sm:$0xf]
    %v1957 = vsel %vm101, %v1922, 0
    %v1960 = vsel %vm101, %v1923, 0
    %v1963 = vsel %vm101, %v1924, 0
    %v1966 = vsel %vm101, %v1925, 0
    %v1969 = vsel %vm101, %v1926, 0
    %v1972 = vsel %vm101, %v1927, 0
    %v1975 = vsel %vm101, %v1928, 0
    %v1978 = vsel %vm101, %v1929, 0
    %v1981 = vsel %vm101, %v1930, 0
    %v1984 = vsel %vm101, %v1931, 0
    %v1987 = vsel %vm101, %v1932, 0
    %v1990 = vsel %vm101, %v1933, 0
    %v1993 = vsel %vm101, %v1934, 0
    %v1996 = vsel %vm101, %v1935, 0
    %v1999 = vsel %vm101, %v1936, 0
    %v2002 = vsel %vm101, %v1937, 0
    %v2005 = vsel %vm101, %v1938, 0
    %v2008 = vsel %vm101, %v1939, 0
    %v2011 = vsel %vm101, %v1940, 0
    %v2014 = vsel %vm101, %v1941, 0
    %v2017 = vsel %vm101, %v1942, 0
    %v2020 = vsel %vm101, %v1943, 0
    %v2023 = vsel %vm101, %v1944, 0
    %v2026 = vsel %vm101, %v1945, 0
    %v2029 = vsel %vm101, %v1946, 0
    %v2032 = vsel %vm101, %v1947, 0
    %v2035 = vsel %vm101, %v1948, 0
    %v2038 = vsel %vm101, %v1949, 0
    %v2041 = vsel %vm101, %v1950, 0
    %v2044 = vsel %vm101, %v1951, 0
    %v2047 = vsel %vm101, %v1952, 0
    %v2050 = vsel %vm101, %v1953, 0
    %v2053 = vsel %vm198, %v1955, 0
    %2055 = vmatprep.subr.mxu0 0.0
    %2056 = vmatpush1.msra.mxu0 %v2053
    %2057 = vmatprep.subr.mxu0 0.0
    %2058 = vmatpush1.msra.mxu0 0.0
    %2059 = vmatprep.subr.mxu0 0.0
    %2060 = vmatpush1.msra.mxu0 0.0
    %2061 = vmatprep.subr.mxu0 0.0
    %2062 = vmatpush1.msra.mxu0 0.0
    %2063 = vmatprep.subr.mxu0 0.0
    %2064 = vmatpush1.msra.mxu0 0.0
    %2065 = vmatprep.subr.mxu0 0.0
    %2066 = vmatpush1.msra.mxu0 0.0
    %2067 = vmatprep.subr.mxu0 0.0
    %2068 = vmatpush1.msra.mxu0 0.0
    %2069 = vmatprep.subr.mxu0 0.0
    %2070 = vmatpush1.msra.mxu0 0.0
    %2071 = vmatprep.subr.mxu0 0.0
    %2072 = vmatpush1.msra.mxu0 0.0
    %2073 = vmatprep.subr.mxu0 0.0
    %2074 = vmatpush1.msra.mxu0 0.0
    %2075 = vmatprep.subr.mxu0 0.0
    %2076 = vmatpush1.msra.mxu0 0.0
    %2077 = vmatprep.subr.mxu0 0.0
    %2078 = vmatpush1.msra.mxu0 0.0
    %2079 = vmatprep.subr.mxu0 0.0
    %2080 = vmatpush1.msra.mxu0 0.0
    %2081 = vmatprep.subr.mxu0 0.0
    %2082 = vmatpush1.msra.mxu0 0.0
    %2083 = vmatprep.subr.mxu0 0.0
    %2084 = vmatpush1.msra.mxu0 0.0
    %2085 = vmatprep.subr.mxu0 0.0
    %2086 = vmatpush1.msra.mxu0 0.0
    %2087 = vmatprep.subr.mxu0 0.0
    %2088 = vmatpush1.msra.mxu0 0.0
    %2089 = vmatprep.subr.mxu0 0.0
    %2090 = vmatpush1.msra.mxu0 0.0
    %2091 = vmatprep.subr.mxu0 0.0
    %2092 = vmatpush1.msra.mxu0 0.0
    %2093 = vmatprep.subr.mxu0 0.0
    %2094 = vmatpush1.msra.mxu0 0.0
    %2095 = vmatprep.subr.mxu0 0.0
    %2096 = vmatpush1.msra.mxu0 0.0
    %2097 = vmatprep.subr.mxu0 0.0
    %2098 = vmatpush1.msra.mxu0 0.0
    %2099 = vmatprep.subr.mxu0 0.0
    %2100 = vmatpush1.msra.mxu0 0.0
    %2101 = vmatprep.subr.mxu0 0.0
    %2102 = vmatpush1.msra.mxu0 0.0
    %2103 = vmatprep.subr.mxu0 0.0
    %2104 = vmatpush1.msra.mxu0 0.0
    %2105 = vmatprep.subr.mxu0 0.0
    %2106 = vmatpush1.msra.mxu0 0.0
    %2107 = vmatprep.subr.mxu0 0.0
    %2108 = vmatpush1.msra.mxu0 0.0
    %2109 = vmatprep.subr.mxu0 0.0
    %2110 = vmatpush1.msra.mxu0 0.0
    %2111 = vmatprep.subr.mxu0 0.0
    %2112 = vmatpush1.msra.mxu0 0.0
    %2113 = vmatprep.subr.mxu0 0.0
    %2114 = vmatpush1.msra.mxu0 0.0
    %2115 = vmatprep.subr.mxu0 0.0
    %2116 = vmatpush1.msra.mxu0 0.0
    %2117 = vmatprep.subr.mxu0 0.0
    %2118 = vmatpush1.msra.mxu0 0.0
    %2119 = vmatprep.mubr.f32.mxu0 0.0
    %2120 = vmatmul.mubr.f32.gmra.mrb[0].mxu0 %v1957
    %v2121 = vpop.f32.mrb[0].mxu0
    %v2122 = vadd.f32 0.0, %v2121
    %v2123 = vpop.f32.mrb[0].mxu0
    %2124 = vmatprep.mubr.f32.mxu0 0.0
    %2125 = vmatmul.mubr.f32.gmra.mrb[0].mxu0 %v1960
    %v2126 = vpop.f32.mrb[0].mxu0
    %v2127 = vadd.f32 0.0, %v2126
    %v2128 = vpop.f32.mrb[0].mxu0
    %2129 = vmatprep.mubr.f32.mxu0 0.0
    %2130 = vmatmul.mubr.f32.gmra.mrb[0].mxu0 %v1963
    %v2131 = vpop.f32.mrb[0].mxu0
    %v2132 = vadd.f32 0.0, %v2131
    %v2133 = vpop.f32.mrb[0].mxu0
    %2134 = vmatprep.mubr.f32.mxu0 0.0
    %2135 = vmatmul.mubr.f32.gmra.mrb[0].mxu0 %v1966
    %v2136 = vpop.f32.mrb[0].mxu0
    %v2137 = vadd.f32 0.0, %v2136
    %v2138 = vpop.f32.mrb[0].mxu0
    %2139 = vmatprep.mubr.f32.mxu0 0.0
    %2140 = vmatmul.mubr.f32.gmra.mrb[0].mxu0 %v1969
    %v2141 = vpop.f32.mrb[0].mxu0
    %v2142 = vadd.f32 0.0, %v2141
    %v2143 = vpop.f32.mrb[0].mxu0
    %2144 = vmatprep.mubr.f32.mxu0 0.0
    %2145 = vmatmul.mubr.f32.gmra.mrb[0].mxu0 %v1972
    %v2146 = vpop.f32.mrb[0].mxu0
    %v2147 = vadd.f32 0.0, %v2146
    %v2148 = vpop.f32.mrb[0].mxu0
    %2149 = vmatprep.mubr.f32.mxu0 0.0
    %2150 = vmatmul.mubr.f32.gmra.mrb[0].mxu0 %v1975
    %v2151 = vpop.f32.mrb[0].mxu0
    %v2152 = vadd.f32 0.0, %v2151
    %v2153 = vpop.f32.mrb[0].mxu0
    %2154 = vmatprep.mubr.f32.mxu0 0.0
    %2155 = vmatmul.mubr.f32.gmra.mrb[0].mxu0 %v1978
    %v2156 = vpop.f32.mrb[0].mxu0
    %v2157 = vadd.f32 0.0, %v2156
    %v2158 = vpop.f32.mrb[0].mxu0
    %2159 = vmatprep.mubr.f32.mxu0 0.0
    %2160 = vmatmul.mubr.f32.gmra.mrb[0].mxu0 %v1981
    %v2161 = vpop.f32.mrb[0].mxu0
    %v2162 = vadd.f32 0.0, %v2161
    %v2163 = vpop.f32.mrb[0].mxu0
    %2164 = vmatprep.mubr.f32.mxu0 0.0
    %2165 = vmatmul.mubr.f32.gmra.mrb[0].mxu0 %v1984
    %v2166 = vpop.f32.mrb[0].mxu0
    %v2167 = vadd.f32 0.0, %v2166
    %v2168 = vpop.f32.mrb[0].mxu0
    %2169 = vmatprep.mubr.f32.mxu0 0.0
    %2170 = vmatmul.mubr.f32.gmra.mrb[0].mxu0 %v1987
    %v2171 = vpop.f32.mrb[0].mxu0
    %v2172 = vadd.f32 0.0, %v2171
    %v2173 = vpop.f32.mrb[0].mxu0
    %2174 = vmatprep.mubr.f32.mxu0 0.0
    %2175 = vmatmul.mubr.f32.gmra.mrb[0].mxu0 %v1990
    %v2176 = vpop.f32.mrb[0].mxu0
    %v2177 = vadd.f32 0.0, %v2176
    %v2178 = vpop.f32.mrb[0].mxu0
    %2179 = vmatprep.mubr.f32.mxu0 0.0
    %2180 = vmatmul.mubr.f32.gmra.mrb[0].mxu0 %v1993
    %v2181 = vpop.f32.mrb[0].mxu0
    %v2182 = vadd.f32 0.0, %v2181
    %v2183 = vpop.f32.mrb[0].mxu0
    %2184 = vmatprep.mubr.f32.mxu0 0.0
    %2185 = vmatmul.mubr.f32.gmra.mrb[0].mxu0 %v1996
    %v2186 = vpop.f32.mrb[0].mxu0
    %v2187 = vadd.f32 0.0, %v2186
    %v2188 = vpop.f32.mrb[0].mxu0
    %2189 = vmatprep.mubr.f32.mxu0 0.0
    %2190 = vmatmul.mubr.f32.gmra.mrb[0].mxu0 %v1999
    %v2191 = vpop.f32.mrb[0].mxu0
    %v2192 = vadd.f32 0.0, %v2191
    %v2193 = vpop.f32.mrb[0].mxu0
    %2194 = vmatprep.mubr.f32.mxu0 0.0
    %2195 = vmatmul.mubr.f32.gmra.mrb[0].mxu0 %v2002
    %v2196 = vpop.f32.mrb[0].mxu0
    %v2197 = vadd.f32 0.0, %v2196
    %v2198 = vpop.f32.mrb[0].mxu0
    %2199 = vmatprep.mubr.f32.mxu0 0.0
    %2200 = vmatmul.mubr.f32.gmra.mrb[0].mxu0 %v2005
    %v2201 = vpop.f32.mrb[0].mxu0
    %v2202 = vadd.f32 0.0, %v2201
    %v2203 = vpop.f32.mrb[0].mxu0
    %2204 = vmatprep.mubr.f32.mxu0 0.0
    %2205 = vmatmul.mubr.f32.gmra.mrb[0].mxu0 %v2008
    %v2206 = vpop.f32.mrb[0].mxu0
    %v2207 = vadd.f32 0.0, %v2206
    %v2208 = vpop.f32.mrb[0].mxu0
    %2209 = vmatprep.mubr.f32.mxu0 0.0
    %2210 = vmatmul.mubr.f32.gmra.mrb[0].mxu0 %v2011
    %v2211 = vpop.f32.mrb[0].mxu0
    %v2212 = vadd.f32 0.0, %v2211
    %v2213 = vpop.f32.mrb[0].mxu0
    %2214 = vmatprep.mubr.f32.mxu0 0.0
    %2215 = vmatmul.mubr.f32.gmra.mrb[0].mxu0 %v2014
    %v2216 = vpop.f32.mrb[0].mxu0
    %v2217 = vadd.f32 0.0, %v2216
    %v2218 = vpop.f32.mrb[0].mxu0
    %2219 = vmatprep.mubr.f32.mxu0 0.0
    %2220 = vmatmul.mubr.f32.gmra.mrb[0].mxu0 %v2017
    %v2221 = vpop.f32.mrb[0].mxu0
    %v2222 = vadd.f32 0.0, %v2221
    %v2223 = vpop.f32.mrb[0].mxu0
    %2224 = vmatprep.mubr.f32.mxu0 0.0
    %2225 = vmatmul.mubr.f32.gmra.mrb[0].mxu0 %v2020
    %v2226 = vpop.f32.mrb[0].mxu0
    %v2227 = vadd.f32 0.0, %v2226
    %v2228 = vpop.f32.mrb[0].mxu0
    %2229 = vmatprep.mubr.f32.mxu0 0.0
    %2230 = vmatmul.mubr.f32.gmra.mrb[0].mxu0 %v2023
    %v2231 = vpop.f32.mrb[0].mxu0
    %v2232 = vadd.f32 0.0, %v2231
    %v2233 = vpop.f32.mrb[0].mxu0
    %2234 = vmatprep.mubr.f32.mxu0 0.0
    %2235 = vmatmul.mubr.f32.gmra.mrb[0].mxu0 %v2026
    %v2236 = vpop.f32.mrb[0].mxu0
    %v2237 = vadd.f32 0.0, %v2236
    %v2238 = vpop.f32.mrb[0].mxu0
    %2239 = vmatprep.mubr.f32.mxu0 0.0
    %2240 = vmatmul.mubr.f32.gmra.mrb[0].mxu0 %v2029
    %v2241 = vpop.f32.mrb[0].mxu0
    %v2242 = vadd.f32 0.0, %v2241
    %v2243 = vpop.f32.mrb[0].mxu0
    %2244 = vmatprep.mubr.f32.mxu0 0.0
    %2245 = vmatmul.mubr.f32.gmra.mrb[0].mxu0 %v2032
    %v2246 = vpop.f32.mrb[0].mxu0
    %v2247 = vadd.f32 0.0, %v2246
    %v2248 = vpop.f32.mrb[0].mxu0
    %2249 = vmatprep.mubr.f32.mxu0 0.0
    %2250 = vmatmul.mubr.f32.gmra.mrb[0].mxu0 %v2035
    %v2251 = vpop.f32.mrb[0].mxu0
    %v2252 = vadd.f32 0.0, %v2251
    %v2253 = vpop.f32.mrb[0].mxu0
    %2254 = vmatprep.mubr.f32.mxu0 0.0
    %2255 = vmatmul.mubr.f32.gmra.mrb[0].mxu0 %v2038
    %v2256 = vpop.f32.mrb[0].mxu0
    %v2257 = vadd.f32 0.0, %v2256
    %v2258 = vpop.f32.mrb[0].mxu0
    %2259 = vmatprep.mubr.f32.mxu0 0.0
    %2260 = vmatmul.mubr.f32.gmra.mrb[0].mxu0 %v2041
    %v2261 = vpop.f32.mrb[0].mxu0
    %v2262 = vadd.f32 0.0, %v2261
    %v2263 = vpop.f32.mrb[0].mxu0
    %2264 = vmatprep.mubr.f32.mxu0 0.0
    %2265 = vmatmul.mubr.f32.gmra.mrb[0].mxu0 %v2044
    %v2266 = vpop.f32.mrb[0].mxu0
    %v2267 = vadd.f32 0.0, %v2266
    %v2268 = vpop.f32.mrb[0].mxu0
    %2269 = vmatprep.mubr.f32.mxu0 0.0
    %2270 = vmatmul.mubr.f32.gmra.mrb[0].mxu0 %v2047
    %v2271 = vpop.f32.mrb[0].mxu0
    %v2272 = vadd.f32 0.0, %v2271
    %v2273 = vpop.f32.mrb[0].mxu0
    %2274 = vmatprep.mubr.f32.mxu0 0.0
    %2275 = vmatmul.mubr.f32.gmra.mrb[0].mxu0 %v2050
    %v2276 = vpop.f32.mrb[0].mxu0
    %v2277 = vadd.f32 0.0, %v2276
    %v2278 = vpop.f32.mrb[0].mxu0
    %2279 = vdwg.mxu0
    %v2280 = vadd.f32 %v1890, %v2122
    %v2281 = vadd.f32 %v1891, %v2127
    %v2282 = vadd.f32 %v1892, %v2132
    %v2283 = vadd.f32 %v1893, %v2137
    %v2284 = vadd.f32 %v1894, %v2142
    %v2285 = vadd.f32 %v1895, %v2147
    %v2286 = vadd.f32 %v1896, %v2152
    %v2287 = vadd.f32 %v1897, %v2157
    %v2288 = vadd.f32 %v1898, %v2162
    %v2289 = vadd.f32 %v1899, %v2167
    %v2290 = vadd.f32 %v1900, %v2172
    %v2291 = vadd.f32 %v1901, %v2177
    %v2292 = vadd.f32 %v1902, %v2182
    %v2293 = vadd.f32 %v1903, %v2187
    %v2294 = vadd.f32 %v1904, %v2192
    %v2295 = vadd.f32 %v1905, %v2197
    %v2296 = vadd.f32 %v1906, %v2202
    %v2297 = vadd.f32 %v1907, %v2207
    %v2298 = vadd.f32 %v1908, %v2212
    %v2299 = vadd.f32 %v1909, %v2217
    %v2300 = vadd.f32 %v1910, %v2222
    %v2301 = vadd.f32 %v1911, %v2227
    %v2302 = vadd.f32 %v1912, %v2232
    %v2303 = vadd.f32 %v1913, %v2237
    %v2304 = vadd.f32 %v1914, %v2242
    %v2305 = vadd.f32 %v1915, %v2247
    %v2306 = vadd.f32 %v1916, %v2252
    %v2307 = vadd.f32 %v1917, %v2257
    %v2308 = vadd.f32 %v1918, %v2262
    %v2309 = vadd.f32 %v1919, %v2267
    %v2310 = vadd.f32 %v1920, %v2272
    %v2311 = vadd.f32 %v1921, %v2277
    %s2312 = scalar_lea.vmem %s0, 48
    %v2313 = vld [vmem:[%s2312] sm:$0xff]
    %v2314 = vld [vmem:[%s2312 + $0x8] sm:$0xff]
    %v2315 = vld [vmem:[%s2312 + $0x18] sm:$0xff]
    %v2316 = vld [vmem:[%s2312 + $0x20] sm:$0xff]
    %v2317 = vld [vmem:[%s2312 + $0x30] sm:$0xff]
    %v2318 = vld [vmem:[%s2312 + $0x38] sm:$0xff]
    %v2319 = vld [vmem:[%s2312 + $0x48] sm:$0xff]
    %v2320 = vld [vmem:[%s2312 + $0x50] sm:$0xff]
    %v2321 = vld [vmem:[%s2312 + $0x60] sm:$0xff]
    %v2322 = vld [vmem:[%s2312 + $0x68] sm:$0xff]
    %v2323 = vld [vmem:[%s2312 + $0x78] sm:$0xff]
    %v2324 = vld [vmem:[%s2312 + $0x80] sm:$0xff]
    %v2325 = vld [vmem:[%s2312 + $0x90] sm:$0xff]
    %v2326 = vld [vmem:[%s2312 + $0x98] sm:$0xff]
    %v2327 = vld [vmem:[%s2312 + $0xa8] sm:$0xff]
    %v2328 = vld [vmem:[%s2312 + $0xb0] sm:$0xff]
    %v2329 = vld [vmem:[%s2312 + $0xc0] sm:$0xff]
    %v2330 = vld [vmem:[%s2312 + $0xc8] sm:$0xff]
    %v2331 = vld [vmem:[%s2312 + $0xd8] sm:$0xff]
    %v2332 = vld [vmem:[%s2312 + $0xe0] sm:$0xff]
    %v2333 = vld [vmem:[%s2312 + $0xf0] sm:$0xff]
    %v2334 = vld [vmem:[%s2312 + $0xf8] sm:$0xff]
    %v2335 = vld [vmem:[%s2312 + $0x108] sm:$0xff]
    %v2336 = vld [vmem:[%s2312 + $0x110] sm:$0xff]
    %v2337 = vld [vmem:[%s2312 + $0x120] sm:$0xff]
    %v2338 = vld [vmem:[%s2312 + $0x128] sm:$0xff]
    %v2339 = vld [vmem:[%s2312 + $0x138] sm:$0xff]
    %v2340 = vld [vmem:[%s2312 + $0x140] sm:$0xff]
    %v2341 = vld [vmem:[%s2312 + $0x150] sm:$0xff]
    %v2342 = vld [vmem:[%s2312 + $0x158] sm:$0xff]
    %v2343 = vld [vmem:[%s2312 + $0x168] sm:$0xff]
    %v2344 = vld [vmem:[%s2312 + $0x170] sm:$0xff]
    %s2345 = scalar_lea.vmem %s1, 24
    %v2346 = vld [vmem:[%s2345] sm:$0xf]
    %v2348 = vsel %vm101, %v2313, 0
    %v2351 = vsel %vm101, %v2314, 0
    %v2354 = vsel %vm101, %v2315, 0
    %v2357 = vsel %vm101, %v2316, 0
    %v2360 = vsel %vm101, %v2317, 0
    %v2363 = vsel %vm101, %v2318, 0
    %v2366 = vsel %vm101, %v2319, 0
    %v2369 = vsel %vm101, %v2320, 0
    %v2372 = vsel %vm101, %v2321, 0
    %v2375 = vsel %vm101, %v2322, 0
    %v2378 = vsel %vm101, %v2323, 0
    %v2381 = vsel %vm101, %v2324, 0
    %v2384 = vsel %vm101, %v2325, 0
    %v2387 = vsel %vm101, %v2326, 0
    %v2390 = vsel %vm101, %v2327, 0
    %v2393 = vsel %vm101, %v2328, 0
    %v2396 = vsel %vm101, %v2329, 0
    %v2399 = vsel %vm101, %v2330, 0
    %v2402 = vsel %vm101, %v2331, 0
    %v2405 = vsel %vm101, %v2332, 0
    %v2408 = vsel %vm101, %v2333, 0
    %v2411 = vsel %vm101, %v2334, 0
    %v2414 = vsel %vm101, %v2335, 0
    %v2417 = vsel %vm101, %v2336, 0
    %v2420 = vsel %vm101, %v2337, 0
    %v2423 = vsel %vm101, %v2338, 0
    %v2426 = vsel %vm101, %v2339, 0
    %v2429 = vsel %vm101, %v2340, 0
    %v2432 = vsel %vm101, %v2341, 0
    %v2435 = vsel %vm101, %v2342, 0
    %v2438 = vsel %vm101, %v2343, 0
    %v2441 = vsel %vm101, %v2344, 0
    %v2444 = vsel %vm198, %v2346, 0
    %2446 = vmatprep.subr.mxu0 0.0
    %2447 = vmatpush1.msra.mxu0 %v2444
    %2448 = vmatprep.subr.mxu0 0.0
    %2449 = vmatpush1.msra.mxu0 0.0
    %2450 = vmatprep.subr.mxu0 0.0
    %2451 = vmatpush1.msra.mxu0 0.0
    %2452 = vmatprep.subr.mxu0 0.0
    %2453 = vmatpush1.msra.mxu0 0.0
    %2454 = vmatprep.subr.mxu0 0.0
    %2455 = vmatpush1.msra.mxu0 0.0
    %2456 = vmatprep.subr.mxu0 0.0
    %2457 = vmatpush1.msra.mxu0 0.0
    %2458 = vmatprep.subr.mxu0 0.0
    %2459 = vmatpush1.msra.mxu0 0.0
    %2460 = vmatprep.subr.mxu0 0.0
    %2461 = vmatpush1.msra.mxu0 0.0
    %2462 = vmatprep.subr.mxu0 0.0
    %2463 = vmatpush1.msra.mxu0 0.0
    %2464 = vmatprep.subr.mxu0 0.0
    %2465 = vmatpush1.msra.mxu0 0.0
    %2466 = vmatprep.subr.mxu0 0.0
    %2467 = vmatpush1.msra.mxu0 0.0
    %2468 = vmatprep.subr.mxu0 0.0
    %2469 = vmatpush1.msra.mxu0 0.0
    %2470 = vmatprep.subr.mxu0 0.0
    %2471 = vmatpush1.msra.mxu0 0.0
    %2472 = vmatprep.subr.mxu0 0.0
    %2473 = vmatpush1.msra.mxu0 0.0
    %2474 = vmatprep.subr.mxu0 0.0
    %2475 = vmatpush1.msra.mxu0 0.0
    %2476 = vmatprep.subr.mxu0 0.0
    %2477 = vmatpush1.msra.mxu0 0.0
    %2478 = vmatprep.subr.mxu0 0.0
    %2479 = vmatpush1.msra.mxu0 0.0
    %2480 = vmatprep.subr.mxu0 0.0
    %2481 = vmatpush1.msra.mxu0 0.0
    %2482 = vmatprep.subr.mxu0 0.0
    %2483 = vmatpush1.msra.mxu0 0.0
    %2484 = vmatprep.subr.mxu0 0.0
    %2485 = vmatpush1.msra.mxu0 0.0
    %2486 = vmatprep.subr.mxu0 0.0
    %2487 = vmatpush1.msra.mxu0 0.0
    %2488 = vmatprep.subr.mxu0 0.0
    %2489 = vmatpush1.msra.mxu0 0.0
    %2490 = vmatprep.subr.mxu0 0.0
    %2491 = vmatpush1.msra.mxu0 0.0
    %2492 = vmatprep.subr.mxu0 0.0
    %2493 = vmatpush1.msra.mxu0 0.0
    %2494 = vmatprep.subr.mxu0 0.0
    %2495 = vmatpush1.msra.mxu0 0.0
    %2496 = vmatprep.subr.mxu0 0.0
    %2497 = vmatpush1.msra.mxu0 0.0
    %2498 = vmatprep.subr.mxu0 0.0
    %2499 = vmatpush1.msra.mxu0 0.0
    %2500 = vmatprep.subr.mxu0 0.0
    %2501 = vmatpush1.msra.mxu0 0.0
    %2502 = vmatprep.subr.mxu0 0.0
    %2503 = vmatpush1.msra.mxu0 0.0
    %2504 = vmatprep.subr.mxu0 0.0
    %2505 = vmatpush1.msra.mxu0 0.0
    %2506 = vmatprep.subr.mxu0 0.0
    %2507 = vmatpush1.msra.mxu0 0.0
    %2508 = vmatprep.subr.mxu0 0.0
    %2509 = vmatpush1.msra.mxu0 0.0
    %2510 = vmatprep.mubr.f32.mxu0 0.0
    %2511 = vmatmul.mubr.f32.gmra.mrb[0].mxu0 %v2348
    %v2512 = vpop.f32.mrb[0].mxu0
    %v2513 = vadd.f32 0.0, %v2512
    %v2514 = vpop.f32.mrb[0].mxu0
    %2515 = vmatprep.mubr.f32.mxu0 0.0
    %2516 = vmatmul.mubr.f32.gmra.mrb[0].mxu0 %v2351
    %v2517 = vpop.f32.mrb[0].mxu0
    %v2518 = vadd.f32 0.0, %v2517
    %v2519 = vpop.f32.mrb[0].mxu0
    %2520 = vmatprep.mubr.f32.mxu0 0.0
    %2521 = vmatmul.mubr.f32.gmra.mrb[0].mxu0 %v2354
    %v2522 = vpop.f32.mrb[0].mxu0
    %v2523 = vadd.f32 0.0, %v2522
    %v2524 = vpop.f32.mrb[0].mxu0
    %2525 = vmatprep.mubr.f32.mxu0 0.0
    %2526 = vmatmul.mubr.f32.gmra.mrb[0].mxu0 %v2357
    %v2527 = vpop.f32.mrb[0].mxu0
    %v2528 = vadd.f32 0.0, %v2527
    %v2529 = vpop.f32.mrb[0].mxu0
    %2530 = vmatprep.mubr.f32.mxu0 0.0
    %2531 = vmatmul.mubr.f32.gmra.mrb[0].mxu0 %v2360
    %v2532 = vpop.f32.mrb[0].mxu0
    %v2533 = vadd.f32 0.0, %v2532
    %v2534 = vpop.f32.mrb[0].mxu0
    %2535 = vmatprep.mubr.f32.mxu0 0.0
    %2536 = vmatmul.mubr.f32.gmra.mrb[0].mxu0 %v2363
    %v2537 = vpop.f32.mrb[0].mxu0
    %v2538 = vadd.f32 0.0, %v2537
    %v2539 = vpop.f32.mrb[0].mxu0
    %2540 = vmatprep.mubr.f32.mxu0 0.0
    %2541 = vmatmul.mubr.f32.gmra.mrb[0].mxu0 %v2366
    %v2542 = vpop.f32.mrb[0].mxu0
    %v2543 = vadd.f32 0.0, %v2542
    %v2544 = vpop.f32.mrb[0].mxu0
    %2545 = vmatprep.mubr.f32.mxu0 0.0
    %2546 = vmatmul.mubr.f32.gmra.mrb[0].mxu0 %v2369
    %v2547 = vpop.f32.mrb[0].mxu0
    %v2548 = vadd.f32 0.0, %v2547
    %v2549 = vpop.f32.mrb[0].mxu0
    %2550 = vmatprep.mubr.f32.mxu0 0.0
    %2551 = vmatmul.mubr.f32.gmra.mrb[0].mxu0 %v2372
    %v2552 = vpop.f32.mrb[0].mxu0
    %v2553 = vadd.f32 0.0, %v2552
    %v2554 = vpop.f32.mrb[0].mxu0
    %2555 = vmatprep.mubr.f32.mxu0 0.0
    %2556 = vmatmul.mubr.f32.gmra.mrb[0].mxu0 %v2375
    %v2557 = vpop.f32.mrb[0].mxu0
    %v2558 = vadd.f32 0.0, %v2557
    %v2559 = vpop.f32.mrb[0].mxu0
    %2560 = vmatprep.mubr.f32.mxu0 0.0
    %2561 = vmatmul.mubr.f32.gmra.mrb[0].mxu0 %v2378
    %v2562 = vpop.f32.mrb[0].mxu0
    %v2563 = vadd.f32 0.0, %v2562
    %v2564 = vpop.f32.mrb[0].mxu0
    %2565 = vmatprep.mubr.f32.mxu0 0.0
    %2566 = vmatmul.mubr.f32.gmra.mrb[0].mxu0 %v2381
    %v2567 = vpop.f32.mrb[0].mxu0
    %v2568 = vadd.f32 0.0, %v2567
    %v2569 = vpop.f32.mrb[0].mxu0
    %2570 = vmatprep.mubr.f32.mxu0 0.0
    %2571 = vmatmul.mubr.f32.gmra.mrb[0].mxu0 %v2384
    %v2572 = vpop.f32.mrb[0].mxu0
    %v2573 = vadd.f32 0.0, %v2572
    %v2574 = vpop.f32.mrb[0].mxu0
    %2575 = vmatprep.mubr.f32.mxu0 0.0
    %2576 = vmatmul.mubr.f32.gmra.mrb[0].mxu0 %v2387
    %v2577 = vpop.f32.mrb[0].mxu0
    %v2578 = vadd.f32 0.0, %v2577
    %v2579 = vpop.f32.mrb[0].mxu0
    %2580 = vmatprep.mubr.f32.mxu0 0.0
    %2581 = vmatmul.mubr.f32.gmra.mrb[0].mxu0 %v2390
    %v2582 = vpop.f32.mrb[0].mxu0
    %v2583 = vadd.f32 0.0, %v2582
    %v2584 = vpop.f32.mrb[0].mxu0
    %2585 = vmatprep.mubr.f32.mxu0 0.0
    %2586 = vmatmul.mubr.f32.gmra.mrb[0].mxu0 %v2393
    %v2587 = vpop.f32.mrb[0].mxu0
    %v2588 = vadd.f32 0.0, %v2587
    %v2589 = vpop.f32.mrb[0].mxu0
    %2590 = vmatprep.mubr.f32.mxu0 0.0
    %2591 = vmatmul.mubr.f32.gmra.mrb[0].mxu0 %v2396
    %v2592 = vpop.f32.mrb[0].mxu0
    %v2593 = vadd.f32 0.0, %v2592
    %v2594 = vpop.f32.mrb[0].mxu0
    %2595 = vmatprep.mubr.f32.mxu0 0.0
    %2596 = vmatmul.mubr.f32.gmra.mrb[0].mxu0 %v2399
    %v2597 = vpop.f32.mrb[0].mxu0
    %v2598 = vadd.f32 0.0, %v2597
    %v2599 = vpop.f32.mrb[0].mxu0
    %2600 = vmatprep.mubr.f32.mxu0 0.0
    %2601 = vmatmul.mubr.f32.gmra.mrb[0].mxu0 %v2402
    %v2602 = vpop.f32.mrb[0].mxu0
    %v2603 = vadd.f32 0.0, %v2602
    %v2604 = vpop.f32.mrb[0].mxu0
    %2605 = vmatprep.mubr.f32.mxu0 0.0
    %2606 = vmatmul.mubr.f32.gmra.mrb[0].mxu0 %v2405
    %v2607 = vpop.f32.mrb[0].mxu0
    %v2608 = vadd.f32 0.0, %v2607
    %v2609 = vpop.f32.mrb[0].mxu0
    %2610 = vmatprep.mubr.f32.mxu0 0.0
    %2611 = vmatmul.mubr.f32.gmra.mrb[0].mxu0 %v2408
    %v2612 = vpop.f32.mrb[0].mxu0
    %v2613 = vadd.f32 0.0, %v2612
    %v2614 = vpop.f32.mrb[0].mxu0
    %2615 = vmatprep.mubr.f32.mxu0 0.0
    %2616 = vmatmul.mubr.f32.gmra.mrb[0].mxu0 %v2411
    %v2617 = vpop.f32.mrb[0].mxu0
    %v2618 = vadd.f32 0.0, %v2617
    %v2619 = vpop.f32.mrb[0].mxu0
    %2620 = vmatprep.mubr.f32.mxu0 0.0
    %2621 = vmatmul.mubr.f32.gmra.mrb[0].mxu0 %v2414
    %v2622 = vpop.f32.mrb[0].mxu0
    %v2623 = vadd.f32 0.0, %v2622
    %v2624 = vpop.f32.mrb[0].mxu0
    %2625 = vmatprep.mubr.f32.mxu0 0.0
    %2626 = vmatmul.mubr.f32.gmra.mrb[0].mxu0 %v2417
    %v2627 = vpop.f32.mrb[0].mxu0
    %v2628 = vadd.f32 0.0, %v2627
    %v2629 = vpop.f32.mrb[0].mxu0
    %2630 = vmatprep.mubr.f32.mxu0 0.0
    %2631 = vmatmul.mubr.f32.gmra.mrb[0].mxu0 %v2420
    %v2632 = vpop.f32.mrb[0].mxu0
    %v2633 = vadd.f32 0.0, %v2632
    %v2634 = vpop.f32.mrb[0].mxu0
    %2635 = vmatprep.mubr.f32.mxu0 0.0
    %2636 = vmatmul.mubr.f32.gmra.mrb[0].mxu0 %v2423
    %v2637 = vpop.f32.mrb[0].mxu0
    %v2638 = vadd.f32 0.0, %v2637
    %v2639 = vpop.f32.mrb[0].mxu0
    %2640 = vmatprep.mubr.f32.mxu0 0.0
    %2641 = vmatmul.mubr.f32.gmra.mrb[0].mxu0 %v2426
    %v2642 = vpop.f32.mrb[0].mxu0
    %v2643 = vadd.f32 0.0, %v2642
    %v2644 = vpop.f32.mrb[0].mxu0
    %2645 = vmatprep.mubr.f32.mxu0 0.0
    %2646 = vmatmul.mubr.f32.gmra.mrb[0].mxu0 %v2429
    %v2647 = vpop.f32.mrb[0].mxu0
    %v2648 = vadd.f32 0.0, %v2647
    %v2649 = vpop.f32.mrb[0].mxu0
    %2650 = vmatprep.mubr.f32.mxu0 0.0
    %2651 = vmatmul.mubr.f32.gmra.mrb[0].mxu0 %v2432
    %v2652 = vpop.f32.mrb[0].mxu0
    %v2653 = vadd.f32 0.0, %v2652
    %v2654 = vpop.f32.mrb[0].mxu0
    %2655 = vmatprep.mubr.f32.mxu0 0.0
    %2656 = vmatmul.mubr.f32.gmra.mrb[0].mxu0 %v2435
    %v2657 = vpop.f32.mrb[0].mxu0
    %v2658 = vadd.f32 0.0, %v2657
    %v2659 = vpop.f32.mrb[0].mxu0
    %2660 = vmatprep.mubr.f32.mxu0 0.0
    %2661 = vmatmul.mubr.f32.gmra.mrb[0].mxu0 %v2438
    %v2662 = vpop.f32.mrb[0].mxu0
    %v2663 = vadd.f32 0.0, %v2662
    %v2664 = vpop.f32.mrb[0].mxu0
    %2665 = vmatprep.mubr.f32.mxu0 0.0
    %2666 = vmatmul.mubr.f32.gmra.mrb[0].mxu0 %v2441
    %v2667 = vpop.f32.mrb[0].mxu0
    %v2668 = vadd.f32 0.0, %v2667
    %v2669 = vpop.f32.mrb[0].mxu0
    %2670 = vdwg.mxu0
    %v2671 = vadd.f32 %v2280, %v2513
    %v2672 = vadd.f32 %v2281, %v2518
    %v2673 = vadd.f32 %v2282, %v2523
    %v2674 = vadd.f32 %v2283, %v2528
    %v2675 = vadd.f32 %v2284, %v2533
    %v2676 = vadd.f32 %v2285, %v2538
    %v2677 = vadd.f32 %v2286, %v2543
    %v2678 = vadd.f32 %v2287, %v2548
    %v2679 = vadd.f32 %v2288, %v2553
    %v2680 = vadd.f32 %v2289, %v2558
    %v2681 = vadd.f32 %v2290, %v2563
    %v2682 = vadd.f32 %v2291, %v2568
    %v2683 = vadd.f32 %v2292, %v2573
    %v2684 = vadd.f32 %v2293, %v2578
    %v2685 = vadd.f32 %v2294, %v2583
    %v2686 = vadd.f32 %v2295, %v2588
    %v2687 = vadd.f32 %v2296, %v2593
    %v2688 = vadd.f32 %v2297, %v2598
    %v2689 = vadd.f32 %v2298, %v2603
    %v2690 = vadd.f32 %v2299, %v2608
    %v2691 = vadd.f32 %v2300, %v2613
    %v2692 = vadd.f32 %v2301, %v2618
    %v2693 = vadd.f32 %v2302, %v2623
    %v2694 = vadd.f32 %v2303, %v2628
    %v2695 = vadd.f32 %v2304, %v2633
    %v2696 = vadd.f32 %v2305, %v2638
    %v2697 = vadd.f32 %v2306, %v2643
    %v2698 = vadd.f32 %v2307, %v2648
    %v2699 = vadd.f32 %v2308, %v2653
    %v2700 = vadd.f32 %v2309, %v2658
    %v2701 = vadd.f32 %v2310, %v2663
    %v2702 = vadd.f32 %v2311, %v2668
    %v2703 = vld [vmem:[%s2312 + $0x1] sm:$0xff]
    %v2704 = vld [vmem:[%s2312 + $0x9] sm:$0xff]
    %v2705 = vld [vmem:[%s2312 + $0x19] sm:$0xff]
    %v2706 = vld [vmem:[%s2312 + $0x21] sm:$0xff]
    %v2707 = vld [vmem:[%s2312 + $0x31] sm:$0xff]
    %v2708 = vld [vmem:[%s2312 + $0x39] sm:$0xff]
    %v2709 = vld [vmem:[%s2312 + $0x49] sm:$0xff]
    %v2710 = vld [vmem:[%s2312 + $0x51] sm:$0xff]
    %v2711 = vld [vmem:[%s2312 + $0x61] sm:$0xff]
    %v2712 = vld [vmem:[%s2312 + $0x69] sm:$0xff]
    %v2713 = vld [vmem:[%s2312 + $0x79] sm:$0xff]
    %v2714 = vld [vmem:[%s2312 + $0x81] sm:$0xff]
    %v2715 = vld [vmem:[%s2312 + $0x91] sm:$0xff]
    %v2716 = vld [vmem:[%s2312 + $0x99] sm:$0xff]
    %v2717 = vld [vmem:[%s2312 + $0xa9] sm:$0xff]
    %v2718 = vld [vmem:[%s2312 + $0xb1] sm:$0xff]
    %v2719 = vld [vmem:[%s2312 + $0xc1] sm:$0xff]
    %v2720 = vld [vmem:[%s2312 + $0xc9] sm:$0xff]
    %v2721 = vld [vmem:[%s2312 + $0xd9] sm:$0xff]
    %v2722 = vld [vmem:[%s2312 + $0xe1] sm:$0xff]
    %v2723 = vld [vmem:[%s2312 + $0xf1] sm:$0xff]
    %v2724 = vld [vmem:[%s2312 + $0xf9] sm:$0xff]
    %v2725 = vld [vmem:[%s2312 + $0x109] sm:$0xff]
    %v2726 = vld [vmem:[%s2312 + $0x111] sm:$0xff]
    %v2727 = vld [vmem:[%s2312 + $0x121] sm:$0xff]
    %v2728 = vld [vmem:[%s2312 + $0x129] sm:$0xff]
    %v2729 = vld [vmem:[%s2312 + $0x139] sm:$0xff]
    %v2730 = vld [vmem:[%s2312 + $0x141] sm:$0xff]
    %v2731 = vld [vmem:[%s2312 + $0x151] sm:$0xff]
    %v2732 = vld [vmem:[%s2312 + $0x159] sm:$0xff]
    %v2733 = vld [vmem:[%s2312 + $0x169] sm:$0xff]
    %v2734 = vld [vmem:[%s2312 + $0x171] sm:$0xff]
    %s2735 = scalar_lea.vmem %s1, 28
    %v2736 = vld [vmem:[%s2735] sm:$0xf]
    %v2738 = vsel %vm101, %v2703, 0
    %v2741 = vsel %vm101, %v2704, 0
    %v2744 = vsel %vm101, %v2705, 0
    %v2747 = vsel %vm101, %v2706, 0
    %v2750 = vsel %vm101, %v2707, 0
    %v2753 = vsel %vm101, %v2708, 0
    %v2756 = vsel %vm101, %v2709, 0
    %v2759 = vsel %vm101, %v2710, 0
    %v2762 = vsel %vm101, %v2711, 0
    %v2765 = vsel %vm101, %v2712, 0
    %v2768 = vsel %vm101, %v2713, 0
    %v2771 = vsel %vm101, %v2714, 0
    %v2774 = vsel %vm101, %v2715, 0
    %v2777 = vsel %vm101, %v2716, 0
    %v2780 = vsel %vm101, %v2717, 0
    %v2783 = vsel %vm101, %v2718, 0
    %v2786 = vsel %vm101, %v2719, 0
    %v2789 = vsel %vm101, %v2720, 0
    %v2792 = vsel %vm101, %v2721, 0
    %v2795 = vsel %vm101, %v2722, 0
    %v2798 = vsel %vm101, %v2723, 0
    %v2801 = vsel %vm101, %v2724, 0
    %v2804 = vsel %vm101, %v2725, 0
    %v2807 = vsel %vm101, %v2726, 0
    %v2810 = vsel %vm101, %v2727, 0
    %v2813 = vsel %vm101, %v2728, 0
    %v2816 = vsel %vm101, %v2729, 0
    %v2819 = vsel %vm101, %v2730, 0
    %v2822 = vsel %vm101, %v2731, 0
    %v2825 = vsel %vm101, %v2732, 0
    %v2828 = vsel %vm101, %v2733, 0
    %v2831 = vsel %vm101, %v2734, 0
    %v2834 = vsel %vm198, %v2736, 0
    %2836 = vmatprep.subr.mxu0 0.0
    %2837 = vmatpush1.msra.mxu0 %v2834
    %2838 = vmatprep.subr.mxu0 0.0
    %2839 = vmatpush1.msra.mxu0 0.0
    %2840 = vmatprep.subr.mxu0 0.0
    %2841 = vmatpush1.msra.mxu0 0.0
    %2842 = vmatprep.subr.mxu0 0.0
    %2843 = vmatpush1.msra.mxu0 0.0
    %2844 = vmatprep.subr.mxu0 0.0
    %2845 = vmatpush1.msra.mxu0 0.0
    %2846 = vmatprep.subr.mxu0 0.0
    %2847 = vmatpush1.msra.mxu0 0.0
    %2848 = vmatprep.subr.mxu0 0.0
    %2849 = vmatpush1.msra.mxu0 0.0
    %2850 = vmatprep.subr.mxu0 0.0
    %2851 = vmatpush1.msra.mxu0 0.0
    %2852 = vmatprep.subr.mxu0 0.0
    %2853 = vmatpush1.msra.mxu0 0.0
    %2854 = vmatprep.subr.mxu0 0.0
    %2855 = vmatpush1.msra.mxu0 0.0
    %2856 = vmatprep.subr.mxu0 0.0
    %2857 = vmatpush1.msra.mxu0 0.0
    %2858 = vmatprep.subr.mxu0 0.0
    %2859 = vmatpush1.msra.mxu0 0.0
    %2860 = vmatprep.subr.mxu0 0.0
    %2861 = vmatpush1.msra.mxu0 0.0
    %2862 = vmatprep.subr.mxu0 0.0
    %2863 = vmatpush1.msra.mxu0 0.0
    %2864 = vmatprep.subr.mxu0 0.0
    %2865 = vmatpush1.msra.mxu0 0.0
    %2866 = vmatprep.subr.mxu0 0.0
    %2867 = vmatpush1.msra.mxu0 0.0
    %2868 = vmatprep.subr.mxu0 0.0
    %2869 = vmatpush1.msra.mxu0 0.0
    %2870 = vmatprep.subr.mxu0 0.0
    %2871 = vmatpush1.msra.mxu0 0.0
    %2872 = vmatprep.subr.mxu0 0.0
    %2873 = vmatpush1.msra.mxu0 0.0
    %2874 = vmatprep.subr.mxu0 0.0
    %2875 = vmatpush1.msra.mxu0 0.0
    %2876 = vmatprep.subr.mxu0 0.0
    %2877 = vmatpush1.msra.mxu0 0.0
    %2878 = vmatprep.subr.mxu0 0.0
    %2879 = vmatpush1.msra.mxu0 0.0
    %2880 = vmatprep.subr.mxu0 0.0
    %2881 = vmatpush1.msra.mxu0 0.0
    %2882 = vmatprep.subr.mxu0 0.0
    %2883 = vmatpush1.msra.mxu0 0.0
    %2884 = vmatprep.subr.mxu0 0.0
    %2885 = vmatpush1.msra.mxu0 0.0
    %2886 = vmatprep.subr.mxu0 0.0
    %2887 = vmatpush1.msra.mxu0 0.0
    %2888 = vmatprep.subr.mxu0 0.0
    %2889 = vmatpush1.msra.mxu0 0.0
    %2890 = vmatprep.subr.mxu0 0.0
    %2891 = vmatpush1.msra.mxu0 0.0
    %2892 = vmatprep.subr.mxu0 0.0
    %2893 = vmatpush1.msra.mxu0 0.0
    %2894 = vmatprep.subr.mxu0 0.0
    %2895 = vmatpush1.msra.mxu0 0.0
    %2896 = vmatprep.subr.mxu0 0.0
    %2897 = vmatpush1.msra.mxu0 0.0
    %2898 = vmatprep.subr.mxu0 0.0
    %2899 = vmatpush1.msra.mxu0 0.0
    %2900 = vmatprep.mubr.f32.mxu0 0.0
    %2901 = vmatmul.mubr.f32.gmra.mrb[0].mxu0 %v2738
    %v2902 = vpop.f32.mrb[0].mxu0
    %v2903 = vadd.f32 0.0, %v2902
    %v2904 = vpop.f32.mrb[0].mxu0
    %2905 = vmatprep.mubr.f32.mxu0 0.0
    %2906 = vmatmul.mubr.f32.gmra.mrb[0].mxu0 %v2741
    %v2907 = vpop.f32.mrb[0].mxu0
    %v2908 = vadd.f32 0.0, %v2907
    %v2909 = vpop.f32.mrb[0].mxu0
    %2910 = vmatprep.mubr.f32.mxu0 0.0
    %2911 = vmatmul.mubr.f32.gmra.mrb[0].mxu0 %v2744
    %v2912 = vpop.f32.mrb[0].mxu0
    %v2913 = vadd.f32 0.0, %v2912
    %v2914 = vpop.f32.mrb[0].mxu0
    %2915 = vmatprep.mubr.f32.mxu0 0.0
    %2916 = vmatmul.mubr.f32.gmra.mrb[0].mxu0 %v2747
    %v2917 = vpop.f32.mrb[0].mxu0
    %v2918 = vadd.f32 0.0, %v2917
    %v2919 = vpop.f32.mrb[0].mxu0
    %2920 = vmatprep.mubr.f32.mxu0 0.0
    %2921 = vmatmul.mubr.f32.gmra.mrb[0].mxu0 %v2750
    %v2922 = vpop.f32.mrb[0].mxu0
    %v2923 = vadd.f32 0.0, %v2922
    %v2924 = vpop.f32.mrb[0].mxu0
    %2925 = vmatprep.mubr.f32.mxu0 0.0
    %2926 = vmatmul.mubr.f32.gmra.mrb[0].mxu0 %v2753
    %v2927 = vpop.f32.mrb[0].mxu0
    %v2928 = vadd.f32 0.0, %v2927
    %v2929 = vpop.f32.mrb[0].mxu0
    %2930 = vmatprep.mubr.f32.mxu0 0.0
    %2931 = vmatmul.mubr.f32.gmra.mrb[0].mxu0 %v2756
    %v2932 = vpop.f32.mrb[0].mxu0
    %v2933 = vadd.f32 0.0, %v2932
    %v2934 = vpop.f32.mrb[0].mxu0
    %2935 = vmatprep.mubr.f32.mxu0 0.0
    %2936 = vmatmul.mubr.f32.gmra.mrb[0].mxu0 %v2759
    %v2937 = vpop.f32.mrb[0].mxu0
    %v2938 = vadd.f32 0.0, %v2937
    %v2939 = vpop.f32.mrb[0].mxu0
    %2940 = vmatprep.mubr.f32.mxu0 0.0
    %2941 = vmatmul.mubr.f32.gmra.mrb[0].mxu0 %v2762
    %v2942 = vpop.f32.mrb[0].mxu0
    %v2943 = vadd.f32 0.0, %v2942
    %v2944 = vpop.f32.mrb[0].mxu0
    %2945 = vmatprep.mubr.f32.mxu0 0.0
    %2946 = vmatmul.mubr.f32.gmra.mrb[0].mxu0 %v2765
    %v2947 = vpop.f32.mrb[0].mxu0
    %v2948 = vadd.f32 0.0, %v2947
    %v2949 = vpop.f32.mrb[0].mxu0
    %2950 = vmatprep.mubr.f32.mxu0 0.0
    %2951 = vmatmul.mubr.f32.gmra.mrb[0].mxu0 %v2768
    %v2952 = vpop.f32.mrb[0].mxu0
    %v2953 = vadd.f32 0.0, %v2952
    %v2954 = vpop.f32.mrb[0].mxu0
    %2955 = vmatprep.mubr.f32.mxu0 0.0
    %2956 = vmatmul.mubr.f32.gmra.mrb[0].mxu0 %v2771
    %v2957 = vpop.f32.mrb[0].mxu0
    %v2958 = vadd.f32 0.0, %v2957
    %v2959 = vpop.f32.mrb[0].mxu0
    %2960 = vmatprep.mubr.f32.mxu0 0.0
    %2961 = vmatmul.mubr.f32.gmra.mrb[0].mxu0 %v2774
    %v2962 = vpop.f32.mrb[0].mxu0
    %v2963 = vadd.f32 0.0, %v2962
    %v2964 = vpop.f32.mrb[0].mxu0
    %2965 = vmatprep.mubr.f32.mxu0 0.0
    %2966 = vmatmul.mubr.f32.gmra.mrb[0].mxu0 %v2777
    %v2967 = vpop.f32.mrb[0].mxu0
    %v2968 = vadd.f32 0.0, %v2967
    %v2969 = vpop.f32.mrb[0].mxu0
    %2970 = vmatprep.mubr.f32.mxu0 0.0
    %2971 = vmatmul.mubr.f32.gmra.mrb[0].mxu0 %v2780
    %v2972 = vpop.f32.mrb[0].mxu0
    %v2973 = vadd.f32 0.0, %v2972
    %v2974 = vpop.f32.mrb[0].mxu0
    %2975 = vmatprep.mubr.f32.mxu0 0.0
    %2976 = vmatmul.mubr.f32.gmra.mrb[0].mxu0 %v2783
    %v2977 = vpop.f32.mrb[0].mxu0
    %v2978 = vadd.f32 0.0, %v2977
    %v2979 = vpop.f32.mrb[0].mxu0
    %2980 = vmatprep.mubr.f32.mxu0 0.0
    %2981 = vmatmul.mubr.f32.gmra.mrb[0].mxu0 %v2786
    %v2982 = vpop.f32.mrb[0].mxu0
    %v2983 = vadd.f32 0.0, %v2982
    %v2984 = vpop.f32.mrb[0].mxu0
    %2985 = vmatprep.mubr.f32.mxu0 0.0
    %2986 = vmatmul.mubr.f32.gmra.mrb[0].mxu0 %v2789
    %v2987 = vpop.f32.mrb[0].mxu0
    %v2988 = vadd.f32 0.0, %v2987
    %v2989 = vpop.f32.mrb[0].mxu0
    %2990 = vmatprep.mubr.f32.mxu0 0.0
    %2991 = vmatmul.mubr.f32.gmra.mrb[0].mxu0 %v2792
    %v2992 = vpop.f32.mrb[0].mxu0
    %v2993 = vadd.f32 0.0, %v2992
    %v2994 = vpop.f32.mrb[0].mxu0
    %2995 = vmatprep.mubr.f32.mxu0 0.0
    %2996 = vmatmul.mubr.f32.gmra.mrb[0].mxu0 %v2795
    %v2997 = vpop.f32.mrb[0].mxu0
    %v2998 = vadd.f32 0.0, %v2997
    %v2999 = vpop.f32.mrb[0].mxu0
    %3000 = vmatprep.mubr.f32.mxu0 0.0
    %3001 = vmatmul.mubr.f32.gmra.mrb[0].mxu0 %v2798
    %v3002 = vpop.f32.mrb[0].mxu0
    %v3003 = vadd.f32 0.0, %v3002
    %v3004 = vpop.f32.mrb[0].mxu0
    %3005 = vmatprep.mubr.f32.mxu0 0.0
    %3006 = vmatmul.mubr.f32.gmra.mrb[0].mxu0 %v2801
    %v3007 = vpop.f32.mrb[0].mxu0
    %v3008 = vadd.f32 0.0, %v3007
    %v3009 = vpop.f32.mrb[0].mxu0
    %3010 = vmatprep.mubr.f32.mxu0 0.0
    %3011 = vmatmul.mubr.f32.gmra.mrb[0].mxu0 %v2804
    %v3012 = vpop.f32.mrb[0].mxu0
    %v3013 = vadd.f32 0.0, %v3012
    %v3014 = vpop.f32.mrb[0].mxu0
    %3015 = vmatprep.mubr.f32.mxu0 0.0
    %3016 = vmatmul.mubr.f32.gmra.mrb[0].mxu0 %v2807
    %v3017 = vpop.f32.mrb[0].mxu0
    %v3018 = vadd.f32 0.0, %v3017
    %v3019 = vpop.f32.mrb[0].mxu0
    %3020 = vmatprep.mubr.f32.mxu0 0.0
    %3021 = vmatmul.mubr.f32.gmra.mrb[0].mxu0 %v2810
    %v3022 = vpop.f32.mrb[0].mxu0
    %v3023 = vadd.f32 0.0, %v3022
    %v3024 = vpop.f32.mrb[0].mxu0
    %3025 = vmatprep.mubr.f32.mxu0 0.0
    %3026 = vmatmul.mubr.f32.gmra.mrb[0].mxu0 %v2813
    %v3027 = vpop.f32.mrb[0].mxu0
    %v3028 = vadd.f32 0.0, %v3027
    %v3029 = vpop.f32.mrb[0].mxu0
    %3030 = vmatprep.mubr.f32.mxu0 0.0
    %3031 = vmatmul.mubr.f32.gmra.mrb[0].mxu0 %v2816
    %v3032 = vpop.f32.mrb[0].mxu0
    %v3033 = vadd.f32 0.0, %v3032
    %v3034 = vpop.f32.mrb[0].mxu0
    %3035 = vmatprep.mubr.f32.mxu0 0.0
    %3036 = vmatmul.mubr.f32.gmra.mrb[0].mxu0 %v2819
    %v3037 = vpop.f32.mrb[0].mxu0
    %v3038 = vadd.f32 0.0, %v3037
    %v3039 = vpop.f32.mrb[0].mxu0
    %3040 = vmatprep.mubr.f32.mxu0 0.0
    %3041 = vmatmul.mubr.f32.gmra.mrb[0].mxu0 %v2822
    %v3042 = vpop.f32.mrb[0].mxu0
    %v3043 = vadd.f32 0.0, %v3042
    %v3044 = vpop.f32.mrb[0].mxu0
    %3045 = vmatprep.mubr.f32.mxu0 0.0
    %3046 = vmatmul.mubr.f32.gmra.mrb[0].mxu0 %v2825
    %v3047 = vpop.f32.mrb[0].mxu0
    %v3048 = vadd.f32 0.0, %v3047
    %v3049 = vpop.f32.mrb[0].mxu0
    %3050 = vmatprep.mubr.f32.mxu0 0.0
    %3051 = vmatmul.mubr.f32.gmra.mrb[0].mxu0 %v2828
    %v3052 = vpop.f32.mrb[0].mxu0
    %v3053 = vadd.f32 0.0, %v3052
    %v3054 = vpop.f32.mrb[0].mxu0
    %3055 = vmatprep.mubr.f32.mxu0 0.0
    %3056 = vmatmul.mubr.f32.gmra.mrb[0].mxu0 %v2831
    %v3057 = vpop.f32.mrb[0].mxu0
    %v3058 = vadd.f32 0.0, %v3057
    %v3059 = vpop.f32.mrb[0].mxu0
    %3060 = vdwg.mxu0
    %v3061 = vadd.f32 %v2671, %v2903
    %v3062 = vadd.f32 %v2672, %v2908
    %v3063 = vadd.f32 %v2673, %v2913
    %v3064 = vadd.f32 %v2674, %v2918
    %v3065 = vadd.f32 %v2675, %v2923
    %v3066 = vadd.f32 %v2676, %v2928
    %v3067 = vadd.f32 %v2677, %v2933
    %v3068 = vadd.f32 %v2678, %v2938
    %v3069 = vadd.f32 %v2679, %v2943
    %v3070 = vadd.f32 %v2680, %v2948
    %v3071 = vadd.f32 %v2681, %v2953
    %v3072 = vadd.f32 %v2682, %v2958
    %v3073 = vadd.f32 %v2683, %v2963
    %v3074 = vadd.f32 %v2684, %v2968
    %v3075 = vadd.f32 %v2685, %v2973
    %v3076 = vadd.f32 %v2686, %v2978
    %v3077 = vadd.f32 %v2687, %v2983
    %v3078 = vadd.f32 %v2688, %v2988
    %v3079 = vadd.f32 %v2689, %v2993
    %v3080 = vadd.f32 %v2690, %v2998
    %v3081 = vadd.f32 %v2691, %v3003
    %v3082 = vadd.f32 %v2692, %v3008
    %v3083 = vadd.f32 %v2693, %v3013
    %v3084 = vadd.f32 %v2694, %v3018
    %v3085 = vadd.f32 %v2695, %v3023
    %v3086 = vadd.f32 %v2696, %v3028
    %v3087 = vadd.f32 %v2697, %v3033
    %v3088 = vadd.f32 %v2698, %v3038
    %v3089 = vadd.f32 %v2699, %v3043
    %v3090 = vadd.f32 %v2700, %v3048
    %v3091 = vadd.f32 %v2701, %v3053
    %v3092 = vadd.f32 %v2702, %v3058
    %v3093 = vld [vmem:[%s2312 + $0x2] sm:$0xff]
    %v3094 = vld [vmem:[%s2312 + $0xa] sm:$0xff]
    %v3095 = vld [vmem:[%s2312 + $0x1a] sm:$0xff]
    %v3096 = vld [vmem:[%s2312 + $0x22] sm:$0xff]
    %v3097 = vld [vmem:[%s2312 + $0x32] sm:$0xff]
    %v3098 = vld [vmem:[%s2312 + $0x3a] sm:$0xff]
    %v3099 = vld [vmem:[%s2312 + $0x4a] sm:$0xff]
    %v3100 = vld [vmem:[%s2312 + $0x52] sm:$0xff]
    %v3101 = vld [vmem:[%s2312 + $0x62] sm:$0xff]
    %v3102 = vld [vmem:[%s2312 + $0x6a] sm:$0xff]
    %v3103 = vld [vmem:[%s2312 + $0x7a] sm:$0xff]
    %v3104 = vld [vmem:[%s2312 + $0x82] sm:$0xff]
    %v3105 = vld [vmem:[%s2312 + $0x92] sm:$0xff]
    %v3106 = vld [vmem:[%s2312 + $0x9a] sm:$0xff]
    %v3107 = vld [vmem:[%s2312 + $0xaa] sm:$0xff]
    %v3108 = vld [vmem:[%s2312 + $0xb2] sm:$0xff]
    %v3109 = vld [vmem:[%s2312 + $0xc2] sm:$0xff]
    %v3110 = vld [vmem:[%s2312 + $0xca] sm:$0xff]
    %v3111 = vld [vmem:[%s2312 + $0xda] sm:$0xff]
    %v3112 = vld [vmem:[%s2312 + $0xe2] sm:$0xff]
    %v3113 = vld [vmem:[%s2312 + $0xf2] sm:$0xff]
    %v3114 = vld [vmem:[%s2312 + $0xfa] sm:$0xff]
    %v3115 = vld [vmem:[%s2312 + $0x10a] sm:$0xff]
    %v3116 = vld [vmem:[%s2312 + $0x112] sm:$0xff]
    %v3117 = vld [vmem:[%s2312 + $0x122] sm:$0xff]
    %v3118 = vld [vmem:[%s2312 + $0x12a] sm:$0xff]
    %v3119 = vld [vmem:[%s2312 + $0x13a] sm:$0xff]
    %v3120 = vld [vmem:[%s2312 + $0x142] sm:$0xff]
    %v3121 = vld [vmem:[%s2312 + $0x152] sm:$0xff]
    %v3122 = vld [vmem:[%s2312 + $0x15a] sm:$0xff]
    %v3123 = vld [vmem:[%s2312 + $0x16a] sm:$0xff]
    %v3124 = vld [vmem:[%s2312 + $0x172] sm:$0xff]
    %s3125 = scalar_lea.vmem %s1, 32
    %v3126 = vld [vmem:[%s3125] sm:$0xf]
    %v3128 = vsel %vm101, %v3093, 0
    %v3131 = vsel %vm101, %v3094, 0
    %v3134 = vsel %vm101, %v3095, 0
    %v3137 = vsel %vm101, %v3096, 0
    %v3140 = vsel %vm101, %v3097, 0
    %v3143 = vsel %vm101, %v3098, 0
    %v3146 = vsel %vm101, %v3099, 0
    %v3149 = vsel %vm101, %v3100, 0
    %v3152 = vsel %vm101, %v3101, 0
    %v3155 = vsel %vm101, %v3102, 0
    %v3158 = vsel %vm101, %v3103, 0
    %v3161 = vsel %vm101, %v3104, 0
    %v3164 = vsel %vm101, %v3105, 0
    %v3167 = vsel %vm101, %v3106, 0
    %v3170 = vsel %vm101, %v3107, 0
    %v3173 = vsel %vm101, %v3108, 0
    %v3176 = vsel %vm101, %v3109, 0
    %v3179 = vsel %vm101, %v3110, 0
    %v3182 = vsel %vm101, %v3111, 0
    %v3185 = vsel %vm101, %v3112, 0
    %v3188 = vsel %vm101, %v3113, 0
    %v3191 = vsel %vm101, %v3114, 0
    %v3194 = vsel %vm101, %v3115, 0
    %v3197 = vsel %vm101, %v3116, 0
    %v3200 = vsel %vm101, %v3117, 0
    %v3203 = vsel %vm101, %v3118, 0
    %v3206 = vsel %vm101, %v3119, 0
    %v3209 = vsel %vm101, %v3120, 0
    %v3212 = vsel %vm101, %v3121, 0
    %v3215 = vsel %vm101, %v3122, 0
    %v3218 = vsel %vm101, %v3123, 0
    %v3221 = vsel %vm101, %v3124, 0
    %v3224 = vsel %vm198, %v3126, 0
    %3226 = vmatprep.subr.mxu0 0.0
    %3227 = vmatpush1.msra.mxu0 %v3224
    %3228 = vmatprep.subr.mxu0 0.0
    %3229 = vmatpush1.msra.mxu0 0.0
    %3230 = vmatprep.subr.mxu0 0.0
    %3231 = vmatpush1.msra.mxu0 0.0
    %3232 = vmatprep.subr.mxu0 0.0
    %3233 = vmatpush1.msra.mxu0 0.0
    %3234 = vmatprep.subr.mxu0 0.0
    %3235 = vmatpush1.msra.mxu0 0.0
    %3236 = vmatprep.subr.mxu0 0.0
    %3237 = vmatpush1.msra.mxu0 0.0
    %3238 = vmatprep.subr.mxu0 0.0
    %3239 = vmatpush1.msra.mxu0 0.0
    %3240 = vmatprep.subr.mxu0 0.0
    %3241 = vmatpush1.msra.mxu0 0.0
    %3242 = vmatprep.subr.mxu0 0.0
    %3243 = vmatpush1.msra.mxu0 0.0
    %3244 = vmatprep.subr.mxu0 0.0
    %3245 = vmatpush1.msra.mxu0 0.0
    %3246 = vmatprep.subr.mxu0 0.0
    %3247 = vmatpush1.msra.mxu0 0.0
    %3248 = vmatprep.subr.mxu0 0.0
    %3249 = vmatpush1.msra.mxu0 0.0
    %3250 = vmatprep.subr.mxu0 0.0
    %3251 = vmatpush1.msra.mxu0 0.0
    %3252 = vmatprep.subr.mxu0 0.0
    %3253 = vmatpush1.msra.mxu0 0.0
    %3254 = vmatprep.subr.mxu0 0.0
    %3255 = vmatpush1.msra.mxu0 0.0
    %3256 = vmatprep.subr.mxu0 0.0
    %3257 = vmatpush1.msra.mxu0 0.0
    %3258 = vmatprep.subr.mxu0 0.0
    %3259 = vmatpush1.msra.mxu0 0.0
    %3260 = vmatprep.subr.mxu0 0.0
    %3261 = vmatpush1.msra.mxu0 0.0
    %3262 = vmatprep.subr.mxu0 0.0
    %3263 = vmatpush1.msra.mxu0 0.0
    %3264 = vmatprep.subr.mxu0 0.0
    %3265 = vmatpush1.msra.mxu0 0.0
    %3266 = vmatprep.subr.mxu0 0.0
    %3267 = vmatpush1.msra.mxu0 0.0
    %3268 = vmatprep.subr.mxu0 0.0
    %3269 = vmatpush1.msra.mxu0 0.0
    %3270 = vmatprep.subr.mxu0 0.0
    %3271 = vmatpush1.msra.mxu0 0.0
    %3272 = vmatprep.subr.mxu0 0.0
    %3273 = vmatpush1.msra.mxu0 0.0
    %3274 = vmatprep.subr.mxu0 0.0
    %3275 = vmatpush1.msra.mxu0 0.0
    %3276 = vmatprep.subr.mxu0 0.0
    %3277 = vmatpush1.msra.mxu0 0.0
    %3278 = vmatprep.subr.mxu0 0.0
    %3279 = vmatpush1.msra.mxu0 0.0
    %3280 = vmatprep.subr.mxu0 0.0
    %3281 = vmatpush1.msra.mxu0 0.0
    %3282 = vmatprep.subr.mxu0 0.0
    %3283 = vmatpush1.msra.mxu0 0.0
    %3284 = vmatprep.subr.mxu0 0.0
    %3285 = vmatpush1.msra.mxu0 0.0
    %3286 = vmatprep.subr.mxu0 0.0
    %3287 = vmatpush1.msra.mxu0 0.0
    %3288 = vmatprep.subr.mxu0 0.0
    %3289 = vmatpush1.msra.mxu0 0.0
    %3290 = vmatprep.mubr.f32.mxu0 0.0
    %3291 = vmatmul.mubr.f32.gmra.mrb[0].mxu0 %v3128
    %v3292 = vpop.f32.mrb[0].mxu0
    %v3293 = vadd.f32 0.0, %v3292
    %v3294 = vpop.f32.mrb[0].mxu0
    %3295 = vmatprep.mubr.f32.mxu0 0.0
    %3296 = vmatmul.mubr.f32.gmra.mrb[0].mxu0 %v3131
    %v3297 = vpop.f32.mrb[0].mxu0
    %v3298 = vadd.f32 0.0, %v3297
    %v3299 = vpop.f32.mrb[0].mxu0
    %3300 = vmatprep.mubr.f32.mxu0 0.0
    %3301 = vmatmul.mubr.f32.gmra.mrb[0].mxu0 %v3134
    %v3302 = vpop.f32.mrb[0].mxu0
    %v3303 = vadd.f32 0.0, %v3302
    %v3304 = vpop.f32.mrb[0].mxu0
    %3305 = vmatprep.mubr.f32.mxu0 0.0
    %3306 = vmatmul.mubr.f32.gmra.mrb[0].mxu0 %v3137
    %v3307 = vpop.f32.mrb[0].mxu0
    %v3308 = vadd.f32 0.0, %v3307
    %v3309 = vpop.f32.mrb[0].mxu0
    %3310 = vmatprep.mubr.f32.mxu0 0.0
    %3311 = vmatmul.mubr.f32.gmra.mrb[0].mxu0 %v3140
    %v3312 = vpop.f32.mrb[0].mxu0
    %v3313 = vadd.f32 0.0, %v3312
    %v3314 = vpop.f32.mrb[0].mxu0
    %3315 = vmatprep.mubr.f32.mxu0 0.0
    %3316 = vmatmul.mubr.f32.gmra.mrb[0].mxu0 %v3143
    %v3317 = vpop.f32.mrb[0].mxu0
    %v3318 = vadd.f32 0.0, %v3317
    %v3319 = vpop.f32.mrb[0].mxu0
    %3320 = vmatprep.mubr.f32.mxu0 0.0
    %3321 = vmatmul.mubr.f32.gmra.mrb[0].mxu0 %v3146
    %v3322 = vpop.f32.mrb[0].mxu0
    %v3323 = vadd.f32 0.0, %v3322
    %v3324 = vpop.f32.mrb[0].mxu0
    %3325 = vmatprep.mubr.f32.mxu0 0.0
    %3326 = vmatmul.mubr.f32.gmra.mrb[0].mxu0 %v3149
    %v3327 = vpop.f32.mrb[0].mxu0
    %v3328 = vadd.f32 0.0, %v3327
    %v3329 = vpop.f32.mrb[0].mxu0
    %3330 = vmatprep.mubr.f32.mxu0 0.0
    %3331 = vmatmul.mubr.f32.gmra.mrb[0].mxu0 %v3152
    %v3332 = vpop.f32.mrb[0].mxu0
    %v3333 = vadd.f32 0.0, %v3332
    %v3334 = vpop.f32.mrb[0].mxu0
    %3335 = vmatprep.mubr.f32.mxu0 0.0
    %3336 = vmatmul.mubr.f32.gmra.mrb[0].mxu0 %v3155
    %v3337 = vpop.f32.mrb[0].mxu0
    %v3338 = vadd.f32 0.0, %v3337
    %v3339 = vpop.f32.mrb[0].mxu0
    %3340 = vmatprep.mubr.f32.mxu0 0.0
    %3341 = vmatmul.mubr.f32.gmra.mrb[0].mxu0 %v3158
    %v3342 = vpop.f32.mrb[0].mxu0
    %v3343 = vadd.f32 0.0, %v3342
    %v3344 = vpop.f32.mrb[0].mxu0
    %3345 = vmatprep.mubr.f32.mxu0 0.0
    %3346 = vmatmul.mubr.f32.gmra.mrb[0].mxu0 %v3161
    %v3347 = vpop.f32.mrb[0].mxu0
    %v3348 = vadd.f32 0.0, %v3347
    %v3349 = vpop.f32.mrb[0].mxu0
    %3350 = vmatprep.mubr.f32.mxu0 0.0
    %3351 = vmatmul.mubr.f32.gmra.mrb[0].mxu0 %v3164
    %v3352 = vpop.f32.mrb[0].mxu0
    %v3353 = vadd.f32 0.0, %v3352
    %v3354 = vpop.f32.mrb[0].mxu0
    %3355 = vmatprep.mubr.f32.mxu0 0.0
    %3356 = vmatmul.mubr.f32.gmra.mrb[0].mxu0 %v3167
    %v3357 = vpop.f32.mrb[0].mxu0
    %v3358 = vadd.f32 0.0, %v3357
    %v3359 = vpop.f32.mrb[0].mxu0
    %3360 = vmatprep.mubr.f32.mxu0 0.0
    %3361 = vmatmul.mubr.f32.gmra.mrb[0].mxu0 %v3170
    %v3362 = vpop.f32.mrb[0].mxu0
    %v3363 = vadd.f32 0.0, %v3362
    %v3364 = vpop.f32.mrb[0].mxu0
    %3365 = vmatprep.mubr.f32.mxu0 0.0
    %3366 = vmatmul.mubr.f32.gmra.mrb[0].mxu0 %v3173
    %v3367 = vpop.f32.mrb[0].mxu0
    %v3368 = vadd.f32 0.0, %v3367
    %v3369 = vpop.f32.mrb[0].mxu0
    %3370 = vmatprep.mubr.f32.mxu0 0.0
    %3371 = vmatmul.mubr.f32.gmra.mrb[0].mxu0 %v3176
    %v3372 = vpop.f32.mrb[0].mxu0
    %v3373 = vadd.f32 0.0, %v3372
    %v3374 = vpop.f32.mrb[0].mxu0
    %3375 = vmatprep.mubr.f32.mxu0 0.0
    %3376 = vmatmul.mubr.f32.gmra.mrb[0].mxu0 %v3179
    %v3377 = vpop.f32.mrb[0].mxu0
    %v3378 = vadd.f32 0.0, %v3377
    %v3379 = vpop.f32.mrb[0].mxu0
    %3380 = vmatprep.mubr.f32.mxu0 0.0
    %3381 = vmatmul.mubr.f32.gmra.mrb[0].mxu0 %v3182
    %v3382 = vpop.f32.mrb[0].mxu0
    %v3383 = vadd.f32 0.0, %v3382
    %v3384 = vpop.f32.mrb[0].mxu0
    %3385 = vmatprep.mubr.f32.mxu0 0.0
    %3386 = vmatmul.mubr.f32.gmra.mrb[0].mxu0 %v3185
    %v3387 = vpop.f32.mrb[0].mxu0
    %v3388 = vadd.f32 0.0, %v3387
    %v3389 = vpop.f32.mrb[0].mxu0
    %3390 = vmatprep.mubr.f32.mxu0 0.0
    %3391 = vmatmul.mubr.f32.gmra.mrb[0].mxu0 %v3188
    %v3392 = vpop.f32.mrb[0].mxu0
    %v3393 = vadd.f32 0.0, %v3392
    %v3394 = vpop.f32.mrb[0].mxu0
    %3395 = vmatprep.mubr.f32.mxu0 0.0
    %3396 = vmatmul.mubr.f32.gmra.mrb[0].mxu0 %v3191
    %v3397 = vpop.f32.mrb[0].mxu0
    %v3398 = vadd.f32 0.0, %v3397
    %v3399 = vpop.f32.mrb[0].mxu0
    %3400 = vmatprep.mubr.f32.mxu0 0.0
    %3401 = vmatmul.mubr.f32.gmra.mrb[0].mxu0 %v3194
    %v3402 = vpop.f32.mrb[0].mxu0
    %v3403 = vadd.f32 0.0, %v3402
    %v3404 = vpop.f32.mrb[0].mxu0
    %3405 = vmatprep.mubr.f32.mxu0 0.0
    %3406 = vmatmul.mubr.f32.gmra.mrb[0].mxu0 %v3197
    %v3407 = vpop.f32.mrb[0].mxu0
    %v3408 = vadd.f32 0.0, %v3407
    %v3409 = vpop.f32.mrb[0].mxu0
    %3410 = vmatprep.mubr.f32.mxu0 0.0
    %3411 = vmatmul.mubr.f32.gmra.mrb[0].mxu0 %v3200
    %v3412 = vpop.f32.mrb[0].mxu0
    %v3413 = vadd.f32 0.0, %v3412
    %v3414 = vpop.f32.mrb[0].mxu0
    %3415 = vmatprep.mubr.f32.mxu0 0.0
    %3416 = vmatmul.mubr.f32.gmra.mrb[0].mxu0 %v3203
    %v3417 = vpop.f32.mrb[0].mxu0
    %v3418 = vadd.f32 0.0, %v3417
    %v3419 = vpop.f32.mrb[0].mxu0
    %3420 = vmatprep.mubr.f32.mxu0 0.0
    %3421 = vmatmul.mubr.f32.gmra.mrb[0].mxu0 %v3206
    %v3422 = vpop.f32.mrb[0].mxu0
    %v3423 = vadd.f32 0.0, %v3422
    %v3424 = vpop.f32.mrb[0].mxu0
    %3425 = vmatprep.mubr.f32.mxu0 0.0
    %3426 = vmatmul.mubr.f32.gmra.mrb[0].mxu0 %v3209
    %v3427 = vpop.f32.mrb[0].mxu0
    %v3428 = vadd.f32 0.0, %v3427
    %v3429 = vpop.f32.mrb[0].mxu0
    %3430 = vmatprep.mubr.f32.mxu0 0.0
    %3431 = vmatmul.mubr.f32.gmra.mrb[0].mxu0 %v3212
    %v3432 = vpop.f32.mrb[0].mxu0
    %v3433 = vadd.f32 0.0, %v3432
    %v3434 = vpop.f32.mrb[0].mxu0
    %3435 = vmatprep.mubr.f32.mxu0 0.0
    %3436 = vmatmul.mubr.f32.gmra.mrb[0].mxu0 %v3215
    %v3437 = vpop.f32.mrb[0].mxu0
    %v3438 = vadd.f32 0.0, %v3437
    %v3439 = vpop.f32.mrb[0].mxu0
    %3440 = vmatprep.mubr.f32.mxu0 0.0
    %3441 = vmatmul.mubr.f32.gmra.mrb[0].mxu0 %v3218
    %v3442 = vpop.f32.mrb[0].mxu0
    %v3443 = vadd.f32 0.0, %v3442
    %v3444 = vpop.f32.mrb[0].mxu0
    %3445 = vmatprep.mubr.f32.mxu0 0.0
    %3446 = vmatmul.mubr.f32.gmra.mrb[0].mxu0 %v3221
    %v3447 = vpop.f32.mrb[0].mxu0
    %v3448 = vadd.f32 0.0, %v3447
    %v3449 = vpop.f32.mrb[0].mxu0
    %3450 = vdwg.mxu0
    %v3451 = vadd.f32 %v3061, %v3293
    %v3452 = vadd.f32 %v3062, %v3298
    %v3453 = vadd.f32 %v3063, %v3303
    %v3454 = vadd.f32 %v3064, %v3308
    %v3455 = vadd.f32 %v3065, %v3313
    %v3456 = vadd.f32 %v3066, %v3318
    %v3457 = vadd.f32 %v3067, %v3323
    %v3458 = vadd.f32 %v3068, %v3328
    %v3459 = vadd.f32 %v3069, %v3333
    %v3460 = vadd.f32 %v3070, %v3338
    %v3461 = vadd.f32 %v3071, %v3343
    %v3462 = vadd.f32 %v3072, %v3348
    %v3463 = vadd.f32 %v3073, %v3353
    %v3464 = vadd.f32 %v3074, %v3358
    %v3465 = vadd.f32 %v3075, %v3363
    %v3466 = vadd.f32 %v3076, %v3368
    %v3467 = vadd.f32 %v3077, %v3373
    %v3468 = vadd.f32 %v3078, %v3378
    %v3469 = vadd.f32 %v3079, %v3383
    %v3470 = vadd.f32 %v3080, %v3388
    %v3471 = vadd.f32 %v3081, %v3393
    %v3472 = vadd.f32 %v3082, %v3398
    %v3473 = vadd.f32 %v3083, %v3403
    %v3474 = vadd.f32 %v3084, %v3408
    %v3475 = vadd.f32 %v3085, %v3413
    %v3476 = vadd.f32 %v3086, %v3418
    %v3477 = vadd.f32 %v3087, %v3423
    %v3478 = vadd.f32 %v3088, %v3428
    %v3479 = vadd.f32 %v3089, %v3433
    %v3480 = vadd.f32 %v3090, %v3438
    %v3481 = vadd.f32 %v3091, %v3443
    %v3482 = vadd.f32 %v3092, %v3448
    %v3483 = vld [vmem:[%s2] sm:$0x1]
    %v3485 = vlaneseq
    %v3486 = vshrl.u32 %v3485, 7
    %v3487 = vsub.s32 0, %v3486
    %v3488 = vrot.slane %v3483, %v3487
    %v3490 = vadd.f32 %v3451, %v3488
    %v3491 = vadd.f32 %v3452, %v3488
    %v3492 = vadd.f32 %v3453, %v3488
    %v3493 = vadd.f32 %v3454, %v3488
    %v3494 = vadd.f32 %v3455, %v3488
    %v3495 = vadd.f32 %v3456, %v3488
    %v3496 = vadd.f32 %v3457, %v3488
    %v3497 = vadd.f32 %v3458, %v3488
    %v3498 = vadd.f32 %v3459, %v3488
    %v3499 = vadd.f32 %v3460, %v3488
    %v3500 = vadd.f32 %v3461, %v3488
    %v3501 = vadd.f32 %v3462, %v3488
    %v3502 = vadd.f32 %v3463, %v3488
    %v3503 = vadd.f32 %v3464, %v3488
    %v3504 = vadd.f32 %v3465, %v3488
    %v3505 = vadd.f32 %v3466, %v3488
    %v3506 = vadd.f32 %v3467, %v3488
    %v3507 = vadd.f32 %v3468, %v3488
    %v3508 = vadd.f32 %v3469, %v3488
    %v3509 = vadd.f32 %v3470, %v3488
    %v3510 = vadd.f32 %v3471, %v3488
    %v3511 = vadd.f32 %v3472, %v3488
    %v3512 = vadd.f32 %v3473, %v3488
    %v3513 = vadd.f32 %v3474, %v3488
    %v3514 = vadd.f32 %v3475, %v3488
    %v3515 = vadd.f32 %v3476, %v3488
    %v3516 = vadd.f32 %v3477, %v3488
    %v3517 = vadd.f32 %v3478, %v3488
    %v3518 = vadd.f32 %v3479, %v3488
    %v3519 = vadd.f32 %v3480, %v3488
    %v3520 = vadd.f32 %v3481, %v3488
    %v3521 = vadd.f32 %v3482, %v3488
    %v3522 = vmax.f32 %v3490, 0.0
    %v3523 = vmax.f32 %v3491, 0.0
    %v3524 = vmax.f32 %v3492, 0.0
    %v3525 = vmax.f32 %v3493, 0.0
    %v3526 = vmax.f32 %v3494, 0.0
    %v3527 = vmax.f32 %v3495, 0.0
    %v3528 = vmax.f32 %v3496, 0.0
    %v3529 = vmax.f32 %v3497, 0.0
    %v3530 = vmax.f32 %v3498, 0.0
    %v3531 = vmax.f32 %v3499, 0.0
    %v3532 = vmax.f32 %v3500, 0.0
    %v3533 = vmax.f32 %v3501, 0.0
    %v3534 = vmax.f32 %v3502, 0.0
    %v3535 = vmax.f32 %v3503, 0.0
    %v3536 = vmax.f32 %v3504, 0.0
    %v3537 = vmax.f32 %v3505, 0.0
    %v3538 = vmax.f32 %v3506, 0.0
    %v3539 = vmax.f32 %v3507, 0.0
    %v3540 = vmax.f32 %v3508, 0.0
    %v3541 = vmax.f32 %v3509, 0.0
    %v3542 = vmax.f32 %v3510, 0.0
    %v3543 = vmax.f32 %v3511, 0.0
    %v3544 = vmax.f32 %v3512, 0.0
    %v3545 = vmax.f32 %v3513, 0.0
    %v3546 = vmax.f32 %v3514, 0.0
    %v3547 = vmax.f32 %v3515, 0.0
    %v3548 = vmax.f32 %v3516, 0.0
    %v3549 = vmax.f32 %v3517, 0.0
    %v3550 = vmax.f32 %v3518, 0.0
    %v3551 = vmax.f32 %v3519, 0.0
    %v3552 = vmax.f32 %v3520, 0.0
    %v3553 = vmax.f32 %v3521, 0.0
    %v3554 = vld [vmem:[%s3] sm:$0xf]
    %v3555 = vld [vmem:[%s4] sm:$0xf]
    %3557 = vset.pattern.permute.xlu0 0
    %3558 = vperm.xlu0 %3557, %v3555
    %v3559 = vpop.permute.xlu0 %3558
    %vm3561 = vcmask 64512
    %v3563 = vsel %vm3561, %v3554, 0
    %v3566 = vsel %vm3561, %v3522, 0
    %v3569 = vsel %vm3561, %v3523, 0
    %v3572 = vsel %vm3561, %v3524, 0
    %v3575 = vsel %vm3561, %v3525, 0
    %v3578 = vsel %vm3561, %v3526, 0
    %v3581 = vsel %vm3561, %v3527, 0
    %v3584 = vsel %vm3561, %v3528, 0
    %v3587 = vsel %vm3561, %v3529, 0
    %v3590 = vsel %vm3561, %v3530, 0
    %v3593 = vsel %vm3561, %v3531, 0
    %v3596 = vsel %vm3561, %v3532, 0
    %v3599 = vsel %vm3561, %v3533, 0
    %v3602 = vsel %vm3561, %v3534, 0
    %v3605 = vsel %vm3561, %v3535, 0
    %v3608 = vsel %vm3561, %v3536, 0
    %v3611 = vsel %vm3561, %v3537, 0
    %v3614 = vsel %vm3561, %v3538, 0
    %v3617 = vsel %vm3561, %v3539, 0
    %v3620 = vsel %vm3561, %v3540, 0
    %v3623 = vsel %vm3561, %v3541, 0
    %v3626 = vsel %vm3561, %v3542, 0
    %v3629 = vsel %vm3561, %v3543, 0
    %v3632 = vsel %vm3561, %v3544, 0
    %v3635 = vsel %vm3561, %v3545, 0
    %v3638 = vsel %vm3561, %v3546, 0
    %v3641 = vsel %vm3561, %v3547, 0
    %v3644 = vsel %vm3561, %v3548, 0
    %v3647 = vsel %vm3561, %v3549, 0
    %v3650 = vsel %vm3561, %v3550, 0
    %v3653 = vsel %vm3561, %v3551, 0
    %v3656 = vsel %vm3561, %v3552, 0
    %v3659 = vsel %vm3561, %v3553, 0
    %3661 = vmatprep.subr.mxu0 0.0
    %3662 = vmatpush1.xpose.msra.mxu0 %v3566
    %3663 = vmatprep.subr.mxu0 0.0
    %3664 = vmatpush1.xpose.msra.mxu0 %v3569
    %3665 = vmatprep.subr.mxu0 0.0
    %3666 = vmatpush1.xpose.msra.mxu0 %v3572
    %3667 = vmatprep.subr.mxu0 0.0
    %3668 = vmatpush1.xpose.msra.mxu0 %v3575
    %3669 = vmatprep.subr.mxu0 0.0
    %3670 = vmatpush1.xpose.msra.mxu0 %v3578
    %3671 = vmatprep.subr.mxu0 0.0
    %3672 = vmatpush1.xpose.msra.mxu0 %v3581
    %3673 = vmatprep.subr.mxu0 0.0
    %3674 = vmatpush1.xpose.msra.mxu0 %v3584
    %3675 = vmatprep.subr.mxu0 0.0
    %3676 = vmatpush1.xpose.msra.mxu0 %v3587
    %3677 = vmatprep.subr.mxu0 0.0
    %3678 = vmatpush1.xpose.msra.mxu0 %v3590
    %3679 = vmatprep.subr.mxu0 0.0
    %3680 = vmatpush1.xpose.msra.mxu0 %v3593
    %3681 = vmatprep.subr.mxu0 0.0
    %3682 = vmatpush1.xpose.msra.mxu0 %v3596
    %3683 = vmatprep.subr.mxu0 0.0
    %3684 = vmatpush1.xpose.msra.mxu0 %v3599
    %3685 = vmatprep.subr.mxu0 0.0
    %3686 = vmatpush1.xpose.msra.mxu0 %v3602
    %3687 = vmatprep.subr.mxu0 0.0
    %3688 = vmatpush1.xpose.msra.mxu0 %v3605
    %3689 = vmatprep.subr.mxu0 0.0
    %3690 = vmatpush1.xpose.msra.mxu0 %v3608
    %3691 = vmatprep.subr.mxu0 0.0
    %3692 = vmatpush1.xpose.msra.mxu0 %v3611
    %3693 = vmatprep.subr.mxu0 0.0
    %3694 = vmatpush1.xpose.msra.mxu0 %v3614
    %3695 = vmatprep.subr.mxu0 0.0
    %3696 = vmatpush1.xpose.msra.mxu0 %v3617
    %3697 = vmatprep.subr.mxu0 0.0
    %3698 = vmatpush1.xpose.msra.mxu0 %v3620
    %3699 = vmatprep.subr.mxu0 0.0
    %3700 = vmatpush1.xpose.msra.mxu0 %v3623
    %3701 = vmatprep.subr.mxu0 0.0
    %3702 = vmatpush1.xpose.msra.mxu0 %v3626
    %3703 = vmatprep.subr.mxu0 0.0
    %3704 = vmatpush1.xpose.msra.mxu0 %v3629
    %3705 = vmatprep.subr.mxu0 0.0
    %3706 = vmatpush1.xpose.msra.mxu0 %v3632
    %3707 = vmatprep.subr.mxu0 0.0
    %3708 = vmatpush1.xpose.msra.mxu0 %v3635
    %3709 = vmatprep.subr.mxu0 0.0
    %3710 = vmatpush1.xpose.msra.mxu0 %v3638
    %3711 = vmatprep.subr.mxu0 0.0
    %3712 = vmatpush1.xpose.msra.mxu0 %v3641
    %3713 = vmatprep.subr.mxu0 0.0
    %3714 = vmatpush1.xpose.msra.mxu0 %v3644
    %3715 = vmatprep.subr.mxu0 0.0
    %3716 = vmatpush1.xpose.msra.mxu0 %v3647
    %3717 = vmatprep.subr.mxu0 0.0
    %3718 = vmatpush1.xpose.msra.mxu0 %v3650
    %3719 = vmatprep.subr.mxu0 0.0
    %3720 = vmatpush1.xpose.msra.mxu0 %v3653
    %3721 = vmatprep.subr.mxu0 0.0
    %3722 = vmatpush1.xpose.msra.mxu0 %v3656
    %3723 = vmatprep.subr.mxu0 0.0
    %3724 = vmatpush1.xpose.msra.mxu0 %v3659
    %3725 = vmatprep.mubr.f32.mxu0 0.0
    %3726 = vmatmul.mubr.f32.gmra.mrb[0].mxu0 %v3563
    %v3727 = vpop.f32.mrb[0].mxu0
    %v3728 = vadd.f32 %v3559, %v3727
    %v3729 = vpop.f32.mrb[0].mxu0
    %v3730 = vadd.f32 %v3559, %v3729
    %3731 = vdwg.mxu0
    %v3732 = vld [vmem:[%s5] sm:$0x7]
    %v3733 = vld [vmem:[%s6] sm:$0x7]
    %3735 = vset.pattern.permute.xlu0 0
    %3736 = vperm.xlu0 %3735, %v3733
    %v3737 = vpop.permute.xlu0 %3736
    %v3740 = vsel %vm3561, %v3732, 0
    %3742 = vmatprep.subr.mxu0 0.0
    %3743 = vmatpush1.xpose.msra.mxu0 %v3566
    %3744 = vmatprep.subr.mxu0 0.0
    %3745 = vmatpush1.xpose.msra.mxu0 %v3569
    %3746 = vmatprep.subr.mxu0 0.0
    %3747 = vmatpush1.xpose.msra.mxu0 %v3572
    %3748 = vmatprep.subr.mxu0 0.0
    %3749 = vmatpush1.xpose.msra.mxu0 %v3575
    %3750 = vmatprep.subr.mxu0 0.0
    %3751 = vmatpush1.xpose.msra.mxu0 %v3578
    %3752 = vmatprep.subr.mxu0 0.0
    %3753 = vmatpush1.xpose.msra.mxu0 %v3581
    %3754 = vmatprep.subr.mxu0 0.0
    %3755 = vmatpush1.xpose.msra.mxu0 %v3584
    %3756 = vmatprep.subr.mxu0 0.0
    %3757 = vmatpush1.xpose.msra.mxu0 %v3587
    %3758 = vmatprep.subr.mxu0 0.0
    %3759 = vmatpush1.xpose.msra.mxu0 %v3590
    %3760 = vmatprep.subr.mxu0 0.0
    %3761 = vmatpush1.xpose.msra.mxu0 %v3593
    %3762 = vmatprep.subr.mxu0 0.0
    %3763 = vmatpush1.xpose.msra.mxu0 %v3596
    %3764 = vmatprep.subr.mxu0 0.0
    %3765 = vmatpush1.xpose.msra.mxu0 %v3599
    %3766 = vmatprep.subr.mxu0 0.0
    %3767 = vmatpush1.xpose.msra.mxu0 %v3602
    %3768 = vmatprep.subr.mxu0 0.0
    %3769 = vmatpush1.xpose.msra.mxu0 %v3605
    %3770 = vmatprep.subr.mxu0 0.0
    %3771 = vmatpush1.xpose.msra.mxu0 %v3608
    %3772 = vmatprep.subr.mxu0 0.0
    %3773 = vmatpush1.xpose.msra.mxu0 %v3611
    %3774 = vmatprep.subr.mxu0 0.0
    %3775 = vmatpush1.xpose.msra.mxu0 %v3614
    %3776 = vmatprep.subr.mxu0 0.0
    %3777 = vmatpush1.xpose.msra.mxu0 %v3617
    %3778 = vmatprep.subr.mxu0 0.0
    %3779 = vmatpush1.xpose.msra.mxu0 %v3620
    %3780 = vmatprep.subr.mxu0 0.0
    %3781 = vmatpush1.xpose.msra.mxu0 %v3623
    %3782 = vmatprep.subr.mxu0 0.0
    %3783 = vmatpush1.xpose.msra.mxu0 %v3626
    %3784 = vmatprep.subr.mxu0 0.0
    %3785 = vmatpush1.xpose.msra.mxu0 %v3629
    %3786 = vmatprep.subr.mxu0 0.0
    %3787 = vmatpush1.xpose.msra.mxu0 %v3632
    %3788 = vmatprep.subr.mxu0 0.0
    %3789 = vmatpush1.xpose.msra.mxu0 %v3635
    %3790 = vmatprep.subr.mxu0 0.0
    %3791 = vmatpush1.xpose.msra.mxu0 %v3638
    %3792 = vmatprep.subr.mxu0 0.0
    %3793 = vmatpush1.xpose.msra.mxu0 %v3641
    %3794 = vmatprep.subr.mxu0 0.0
    %3795 = vmatpush1.xpose.msra.mxu0 %v3644
    %3796 = vmatprep.subr.mxu0 0.0
    %3797 = vmatpush1.xpose.msra.mxu0 %v3647
    %3798 = vmatprep.subr.mxu0 0.0
    %3799 = vmatpush1.xpose.msra.mxu0 %v3650
    %3800 = vmatprep.subr.mxu0 0.0
    %3801 = vmatpush1.xpose.msra.mxu0 %v3653
    %3802 = vmatprep.subr.mxu0 0.0
    %3803 = vmatpush1.xpose.msra.mxu0 %v3656
    %3804 = vmatprep.subr.mxu0 0.0
    %3805 = vmatpush1.xpose.msra.mxu0 %v3659
    %3806 = vmatprep.mubr.f32.mxu0 0.0
    %3807 = vmatmul.mubr.f32.gmra.mrb[0].mxu0 %v3740
    %v3808 = vpop.f32.mrb[0].mxu0
    %v3809 = vadd.f32 %v3737, %v3808
    %v3810 = vpop.f32.mrb[0].mxu0
    %v3811 = vadd.f32 %v3737, %v3810
    %3812 = vdwg.mxu0
    %v3813 = vld [vmem:[%s7] sm:$0xff]
    %v3816 = vcombine.low %v3728, %v3730
    %v3818 = vadd.f32 %v3813, %v3816
    %3819 = vst [vmem:[#allocation2] sm:$0xff] %v3818
    %vm3820 = vcmask 1042432
    %v3821 = vsel %vm3820, %v3809, -inf
    %v3822 = vrot.slane %v3821, 4
    %v3823 = vmax.f32 %v3821, %v3822
    %v3824 = vrot.slane %v3823, 2
    %v3825 = vmax.f32 %v3823, %v3824
    %v3826 = vrot.slane %v3825, 1
    %v3827 = vmax.f32 %v3825, %v3826
    %v3828 = vsel %vm3820, %v3811, -inf
    %v3829 = vrot.slane %v3828, 4
    %v3830 = vmax.f32 %v3828, %v3829
    %v3831 = vrot.slane %v3830, 2
    %v3832 = vmax.f32 %v3830, %v3831
    %v3833 = vrot.slane %v3832, 1
    %v3834 = vmax.f32 %v3832, %v3833
    %v3835 = vsub.f32 %v3809, %v3827
    %v3836 = vsub.f32 %v3811, %v3834
    %v3837 = vmul.f32 %v3835, 1.442695
    %v3838 = vpow.pop %v3837
    %v3839 = vmul.f32 %v3836, 1.442695
    %v3840 = vpow.pop %v3839
    %v3841 = vsel %vm3820, %v3838, 0.0
    %v3842 = vrot.slane %v3841, 4
    %v3843 = vadd.f32 %v3841, %v3842
    %v3844 = vrot.slane %v3843, 2
    %v3845 = vadd.f32 %v3843, %v3844
    %v3846 = vrot.slane %v3845, 1
    %v3847 = vadd.f32 %v3845, %v3846
    %v3848 = vsel %vm3820, %v3840, 0.0
    %v3849 = vrot.slane %v3848, 4
    %v3850 = vadd.f32 %v3848, %v3849
    %v3851 = vrot.slane %v3850, 2
    %v3852 = vadd.f32 %v3850, %v3851
    %v3853 = vrot.slane %v3852, 1
    %v3854 = vadd.f32 %v3852, %v3853
    %v3855 = vrcp.pop %v3847
    %v3856 = vrcp.pop %v3854
    %v3859 = vcombine.low %v3855, %v3856
    %v3861 = vunpack.c.l.s4 1966171168
    %v3862 = vunpack.c.0.s8 %v3861
    %v3863 = vlaneseq
    %v3864 = vshrl.u32 %v3863, 7
    %v3865 = vsub.s32 %v3862, %v3864
    %v3866 = vrot.slane %v3859, %v3865
    %v3868 = vunpack.c.l.s4 1966171168
    %v3869 = vunpack.c.0.s8 %v3868
    %v3870 = vlaneseq
    %v3871 = vshrl.u32 %v3870, 7
    %v3872 = vsub.s32 %v3869, %v3871
    %v3873 = vrot.slane %v3866, %v3872
    %v3875 = vlaneseq
    %vm3876 = vcmp.ge.s32.totalorder %v3875, 0
    %vm3877 = vcmp.lt.s32.totalorder %v3875, 256
    %vm3878 = vmand %vm3876, %vm3877
    %3879 = vst.msk [vmem:[#allocation4] sm:$0x3] %vm3878, %v3873
    %v3880 = vlaneseq
    %v3881 = vshrl.u32 %v3880, 7
    %vm3882 = vcmp.ge.f32.partialorder %v3809, %v3827
    %vm3883 = vcmp.ge.f32.partialorder %v3811, %v3834
    %v3884 = vsel %vm3882, %v3881, 3
    %v3885 = vsel %vm3883, %v3881, 3
    %v3886 = vsel %vm3820, %v3884, 2147483647
    %v3887 = vrot.slane %v3886, 4
    %vm3888 = vcmp.lt.s32.totalorder %v3886, %v3887
    %v3889 = vsel %vm3888, %v3886, %v3887
    %v3890 = vrot.slane %v3889, 2
    %vm3891 = vcmp.lt.s32.totalorder %v3889, %v3890
    %v3892 = vsel %vm3891, %v3889, %v3890
    %v3893 = vrot.slane %v3892, 1
    %vm3894 = vcmp.lt.s32.totalorder %v3892, %v3893
    %v3895 = vsel %vm3894, %v3892, %v3893
    %v3896 = vsel %vm3820, %v3885, 2147483647
    %v3897 = vrot.slane %v3896, 4
    %vm3898 = vcmp.lt.s32.totalorder %v3896, %v3897
    %v3899 = vsel %vm3898, %v3896, %v3897
    %v3900 = vrot.slane %v3899, 2
    %vm3901 = vcmp.lt.s32.totalorder %v3899, %v3900
    %v3902 = vsel %vm3901, %v3899, %v3900
    %v3903 = vrot.slane %v3902, 1
    %vm3904 = vcmp.lt.s32.totalorder %v3902, %v3903
    %v3905 = vsel %vm3904, %v3902, %v3903
    %v3906 = vcombine.low %v3895, %v3905
    %v3908 = vunpack.c.l.s4 1966171168
    %v3909 = vunpack.c.0.s8 %v3908
    %v3910 = vlaneseq
    %v3911 = vshrl.u32 %v3910, 7
    %v3912 = vsub.s32 %v3909, %v3911
    %v3913 = vrot.slane %v3906, %v3912
    %v3915 = vunpack.c.l.s4 1966171168
    %v3916 = vunpack.c.0.s8 %v3915
    %v3917 = vlaneseq
    %v3918 = vshrl.u32 %v3917, 7
    %v3919 = vsub.s32 %v3916, %v3918
    %v3920 = vrot.slane %v3913, %v3919
    %3921 = vst.msk [vmem:[#allocation6] sm:$0x3] %vm3878, %v3920
    // Predicated region
    $region34: #{trace_wrapper_forward.1} parent=1 // pred_check
      _
    $region35: #{trace_wrapper_forward.1} parent=1 // pred_check_branch
      %3923 = sbr.rel (0) target = $region37
    $region36: #{trace_wrapper_forward.1} parent=1 // pred_region
      %s3925 = ssub.s32 128, 128
      %3926 = vsyncadd [#allocation3], %s3925
      %s3928 = sshll.u32 [#allocation2], 4
      %s3929 = int_to_ptr.vmem [resolvable:$true] %s3928
      %3931 = dma.vmem_to_hbm [thread:$0]  %s3929, 128, %s8, [#allocation3]
    $region37: #{trace_wrapper_forward.1} parent=1 // pred_fallthru
      _
    // Predicated region
    $region38: #{trace_wrapper_forward.1} parent=1 // pred_check
      _
    $region39: #{trace_wrapper_forward.1} parent=1 // pred_check_branch
      %3933 = sbr.rel (0) target = $region41
    $region40: #{trace_wrapper_forward.1} parent=1 // pred_region
      %s3935 = ssub.s32 32, 32
      %3936 = vsyncadd [#allocation5], %s3935
      %s3938 = sshll.u32 [#allocation4], 4
      %s3939 = int_to_ptr.vmem [resolvable:$true] %s3938
      %3941 = dma.vmem_to_hbm [thread:$0]  %s3939, 32, %s9, [#allocation5]
    $region41: #{trace_wrapper_forward.1} parent=1 // pred_fallthru
      _
    // Predicated region
    $region42: #{trace_wrapper_forward.1} parent=1 // pred_check
      _
    $region43: #{trace_wrapper_forward.1} parent=1 // pred_check_branch
      %3943 = sbr.rel (0) target = $region45
    $region44: #{trace_wrapper_forward.1} parent=1 // pred_region
      %s3945 = ssub.s32 32, 32
      %3946 = vsyncadd [#allocation5], %s3945
      %s3948 = sshll.u32 [#allocation6], 4
      %s3949 = int_to_ptr.vmem [resolvable:$true] %s3948
      %3951 = dma.vmem_to_hbm [thread:$0]  %s3949, 32, %s10, [#allocation5]
    $region45: #{trace_wrapper_forward.1} parent=1 // pred_fallthru
      _
    // Predicated region
    $region46: #{trace_wrapper_forward.1} parent=1 // pred_check
      _
    $region47: #{trace_wrapper_forward.1} parent=1 // pred_check_branch
      %3953 = sbr.rel (0) target = $region49
    $region48: #{trace_wrapper_forward.1} parent=1 // pred_region
      %3954 = dma.done [#allocation3], 128
    $region49: #{trace_wrapper_forward.1} parent=1 // pred_fallthru
      _
    // Predicated region
    $region50: #{trace_wrapper_forward.1} parent=1 // pred_check
      _
    $region51: #{trace_wrapper_forward.1} parent=1 // pred_check_branch
      %3956 = sbr.rel (0) target = $region53
    $region52: #{trace_wrapper_forward.1} parent=1 // pred_region
      %3957 = dma.done [#allocation5], 32
    $region53: #{trace_wrapper_forward.1} parent=1 // pred_fallthru
      _
    // Predicated region
    $region54: #{trace_wrapper_forward.1} parent=1 // pred_check
      _
    $region55: #{trace_wrapper_forward.1} parent=1 // pred_check_branch
      %3959 = sbr.rel (0) target = $region57
    $region56: #{trace_wrapper_forward.1} parent=1 // pred_region
      %3960 = dma.done [#allocation5], 32
    $region57: #{trace_wrapper_forward.1} parent=1 // pred_fallthru
      _
    %3961 = vsyncpa [#allocation3], 1
    %3962 = vsyncpa [#allocation5], 1

</llo_original>
